<compile_context>
chip_gen: v7x
topology: tpu7x:2x2x1
jax: 0.10.0
libtpu: 0.0.40
codegen_flags: <defaults>
</compile_context>

<pallas_src>
import math
import functools

import jax
import jax.numpy as jnp
import numpy as np
from jax.experimental import pallas as pl
from jax.experimental.pallas import tpu as pltpu

LN_EPS = 1e-5


def _layernorm(x, gamma, beta):
    """Two-pass LayerNorm (PyTorch semantics, biased variance)."""
    mu = jnp.mean(x, axis=-1, keepdims=True)
    xc = x - mu
    var = jnp.mean(xc * xc, axis=-1, keepdims=True)
    return xc * jax.lax.rsqrt(var + LN_EPS) * gamma + beta


def transformer_block_kernel(
    x_ref,                      # (b_blk, S, D)   activations (f32)
    wqkv_ref, bqkv_ref,         # (D, 3D) bf16, (1, 3D) f32  fused QKV proj (scale folded into Q part)
    wo_ref, bo_ref,             # (D, D)  bf16, (1, D)  f32  out_proj.weight.T / bias
    g1_ref, be1_ref,            # (1, D)                     LayerNorm1 gamma/beta
    w1_ref, bf1_ref,            # (D, H) bf16, (1, H)        ffn[0]
    w2_ref, bf2_ref,            # (H, H) bf16, (1, H)        ffn[3]
    g2_ref, be2_ref,            # (1, H)                     LayerNorm2 gamma/beta
    o_ref,                      # (b_blk, S, H)
    *, num_heads,
):
    b_blk, S, D = x_ref.shape
    H = o_ref.shape[-1]
    nh = num_heads
    hd = D // nh
    cdt = wqkv_ref.dtype                        # MXU operand dtype (bf16)
    M = b_blk * S

    x = x_ref[...].astype(jnp.float32)          # residual path stays f32
    x2d = x.reshape(M, D)                       # fold batch*seq into GEMM M dim

    # ---- fused QKV projection: one lane-dense (M, D) @ (D, 3D) GEMM ----
    qkv = jnp.dot(x2d.astype(cdt), wqkv_ref[...],
                  preferred_element_type=jnp.float32) + bqkv_ref[...]   # (M, 3D) f32

    def heads_of(base):
        # Static lane slices of the fused projection, stacked along a leading
        # head axis -> (nh * b_blk, S, hd) bf16 MXU operand (head-major order).
        parts = [
            qkv[:, base + h * hd: base + (h + 1) * hd]
            .reshape(b_blk, S, hd).astype(cdt)
            for h in range(nh)
        ]
        return jnp.concatenate(parts, axis=0)

    q = heads_of(0)          # (nh*b, S, hd)
    k = heads_of(D)
    v = heads_of(2 * D)

    # ---- attention batched over (head, batch); f32 softmax ----
    s = jnp.einsum("bqd,bkd->bqk", q, k,
                   preferred_element_type=jnp.float32)                  # (nh*b, S, S)
    s = s - jnp.max(s, axis=-1, keepdims=True)
    p = jnp.exp(s)
    p = p * pl.reciprocal(jnp.sum(p, axis=-1, keepdims=True), approx=True)

    oh = jnp.einsum("bqk,bkd->bqd", p.astype(cdt), v,
                    preferred_element_type=jnp.float32)                 # (nh*b, S, hd)

    # ---- merge heads back to (M, D) and do ONE K = D output-projection GEMM ----
    attn_in = jnp.concatenate(
        [oh[h * b_blk:(h + 1) * b_blk].reshape(M, hd) for h in range(nh)],
        axis=-1)                                                        # (M, D) f32
    attn = jnp.dot(attn_in.astype(cdt), wo_ref[...],
                   preferred_element_type=jnp.float32) + bo_ref[...]

    # ---- residual + LayerNorm1 (f32) ----
    x1 = _layernorm(x2d + attn, g1_ref[...], be1_ref[...])              # (M, D)

    # ---- FFN: Linear -> ReLU -> [Dropout = identity] -> Linear ----
    h1 = jnp.dot(x1.astype(cdt), w1_ref[...], preferred_element_type=jnp.float32)
    h1 = jnp.maximum(h1 + bf1_ref[...], 0.0)
    h2 = jnp.dot(h1.astype(cdt), w2_ref[...], preferred_element_type=jnp.float32)
    h2 = h2 + bf2_ref[...]

    # ---- residual + LayerNorm2 (f32) ----
    out = _layernorm(x1 + h2, g2_ref[...], be2_ref[...])
    o_ref[...] = out.reshape(b_blk, S, H).astype(o_ref.dtype)


# ----------------------------- wrapper / tiling ------------------------------

def _per_batch_vmem_bytes(S, D, H, num_heads):
    """Rough per-batch-element VMEM footprint of one grid step (bytes)."""
    f32, bf16 = 4, 2
    hd = D // num_heads
    b = 0
    b += 2 * S * D * f32                       # x tile (double-buffered pipeline)
    b += 2 * S * H * f32                       # out tile (double-buffered pipeline)
    b += S * 3 * D * (f32 + bf16)              # fused qkv (f32) + bf16 head copies
    b += 2 * num_heads * S * S * f32           # scores + probs
    b += num_heads * S * hd * (f32 + bf16)     # attention output (+ bf16 copy)
    b += S * D * f32 * 3                       # attn, x1, residual temporaries
    b += S * H * f32 * 3                       # h1, h2, out
    return b


def _pick_b_block(B, S, D, H, num_heads, weight_bytes,
                  vmem_budget=24 * 1024 * 1024, min_grid_steps=4):
    """Derive the batch block from a VMEM budget; keep >= min_grid_steps steps."""
    if weight_bytes >= vmem_budget:
        raise ValueError(
            "Resident weights exceed the VMEM budget; tile the FFN / projection "
            "weights along an 'arbitrary' grid axis (see TODO in this file).")
    per_b = _per_batch_vmem_bytes(S, D, H, num_heads)
    cap = max(1, (vmem_budget - weight_bytes) // per_b)
    if B >= min_grid_steps:
        # Enough grid steps for pipeline depth and for both v7x TensorCores.
        cap = min(cap, max(1, B // min_grid_steps))
    return max(d for d in range(1, B + 1) if B % d == 0 and d <= cap)


def transformer_block(x, kp, *, num_heads, b_block=None):
    B, S, D = x.shape
    H = kp["w2"].shape[-1]
    assert D == H, "residual + LayerNorm2 require input_size == hidden_size"
    assert D % num_heads == 0

    weights = (kp["wqkv"], kp["bqkv"], kp["wo"], kp["bo"],
               kp["g1"], kp["be1"], kp["w1"], kp["bf1"],
               kp["w2"], kp["bf2"], kp["g2"], kp["be2"])
    weight_bytes = sum(int(a.size) * a.dtype.itemsize for a in weights)

    if b_block is None:
        b_block = _pick_b_block(B, S, D, H, num_heads, weight_bytes)
    assert B % b_block == 0
    grid = (B // b_block,)

    kernel = functools.partial(transformer_block_kernel, num_heads=num_heads)

    def build(single_buffer_weights):
        def wspec(a):
            nd = a.ndim
            if single_buffer_weights:
                # Constant-index resident blocks: no need for double buffering.
                return pl.BlockSpec(a.shape, lambda b: (0,) * nd,
                                    pipeline_mode=pl.Buffered(1))
            return pl.BlockSpec(a.shape, lambda b: (0,) * nd)

        return pl.pallas_call(
            kernel,
            out_shape=jax.ShapeDtypeStruct((B, S, H), x.dtype),
            grid_spec=pltpu.PrefetchScalarGridSpec(
                num_scalar_prefetch=0,
                grid=grid,
                in_specs=[pl.BlockSpec((b_block, S, D), lambda b: (b, 0, 0))]
                         + [wspec(a) for a in weights],
                out_specs=pl.BlockSpec((b_block, S, H), lambda b: (b, 0, 0)),
            ),
            compiler_params=pltpu.CompilerParams(
                dimension_semantics=("parallel",),
                vmem_limit_bytes=32 * 1024 * 1024),
        )

    try:
        return build(True)(x, *weights)
    except Exception:
        # Fallback for jax versions without BlockSpec pipeline_mode / Buffered(1):
        # default double-buffered resident weights (correctness identical).
        return build(False)(x, *weights)


# ----------------------------- host-side helpers -----------------------------

def init_params(key, D, H):
    """PyTorch-layout parameters (nn.MultiheadAttention + LayerNorms + FFN)."""
    ks = jax.random.split(key, 8)
    n = lambda k, shp, s: jax.random.normal(k, shp, jnp.float32) * s
    return dict(
        in_proj_w=n(ks[0], (3 * D, D), 0.05),   # nn.MultiheadAttention.in_proj_weight
        in_proj_b=n(ks[1], (3 * D,), 0.02),
        out_proj_w=n(ks[2], (D, D), 0.05),      # out_proj.weight
        out_proj_b=n(ks[3], (D,), 0.02),
        ln1_g=jnp.ones((D,), jnp.float32), ln1_b=jnp.zeros((D,), jnp.float32),
        ffn_w1=n(ks[4], (H, D), 0.05), ffn_b1=n(ks[5], (H,), 0.02),
        ffn_w2=n(ks[6], (H, H), 0.05), ffn_b2=n(ks[7], (H,), 0.02),
        ln2_g=jnp.ones((H,), jnp.float32), ln2_b=jnp.zeros((H,), jnp.float32),
    )


def prepare_kernel_params(p, num_heads, matmul_dtype=jnp.bfloat16):
    """Build the fused (D, 3D) QKV weight (scale folded into the Q columns/bias)
    and cast all GEMM weights to bf16 (halves resident VMEM, bf16 MXU path)."""
    D = p["in_proj_w"].shape[1]
    H = p["ffn_w2"].shape[0]
    hd = D // num_heads
    scale = 1.0 / math.sqrt(hd)

    wq, wk, wv = jnp.split(p["in_proj_w"], 3, axis=0)   # (D, D) each
    bq, bk, bv = jnp.split(p["in_proj_b"], 3, axis=0)   # (D,) each

    wqkv = jnp.concatenate([wq.T * scale, wk.T, wv.T], axis=1).astype(matmul_dtype)
    bqkv = jnp.concatenate([bq * scale, bk, bv]).reshape(1, 3 * D).astype(jnp.float32)

    return dict(
        wqkv=wqkv, bqkv=bqkv,
        wo=p["out_proj_w"].T.astype(matmul_dtype),
        bo=p["out_proj_b"].reshape(1, D).astype(jnp.float32),
        g1=p["ln1_g"].reshape(1, D), be1=p["ln1_b"].reshape(1, D),
        w1=p["ffn_w1"].T.astype(matmul_dtype), bf1=p["ffn_b1"].reshape(1, H),
        w2=p["ffn_w2"].T.astype(matmul_dtype), bf2=p["ffn_b2"].reshape(1, H),
        g2=p["ln2_g"].reshape(1, H), be2=p["ln2_b"].reshape(1, H),
    )


def reference(x, p, *, num_heads):
    """Pure-JAX f32 reference mirroring PyTorch eval-mode semantics."""
    B, S, D = x.shape
    hd = D // num_heads

    def ln(t, g, b):
        mu = jnp.mean(t, axis=-1, keepdims=True)
        tc = t - mu
        var = jnp.mean(tc * tc, axis=-1, keepdims=True)
        return tc * jax.lax.rsqrt(var + LN_EPS) * g + b

    qkv = x @ p["in_proj_w"].T + p["in_proj_b"]          # (B, S, 3D)
    q, k, v = jnp.split(qkv, 3, axis=-1)

    def split_heads(t):                                  # (B,S,D) -> (B,nh,S,hd)
        return t.reshape(B, S, num_heads, hd).transpose(0, 2, 1, 3)

    q = split_heads(q) / math.sqrt(hd)
    k, v = split_heads(k), split_heads(v)
    s = jnp.einsum("bhqd,bhkd->bhqk", q, k)
    a = jax.nn.softmax(s, axis=-1)
    o = jnp.einsum("bhqk,bhkd->bhqd", a, v).transpose(0, 2, 1, 3).reshape(B, S, D)
    o = o @ p["out_proj_w"].T + p["out_proj_b"]

    x1 = ln(x + o, p["ln1_g"], p["ln1_b"])
    f = jnp.maximum(x1 @ p["ffn_w1"].T + p["ffn_b1"], 0.0)
    f = f @ p["ffn_w2"].T + p["ffn_b2"]
    return ln(x1 + f, p["ln2_g"], p["ln2_b"])


if __name__ == "__main__":
    # Small shapes consistent with the module (input_size == hidden_size == D).
    # D = H = 128 keeps every GEMM / store lane-dense (fused QKV N = 384);
    # B = 4 with the auto-picked b_block = 1 gives a 4-step "parallel" grid.
    B, S, D = 4, 16, 128
    H = D
    num_heads = 4

    key = jax.random.PRNGKey(0)
    kx, kp = jax.random.split(key)
    x = jax.random.normal(kx, (B, S, D), jnp.float32)
    params = init_params(kp, D, H)
    kparams = prepare_kernel_params(params, num_heads)   # bf16 GEMM weights

    out = transformer_block(x, kparams, num_heads=num_heads)
    out = jax.block_until_ready(out)

    ref = reference(x, params, num_heads=num_heads)      # exact f32 reference
    # bf16 MXU operands + approx reciprocal vs. exact f32 reference: 2e-2 tol.
    np.testing.assert_allclose(np.asarray(out), np.asarray(ref),
                               rtol=2e-2, atol=2e-2)
    print("KERNEL_OK")
</pallas_src>

<mosaic_0001>
module attributes {stable_mosaic.version = 11 : i64} {
  func.func @transformer_block_kernel(%arg0: i32, %arg1: memref<1x16x128xf32, #tpu.memory_space<vmem>>, %arg2: memref<128x384xbf16, #tpu.memory_space<vmem>>, %arg3: memref<1x384xf32, #tpu.memory_space<vmem>>, %arg4: memref<128x128xbf16, #tpu.memory_space<vmem>>, %arg5: memref<1x128xf32, #tpu.memory_space<vmem>>, %arg6: memref<1x128xf32, #tpu.memory_space<vmem>>, %arg7: memref<1x128xf32, #tpu.memory_space<vmem>>, %arg8: memref<128x128xbf16, #tpu.memory_space<vmem>>, %arg9: memref<1x128xf32, #tpu.memory_space<vmem>>, %arg10: memref<128x128xbf16, #tpu.memory_space<vmem>>, %arg11: memref<1x128xf32, #tpu.memory_space<vmem>>, %arg12: memref<1x128xf32, #tpu.memory_space<vmem>>, %arg13: memref<1x128xf32, #tpu.memory_space<vmem>>, %arg14: memref<1x16x128xf32, #tpu.memory_space<vmem>>) attributes {dimension_semantics = [#tpu.dimension_semantics<parallel>], iteration_bounds = array<i64: 4>, scalar_prefetch = 0 : i64, scratch_operands = 0 : i64, tpu.core_type = #tpu.core_type<tc>, window_params = [{transform_indices = @transform_0, window_bounds = array<i64: 1, 16, 128>}, {pipeline_mode = #tpu.pipeline_mode<synchronous>, transform_indices = @transform_1, window_bounds = array<i64: 128, 384>}, {pipeline_mode = #tpu.pipeline_mode<synchronous>, transform_indices = @transform_2, window_bounds = array<i64: 1, 384>}, {pipeline_mode = #tpu.pipeline_mode<synchronous>, transform_indices = @transform_3, window_bounds = array<i64: 128, 128>}, {pipeline_mode = #tpu.pipeline_mode<synchronous>, transform_indices = @transform_4, window_bounds = array<i64: 1, 128>}, {pipeline_mode = #tpu.pipeline_mode<synchronous>, transform_indices = @transform_5, window_bounds = array<i64: 1, 128>}, {pipeline_mode = #tpu.pipeline_mode<synchronous>, transform_indices = @transform_6, window_bounds = array<i64: 1, 128>}, {pipeline_mode = #tpu.pipeline_mode<synchronous>, transform_indices = @transform_7, window_bounds = array<i64: 128, 128>}, {pipeline_mode = #tpu.pipeline_mode<synchronous>, transform_indices = @transform_8, window_bounds = array<i64: 1, 128>}, {pipeline_mode = #tpu.pipeline_mode<synchronous>, transform_indices = @transform_9, window_bounds = array<i64: 128, 128>}, {pipeline_mode = #tpu.pipeline_mode<synchronous>, transform_indices = @transform_10, window_bounds = array<i64: 1, 128>}, {pipeline_mode = #tpu.pipeline_mode<synchronous>, transform_indices = @transform_11, window_bounds = array<i64: 1, 128>}, {pipeline_mode = #tpu.pipeline_mode<synchronous>, transform_indices = @transform_12, window_bounds = array<i64: 1, 128>}, {transform_indices = @transform_13, window_bounds = array<i64: 1, 16, 128>}]} {
    %c0 = arith.constant 0 : index
    %c0_0 = arith.constant 0 : index
    %c0_1 = arith.constant 0 : index
    %0 = vector.load %arg1[%c0, %c0_0, %c0_1] : memref<1x16x128xf32, #tpu.memory_space<vmem>>, vector<1x16x128xf32>
    %1 = vector.shape_cast %0 : vector<1x16x128xf32> to vector<16x128xf32>
    %2 = arith.truncf %1 : vector<16x128xf32> to vector<16x128xbf16>
    %c0_2 = arith.constant 0 : index
    %c0_3 = arith.constant 0 : index
    %3 = vector.load %arg2[%c0_2, %c0_3] : memref<128x384xbf16, #tpu.memory_space<vmem>>, vector<128x384xbf16>
    %cst = arith.constant dense<0.000000e+00> : vector<16x384xf32>
    %4 = tpu.matmul %2, %3, %cst {dimension_numbers = #tpu.dot_dimension_numbers<[1], [0], [0], [1], [0, 0, 1, 1], [], []>} : vector<16x128xbf16>, vector<128x384xbf16>, vector<16x384xf32> -> vector<16x384xf32>
    %c0_4 = arith.constant 0 : index
    %c0_5 = arith.constant 0 : index
    %5 = vector.load %arg3[%c0_4, %c0_5] : memref<1x384xf32, #tpu.memory_space<vmem>>, vector<1x384xf32>
    %6 = vector.broadcast %5 : vector<1x384xf32> to vector<16x384xf32>
    %7 = arith.addf %4, %6 : vector<16x384xf32>
    %8 = vector.extract_strided_slice %7 {offsets = [0, 0], sizes = [16, 32], strides = [1, 1]} : vector<16x384xf32> to vector<16x32xf32>
    %9 = vector.shape_cast %8 : vector<16x32xf32> to vector<1x16x32xf32>
    %10 = arith.truncf %9 : vector<1x16x32xf32> to vector<1x16x32xbf16>
    %11 = vector.extract_strided_slice %7 {offsets = [0, 32], sizes = [16, 32], strides = [1, 1]} : vector<16x384xf32> to vector<16x32xf32>
    %12 = vector.shape_cast %11 : vector<16x32xf32> to vector<1x16x32xf32>
    %13 = arith.truncf %12 : vector<1x16x32xf32> to vector<1x16x32xbf16>
    %14 = vector.extract_strided_slice %7 {offsets = [0, 64], sizes = [16, 32], strides = [1, 1]} : vector<16x384xf32> to vector<16x32xf32>
    %15 = vector.shape_cast %14 : vector<16x32xf32> to vector<1x16x32xf32>
    %16 = arith.truncf %15 : vector<1x16x32xf32> to vector<1x16x32xbf16>
    %17 = vector.extract_strided_slice %7 {offsets = [0, 96], sizes = [16, 32], strides = [1, 1]} : vector<16x384xf32> to vector<16x32xf32>
    %18 = vector.shape_cast %17 : vector<16x32xf32> to vector<1x16x32xf32>
    %19 = arith.truncf %18 : vector<1x16x32xf32> to vector<1x16x32xbf16>
    %20 = tpu.concatenate %10, %13, %16, %19 in 0 : vector<1x16x32xbf16>, vector<1x16x32xbf16>, vector<1x16x32xbf16>, vector<1x16x32xbf16> -> vector<4x16x32xbf16>
    %21 = vector.extract_strided_slice %7 {offsets = [0, 128], sizes = [16, 32], strides = [1, 1]} : vector<16x384xf32> to vector<16x32xf32>
    %22 = vector.shape_cast %21 : vector<16x32xf32> to vector<1x16x32xf32>
    %23 = arith.truncf %22 : vector<1x16x32xf32> to vector<1x16x32xbf16>
    %24 = vector.extract_strided_slice %7 {offsets = [0, 160], sizes = [16, 32], strides = [1, 1]} : vector<16x384xf32> to vector<16x32xf32>
    %25 = vector.shape_cast %24 : vector<16x32xf32> to vector<1x16x32xf32>
    %26 = arith.truncf %25 : vector<1x16x32xf32> to vector<1x16x32xbf16>
    %27 = vector.extract_strided_slice %7 {offsets = [0, 192], sizes = [16, 32], strides = [1, 1]} : vector<16x384xf32> to vector<16x32xf32>
    %28 = vector.shape_cast %27 : vector<16x32xf32> to vector<1x16x32xf32>
    %29 = arith.truncf %28 : vector<1x16x32xf32> to vector<1x16x32xbf16>
    %30 = vector.extract_strided_slice %7 {offsets = [0, 224], sizes = [16, 32], strides = [1, 1]} : vector<16x384xf32> to vector<16x32xf32>
    %31 = vector.shape_cast %30 : vector<16x32xf32> to vector<1x16x32xf32>
    %32 = arith.truncf %31 : vector<1x16x32xf32> to vector<1x16x32xbf16>
    %33 = tpu.concatenate %23, %26, %29, %32 in 0 : vector<1x16x32xbf16>, vector<1x16x32xbf16>, vector<1x16x32xbf16>, vector<1x16x32xbf16> -> vector<4x16x32xbf16>
    %34 = vector.extract_strided_slice %7 {offsets = [0, 256], sizes = [16, 32], strides = [1, 1]} : vector<16x384xf32> to vector<16x32xf32>
    %35 = vector.shape_cast %34 : vector<16x32xf32> to vector<1x16x32xf32>
    %36 = arith.truncf %35 : vector<1x16x32xf32> to vector<1x16x32xbf16>
    %37 = vector.extract_strided_slice %7 {offsets = [0, 288], sizes = [16, 32], strides = [1, 1]} : vector<16x384xf32> to vector<16x32xf32>
    %38 = vector.shape_cast %37 : vector<16x32xf32> to vector<1x16x32xf32>
    %39 = arith.truncf %38 : vector<1x16x32xf32> to vector<1x16x32xbf16>
    %40 = vector.extract_strided_slice %7 {offsets = [0, 320], sizes = [16, 32], strides = [1, 1]} : vector<16x384xf32> to vector<16x32xf32>
    %41 = vector.shape_cast %40 : vector<16x32xf32> to vector<1x16x32xf32>
    %42 = arith.truncf %41 : vector<1x16x32xf32> to vector<1x16x32xbf16>
    %43 = vector.extract_strided_slice %7 {offsets = [0, 352], sizes = [16, 32], strides = [1, 1]} : vector<16x384xf32> to vector<16x32xf32>
    %44 = vector.shape_cast %43 : vector<16x32xf32> to vector<1x16x32xf32>
    %45 = arith.truncf %44 : vector<1x16x32xf32> to vector<1x16x32xbf16>
    %46 = tpu.concatenate %36, %39, %42, %45 in 0 : vector<1x16x32xbf16>, vector<1x16x32xbf16>, vector<1x16x32xbf16>, vector<1x16x32xbf16> -> vector<4x16x32xbf16>
    "tpu.trace_start"() <{level = 10 : i32, message = "bqd,bkd->bqk"}> : () -> ()
    %cst_6 = arith.constant dense<0.000000e+00> : vector<4x16x16xf32>
    %47 = tpu.matmul %20, %33, %cst_6 {dimension_numbers = #tpu.dot_dimension_numbers<[2], [2], [1], [1], [0, 0, 0, 1, 1, 1], [0], [0]>} : vector<4x16x32xbf16>, vector<4x16x32xbf16>, vector<4x16x16xf32> -> vector<4x16x16xf32>
    "tpu.trace_stop"() : () -> ()
    %cst_7 = arith.constant dense<0xFF800000> : vector<4x16xf32>
    %48 = vector.multi_reduction <maximumf>, %47, %cst_7 [2] : vector<4x16x16xf32> to vector<4x16xf32>
    %49 = vector.shape_cast %48 : vector<4x16xf32> to vector<4x16x1xf32>
    %50 = vector.broadcast %49 : vector<4x16x1xf32> to vector<4x16x16xf32>
    %51 = arith.subf %47, %50 : vector<4x16x16xf32>
    %52 = math.exp %51 : vector<4x16x16xf32>
    %cst_8 = arith.constant dense<0.000000e+00> : vector<4x16xf32>
    %53 = vector.multi_reduction <add>, %52, %cst_8 [2] : vector<4x16x16xf32> to vector<4x16xf32>
    %54 = vector.shape_cast %53 : vector<4x16xf32> to vector<4x16x1xf32>
    %55 = tpu.reciprocal %54 {approx = true} : vector<4x16x1xf32> -> vector<4x16x1xf32>
    %56 = vector.broadcast %55 : vector<4x16x1xf32> to vector<4x16x16xf32>
    %57 = arith.mulf %52, %56 : vector<4x16x16xf32>
    %58 = arith.truncf %57 : vector<4x16x16xf32> to vector<4x16x16xbf16>
    "tpu.trace_start"() <{level = 10 : i32, message = "bqk,bkd->bqd"}> : () -> ()
    %cst_9 = arith.constant dense<0.000000e+00> : vector<4x16x32xf32>
    %59 = tpu.matmul %58, %46, %cst_9 {dimension_numbers = #tpu.dot_dimension_numbers<[2], [1], [1], [2], [0, 0, 0, 1, 1, 2], [0], [0]>} : vector<4x16x16xbf16>, vector<4x16x32xbf16>, vector<4x16x32xf32> -> vector<4x16x32xf32>
    "tpu.trace_stop"() : () -> ()
    %60 = vector.extract_strided_slice %59 {offsets = [0, 0, 0], sizes = [1, 16, 32], strides = [1, 1, 1]} : vector<4x16x32xf32> to vector<1x16x32xf32>
    %61 = vector.shape_cast %60 : vector<1x16x32xf32> to vector<16x32xf32>
    %62 = vector.extract_strided_slice %59 {offsets = [1, 0, 0], sizes = [1, 16, 32], strides = [1, 1, 1]} : vector<4x16x32xf32> to vector<1x16x32xf32>
    %63 = vector.shape_cast %62 : vector<1x16x32xf32> to vector<16x32xf32>
    %64 = vector.extract_strided_slice %59 {offsets = [2, 0, 0], sizes = [1, 16, 32], strides = [1, 1, 1]} : vector<4x16x32xf32> to vector<1x16x32xf32>
    %65 = vector.shape_cast %64 : vector<1x16x32xf32> to vector<16x32xf32>
    %66 = vector.extract_strided_slice %59 {offsets = [3, 0, 0], sizes = [1, 16, 32], strides = [1, 1, 1]} : vector<4x16x32xf32> to vector<1x16x32xf32>
    %67 = vector.shape_cast %66 : vector<1x16x32xf32> to vector<16x32xf32>
    %68 = tpu.concatenate %61, %63, %65, %67 in 1 : vector<16x32xf32>, vector<16x32xf32>, vector<16x32xf32>, vector<16x32xf32> -> vector<16x128xf32>
    %69 = arith.truncf %68 : vector<16x128xf32> to vector<16x128xbf16>
    %c0_10 = arith.constant 0 : index
    %c0_11 = arith.constant 0 : index
    %70 = vector.load %arg4[%c0_10, %c0_11] : memref<128x128xbf16, #tpu.memory_space<vmem>>, vector<128x128xbf16>
    %cst_12 = arith.constant dense<0.000000e+00> : vector<16x128xf32>
    %71 = tpu.matmul %69, %70, %cst_12 {dimension_numbers = #tpu.dot_dimension_numbers<[1], [0], [0], [1], [0, 0, 1, 1], [], []>} : vector<16x128xbf16>, vector<128x128xbf16>, vector<16x128xf32> -> vector<16x128xf32>
    %c0_13 = arith.constant 0 : index
    %c0_14 = arith.constant 0 : index
    %72 = vector.load %arg5[%c0_13, %c0_14] : memref<1x128xf32, #tpu.memory_space<vmem>>, vector<1x128xf32>
    %73 = vector.broadcast %72 : vector<1x128xf32> to vector<16x128xf32>
    %74 = arith.addf %71, %73 : vector<16x128xf32>
    %75 = arith.addf %1, %74 : vector<16x128xf32>
    %c0_15 = arith.constant 0 : index
    %c0_16 = arith.constant 0 : index
    %76 = vector.load %arg6[%c0_15, %c0_16] : memref<1x128xf32, #tpu.memory_space<vmem>>, vector<1x128xf32>
    %c0_17 = arith.constant 0 : index
    %c0_18 = arith.constant 0 : index
    %77 = vector.load %arg7[%c0_17, %c0_18] : memref<1x128xf32, #tpu.memory_space<vmem>>, vector<1x128xf32>
    %cst_19 = arith.constant dense<0.000000e+00> : vector<16xf32>
    %78 = vector.multi_reduction <add>, %75, %cst_19 [1] : vector<16x128xf32> to vector<16xf32>
    %79 = vector.shape_cast %78 : vector<16xf32> to vector<16x1xf32>
    %cst_20 = arith.constant 1.280000e+02 : f32
    %80 = vector.broadcast %cst_20 : f32 to vector<16x1xf32>
    %81 = arith.divf %79, %80 : vector<16x1xf32>
    %82 = vector.broadcast %81 : vector<16x1xf32> to vector<16x128xf32>
    %83 = arith.subf %75, %82 : vector<16x128xf32>
    %84 = arith.mulf %83, %83 : vector<16x128xf32>
    %cst_21 = arith.constant dense<0.000000e+00> : vector<16xf32>
    %85 = vector.multi_reduction <add>, %84, %cst_21 [1] : vector<16x128xf32> to vector<16xf32>
    %86 = vector.shape_cast %85 : vector<16xf32> to vector<16x1xf32>
    %cst_22 = arith.constant 1.280000e+02 : f32
    %87 = vector.broadcast %cst_22 : f32 to vector<16x1xf32>
    %88 = arith.divf %86, %87 : vector<16x1xf32>
    %cst_23 = arith.constant 9.99999974E-6 : f32
    %89 = vector.broadcast %cst_23 : f32 to vector<16x1xf32>
    %90 = arith.addf %88, %89 : vector<16x1xf32>
    %91 = math.rsqrt %90 : vector<16x1xf32>
    %92 = vector.broadcast %91 : vector<16x1xf32> to vector<16x128xf32>
    %93 = arith.mulf %83, %92 : vector<16x128xf32>
    %94 = vector.broadcast %76 : vector<1x128xf32> to vector<16x128xf32>
    %95 = arith.mulf %93, %94 : vector<16x128xf32>
    %96 = vector.broadcast %77 : vector<1x128xf32> to vector<16x128xf32>
    %97 = arith.addf %95, %96 : vector<16x128xf32>
    %98 = arith.truncf %97 : vector<16x128xf32> to vector<16x128xbf16>
    %c0_24 = arith.constant 0 : index
    %c0_25 = arith.constant 0 : index
    %99 = vector.load %arg8[%c0_24, %c0_25] : memref<128x128xbf16, #tpu.memory_space<vmem>>, vector<128x128xbf16>
    %cst_26 = arith.constant dense<0.000000e+00> : vector<16x128xf32>
    %100 = tpu.matmul %98, %99, %cst_26 {dimension_numbers = #tpu.dot_dimension_numbers<[1], [0], [0], [1], [0, 0, 1, 1], [], []>} : vector<16x128xbf16>, vector<128x128xbf16>, vector<16x128xf32> -> vector<16x128xf32>
    %c0_27 = arith.constant 0 : index
    %c0_28 = arith.constant 0 : index
    %101 = vector.load %arg9[%c0_27, %c0_28] : memref<1x128xf32, #tpu.memory_space<vmem>>, vector<1x128xf32>
    %102 = vector.broadcast %101 : vector<1x128xf32> to vector<16x128xf32>
    %103 = arith.addf %100, %102 : vector<16x128xf32>
    %cst_29 = arith.constant 0.000000e+00 : f32
    %104 = vector.broadcast %cst_29 : f32 to vector<16x128xf32>
    %105 = arith.maximumf %103, %104 : vector<16x128xf32>
    %106 = arith.truncf %105 : vector<16x128xf32> to vector<16x128xbf16>
    %c0_30 = arith.constant 0 : index
    %c0_31 = arith.constant 0 : index
    %107 = vector.load %arg10[%c0_30, %c0_31] : memref<128x128xbf16, #tpu.memory_space<vmem>>, vector<128x128xbf16>
    %cst_32 = arith.constant dense<0.000000e+00> : vector<16x128xf32>
    %108 = tpu.matmul %106, %107, %cst_32 {dimension_numbers = #tpu.dot_dimension_numbers<[1], [0], [0], [1], [0, 0, 1, 1], [], []>} : vector<16x128xbf16>, vector<128x128xbf16>, vector<16x128xf32> -> vector<16x128xf32>
    %c0_33 = arith.constant 0 : index
    %c0_34 = arith.constant 0 : index
    %109 = vector.load %arg11[%c0_33, %c0_34] : memref<1x128xf32, #tpu.memory_space<vmem>>, vector<1x128xf32>
    %110 = vector.broadcast %109 : vector<1x128xf32> to vector<16x128xf32>
    %111 = arith.addf %108, %110 : vector<16x128xf32>
    %112 = arith.addf %97, %111 : vector<16x128xf32>
    %c0_35 = arith.constant 0 : index
    %c0_36 = arith.constant 0 : index
    %113 = vector.load %arg12[%c0_35, %c0_36] : memref<1x128xf32, #tpu.memory_space<vmem>>, vector<1x128xf32>
    %c0_37 = arith.constant 0 : index
    %c0_38 = arith.constant 0 : index
    %114 = vector.load %arg13[%c0_37, %c0_38] : memref<1x128xf32, #tpu.memory_space<vmem>>, vector<1x128xf32>
    %cst_39 = arith.constant dense<0.000000e+00> : vector<16xf32>
    %115 = vector.multi_reduction <add>, %112, %cst_39 [1] : vector<16x128xf32> to vector<16xf32>
    %116 = vector.shape_cast %115 : vector<16xf32> to vector<16x1xf32>
    %cst_40 = arith.constant 1.280000e+02 : f32
    %117 = vector.broadcast %cst_40 : f32 to vector<16x1xf32>
    %118 = arith.divf %116, %117 : vector<16x1xf32>
    %119 = vector.broadcast %118 : vector<16x1xf32> to vector<16x128xf32>
    %120 = arith.subf %112, %119 : vector<16x128xf32>
    %121 = arith.mulf %120, %120 : vector<16x128xf32>
    %cst_41 = arith.constant dense<0.000000e+00> : vector<16xf32>
    %122 = vector.multi_reduction <add>, %121, %cst_41 [1] : vector<16x128xf32> to vector<16xf32>
    %123 = vector.shape_cast %122 : vector<16xf32> to vector<16x1xf32>
    %cst_42 = arith.constant 1.280000e+02 : f32
    %124 = vector.broadcast %cst_42 : f32 to vector<16x1xf32>
    %125 = arith.divf %123, %124 : vector<16x1xf32>
    %cst_43 = arith.constant 9.99999974E-6 : f32
    %126 = vector.broadcast %cst_43 : f32 to vector<16x1xf32>
    %127 = arith.addf %125, %126 : vector<16x1xf32>
    %128 = math.rsqrt %127 : vector<16x1xf32>
    %129 = vector.broadcast %128 : vector<16x1xf32> to vector<16x128xf32>
    %130 = arith.mulf %120, %129 : vector<16x128xf32>
    %131 = vector.broadcast %113 : vector<1x128xf32> to vector<16x128xf32>
    %132 = arith.mulf %130, %131 : vector<16x128xf32>
    %133 = vector.broadcast %114 : vector<1x128xf32> to vector<16x128xf32>
    %134 = arith.addf %132, %133 : vector<16x128xf32>
    %135 = vector.shape_cast %134 : vector<16x128xf32> to vector<1x16x128xf32>
    %c0_44 = arith.constant 0 : index
    %c0_45 = arith.constant 0 : index
    %c0_46 = arith.constant 0 : index
    %136 = vector.load %arg14[%c0_44, %c0_45, %c0_46] : memref<1x16x128xf32, #tpu.memory_space<vmem>>, vector<1x16x128xf32>
    tpu.vector_store %arg14[%c0_44, %c0_45, %c0_46], %135 {strides = array<i32>} : memref<1x16x128xf32, #tpu.memory_space<vmem>>, vector<1x16x128xf32>,
    return
  }
  func.func @transform_0(%arg0: i32) -> (i32, i32, i32) {
    %c0_i32 = arith.constant 0 : i32
    %c0_i32_0 = arith.constant 0 : i32
    %c0_i32_1 = arith.constant 0 : i32
    return %arg0, %c0_i32, %c0_i32_0 : i32, i32, i32
  }
  func.func @transform_1(%arg0: i32) -> (i32, i32) {
    %c0_i32 = arith.constant 0 : i32
    %c0_i32_0 = arith.constant 0 : i32
    %c0_i32_1 = arith.constant 0 : i32
    return %c0_i32, %c0_i32_0 : i32, i32
  }
  func.func @transform_2(%arg0: i32) -> (i32, i32) {
    %c0_i32 = arith.constant 0 : i32
    %c0_i32_0 = arith.constant 0 : i32
    %c0_i32_1 = arith.constant 0 : i32
    return %c0_i32, %c0_i32_0 : i32, i32
  }
  func.func @transform_3(%arg0: i32) -> (i32, i32) {
    %c0_i32 = arith.constant 0 : i32
    %c0_i32_0 = arith.constant 0 : i32
    %c0_i32_1 = arith.constant 0 : i32
    return %c0_i32, %c0_i32_0 : i32, i32
  }
  func.func @transform_4(%arg0: i32) -> (i32, i32) {
    %c0_i32 = arith.constant 0 : i32
    %c0_i32_0 = arith.constant 0 : i32
    %c0_i32_1 = arith.constant 0 : i32
    return %c0_i32, %c0_i32_0 : i32, i32
  }
  func.func @transform_5(%arg0: i32) -> (i32, i32) {
    %c0_i32 = arith.constant 0 : i32
    %c0_i32_0 = arith.constant 0 : i32
    %c0_i32_1 = arith.constant 0 : i32
    return %c0_i32, %c0_i32_0 : i32, i32
  }
  func.func @transform_6(%arg0: i32) -> (i32, i32) {
    %c0_i32 = arith.constant 0 : i32
    %c0_i32_0 = arith.constant 0 : i32
    %c0_i32_1 = arith.constant 0 : i32
    return %c0_i32, %c0_i32_0 : i32, i32
  }
  func.func @transform_7(%arg0: i32) -> (i32, i32) {
    %c0_i32 = arith.constant 0 : i32
    %c0_i32_0 = arith.constant 0 : i32
    %c0_i32_1 = arith.constant 0 : i32
    return %c0_i32, %c0_i32_0 : i32, i32
  }
  func.func @transform_8(%arg0: i32) -> (i32, i32) {
    %c0_i32 = arith.constant 0 : i32
    %c0_i32_0 = arith.constant 0 : i32
    %c0_i32_1 = arith.constant 0 : i32
    return %c0_i32, %c0_i32_0 : i32, i32
  }
  func.func @transform_9(%arg0: i32) -> (i32, i32) {
    %c0_i32 = arith.constant 0 : i32
    %c0_i32_0 = arith.constant 0 : i32
    %c0_i32_1 = arith.constant 0 : i32
    return %c0_i32, %c0_i32_0 : i32, i32
  }
  func.func @transform_10(%arg0: i32) -> (i32, i32) {
    %c0_i32 = arith.constant 0 : i32
    %c0_i32_0 = arith.constant 0 : i32
    %c0_i32_1 = arith.constant 0 : i32
    return %c0_i32, %c0_i32_0 : i32, i32
  }
  func.func @transform_11(%arg0: i32) -> (i32, i32) {
    %c0_i32 = arith.constant 0 : i32
    %c0_i32_0 = arith.constant 0 : i32
    %c0_i32_1 = arith.constant 0 : i32
    return %c0_i32, %c0_i32_0 : i32, i32
  }
  func.func @transform_12(%arg0: i32) -> (i32, i32) {
    %c0_i32 = arith.constant 0 : i32
    %c0_i32_0 = arith.constant 0 : i32
    %c0_i32_1 = arith.constant 0 : i32
    return %c0_i32, %c0_i32_0 : i32, i32
  }
  func.func @transform_13(%arg0: i32) -> (i32, i32, i32) {
    %c0_i32 = arith.constant 0 : i32
    %c0_i32_0 = arith.constant 0 : i32
    %c0_i32_1 = arith.constant 0 : i32
    return %arg0, %c0_i32, %c0_i32_0 : i32, i32, i32
  }
}

module attributes {stable_mosaic.version = 11 : i64} {
  func.func @transformer_block_kernel(%arg0: i32, %arg1: memref<1x16x128xf32, #tpu.memory_space<vmem>>, %arg2: memref<128x384xbf16, #tpu.memory_space<vmem>>, %arg3: memref<1x384xf32, #tpu.memory_space<vmem>>, %arg4: memref<128x128xbf16, #tpu.memory_space<vmem>>, %arg5: memref<1x128xf32, #tpu.memory_space<vmem>>, %arg6: memref<1x128xf32, #tpu.memory_space<vmem>>, %arg7: memref<1x128xf32, #tpu.memory_space<vmem>>, %arg8: memref<128x128xbf16, #tpu.memory_space<vmem>>, %arg9: memref<1x128xf32, #tpu.memory_space<vmem>>, %arg10: memref<128x128xbf16, #tpu.memory_space<vmem>>, %arg11: memref<1x128xf32, #tpu.memory_space<vmem>>, %arg12: memref<1x128xf32, #tpu.memory_space<vmem>>, %arg13: memref<1x128xf32, #tpu.memory_space<vmem>>, %arg14: memref<1x16x128xf32, #tpu.memory_space<vmem>>) attributes {dimension_semantics = [#tpu.dimension_semantics<parallel>], iteration_bounds = array<i64: 4>, scalar_prefetch = 0 : i64, scratch_operands = 0 : i64, tpu.core_type = #tpu.core_type<tc>, window_params = [{transform_indices = @transform_0, window_bounds = array<i64: 1, 16, 128>}, {pipeline_mode = #tpu.pipeline_mode<synchronous>, transform_indices = @transform_1, window_bounds = array<i64: 128, 384>}, {pipeline_mode = #tpu.pipeline_mode<synchronous>, transform_indices = @transform_2, window_bounds = array<i64: 1, 384>}, {pipeline_mode = #tpu.pipeline_mode<synchronous>, transform_indices = @transform_3, window_bounds = array<i64: 128, 128>}, {pipeline_mode = #tpu.pipeline_mode<synchronous>, transform_indices = @transform_4, window_bounds = array<i64: 1, 128>}, {pipeline_mode = #tpu.pipeline_mode<synchronous>, transform_indices = @transform_5, window_bounds = array<i64: 1, 128>}, {pipeline_mode = #tpu.pipeline_mode<synchronous>, transform_indices = @transform_6, window_bounds = array<i64: 1, 128>}, {pipeline_mode = #tpu.pipeline_mode<synchronous>, transform_indices = @transform_7, window_bounds = array<i64: 128, 128>}, {pipeline_mode = #tpu.pipeline_mode<synchronous>, transform_indices = @transform_8, window_bounds = array<i64: 1, 128>}, {pipeline_mode = #tpu.pipeline_mode<synchronous>, transform_indices = @transform_9, window_bounds = array<i64: 128, 128>}, {pipeline_mode = #tpu.pipeline_mode<synchronous>, transform_indices = @transform_10, window_bounds = array<i64: 1, 128>}, {pipeline_mode = #tpu.pipeline_mode<synchronous>, transform_indices = @transform_11, window_bounds = array<i64: 1, 128>}, {pipeline_mode = #tpu.pipeline_mode<synchronous>, transform_indices = @transform_12, window_bounds = array<i64: 1, 128>}, {transform_indices = @transform_13, window_bounds = array<i64: 1, 16, 128>}]} {
    %c0 = arith.constant 0 : index
    %c0_0 = arith.constant 0 : index
    %c0_1 = arith.constant 0 : index
    %0 = vector.load %arg1[%c0, %c0_0, %c0_1] : memref<1x16x128xf32, #tpu.memory_space<vmem>>, vector<1x16x128xf32>
    %1 = vector.shape_cast %0 : vector<1x16x128xf32> to vector<16x128xf32>
    %2 = arith.truncf %1 : vector<16x128xf32> to vector<16x128xbf16>
    %c0_2 = arith.constant 0 : index
    %c0_3 = arith.constant 0 : index
    %3 = vector.load %arg2[%c0_2, %c0_3] : memref<128x384xbf16, #tpu.memory_space<vmem>>, vector<128x384xbf16>
    %cst = arith.constant dense<0.000000e+00> : vector<16x384xf32>
    %4 = tpu.matmul %2, %3, %cst {dimension_numbers = #tpu.dot_dimension_numbers<[1], [0], [0], [1], [0, 0, 1, 1], [], []>} : vector<16x128xbf16>, vector<128x384xbf16>, vector<16x384xf32> -> vector<16x384xf32>
    %c0_4 = arith.constant 0 : index
    %c0_5 = arith.constant 0 : index
    %5 = vector.load %arg3[%c0_4, %c0_5] : memref<1x384xf32, #tpu.memory_space<vmem>>, vector<1x384xf32>
    %6 = vector.broadcast %5 : vector<1x384xf32> to vector<16x384xf32>
    %7 = arith.addf %4, %6 : vector<16x384xf32>
    %8 = vector.extract_strided_slice %7 {offsets = [0, 0], sizes = [16, 32], strides = [1, 1]} : vector<16x384xf32> to vector<16x32xf32>
    %9 = vector.shape_cast %8 : vector<16x32xf32> to vector<1x16x32xf32>
    %10 = arith.truncf %9 : vector<1x16x32xf32> to vector<1x16x32xbf16>
    %11 = vector.extract_strided_slice %7 {offsets = [0, 32], sizes = [16, 32], strides = [1, 1]} : vector<16x384xf32> to vector<16x32xf32>
    %12 = vector.shape_cast %11 : vector<16x32xf32> to vector<1x16x32xf32>
    %13 = arith.truncf %12 : vector<1x16x32xf32> to vector<1x16x32xbf16>
    %14 = vector.extract_strided_slice %7 {offsets = [0, 64], sizes = [16, 32], strides = [1, 1]} : vector<16x384xf32> to vector<16x32xf32>
    %15 = vector.shape_cast %14 : vector<16x32xf32> to vector<1x16x32xf32>
    %16 = arith.truncf %15 : vector<1x16x32xf32> to vector<1x16x32xbf16>
    %17 = vector.extract_strided_slice %7 {offsets = [0, 96], sizes = [16, 32], strides = [1, 1]} : vector<16x384xf32> to vector<16x32xf32>
    %18 = vector.shape_cast %17 : vector<16x32xf32> to vector<1x16x32xf32>
    %19 = arith.truncf %18 : vector<1x16x32xf32> to vector<1x16x32xbf16>
    %20 = tpu.concatenate %10, %13, %16, %19 in 0 : vector<1x16x32xbf16>, vector<1x16x32xbf16>, vector<1x16x32xbf16>, vector<1x16x32xbf16> -> vector<4x16x32xbf16>
    %21 = vector.extract_strided_slice %7 {offsets = [0, 128], sizes = [16, 32], strides = [1, 1]} : vector<16x384xf32> to vector<16x32xf32>
    %22 = vector.shape_cast %21 : vector<16x32xf32> to vector<1x16x32xf32>
    %23 = arith.truncf %22 : vector<1x16x32xf32> to vector<1x16x32xbf16>
    %24 = vector.extract_strided_slice %7 {offsets = [0, 160], sizes = [16, 32], strides = [1, 1]} : vector<16x384xf32> to vector<16x32xf32>
    %25 = vector.shape_cast %24 : vector<16x32xf32> to vector<1x16x32xf32>
    %26 = arith.truncf %25 : vector<1x16x32xf32> to vector<1x16x32xbf16>
    %27 = vector.extract_strided_slice %7 {offsets = [0, 192], sizes = [16, 32], strides = [1, 1]} : vector<16x384xf32> to vector<16x32xf32>
    %28 = vector.shape_cast %27 : vector<16x32xf32> to vector<1x16x32xf32>
    %29 = arith.truncf %28 : vector<1x16x32xf32> to vector<1x16x32xbf16>
    %30 = vector.extract_strided_slice %7 {offsets = [0, 224], sizes = [16, 32], strides = [1, 1]} : vector<16x384xf32> to vector<16x32xf32>
    %31 = vector.shape_cast %30 : vector<16x32xf32> to vector<1x16x32xf32>
    %32 = arith.truncf %31 : vector<1x16x32xf32> to vector<1x16x32xbf16>
    %33 = tpu.concatenate %23, %26, %29, %32 in 0 : vector<1x16x32xbf16>, vector<1x16x32xbf16>, vector<1x16x32xbf16>, vector<1x16x32xbf16> -> vector<4x16x32xbf16>
    %34 = vector.extract_strided_slice %7 {offsets = [0, 256], sizes = [16, 32], strides = [1, 1]} : vector<16x384xf32> to vector<16x32xf32>
    %35 = vector.shape_cast %34 : vector<16x32xf32> to vector<1x16x32xf32>
    %36 = arith.truncf %35 : vector<1x16x32xf32> to vector<1x16x32xbf16>
    %37 = vector.extract_strided_slice %7 {offsets = [0, 288], sizes = [16, 32], strides = [1, 1]} : vector<16x384xf32> to vector<16x32xf32>
    %38 = vector.shape_cast %37 : vector<16x32xf32> to vector<1x16x32xf32>
    %39 = arith.truncf %38 : vector<1x16x32xf32> to vector<1x16x32xbf16>
    %40 = vector.extract_strided_slice %7 {offsets = [0, 320], sizes = [16, 32], strides = [1, 1]} : vector<16x384xf32> to vector<16x32xf32>
    %41 = vector.shape_cast %40 : vector<16x32xf32> to vector<1x16x32xf32>
    %42 = arith.truncf %41 : vector<1x16x32xf32> to vector<1x16x32xbf16>
    %43 = vector.extract_strided_slice %7 {offsets = [0, 352], sizes = [16, 32], strides = [1, 1]} : vector<16x384xf32> to vector<16x32xf32>
    %44 = vector.shape_cast %43 : vector<16x32xf32> to vector<1x16x32xf32>
    %45 = arith.truncf %44 : vector<1x16x32xf32> to vector<1x16x32xbf16>
    %46 = tpu.concatenate %36, %39, %42, %45 in 0 : vector<1x16x32xbf16>, vector<1x16x32xbf16>, vector<1x16x32xbf16>, vector<1x16x32xbf16> -> vector<4x16x32xbf16>
    "tpu.trace_start"() <{level = 10 : i32, message = "bqd,bkd->bqk"}> : () -> ()
    %cst_6 = arith.constant dense<0.000000e+00> : vector<4x16x16xf32>
    %47 = tpu.matmul %20, %33, %cst_6 {dimension_numbers = #tpu.dot_dimension_numbers<[2], [2], [1], [1], [0, 0, 0, 1, 1, 1], [0], [0]>} : vector<4x16x32xbf16>, vector<4x16x32xbf16>, vector<4x16x16xf32> -> vector<4x16x16xf32>
    "tpu.trace_stop"() : () -> ()
    %cst_7 = arith.constant dense<0xFF800000> : vector<4x16xf32>
    %48 = vector.multi_reduction <maximumf>, %47, %cst_7 [2] : vector<4x16x16xf32> to vector<4x16xf32>
    %49 = vector.shape_cast %48 : vector<4x16xf32> to vector<4x16x1xf32>
    %50 = vector.broadcast %49 : vector<4x16x1xf32> to vector<4x16x16xf32>
    %51 = arith.subf %47, %50 : vector<4x16x16xf32>
    %52 = math.exp %51 : vector<4x16x16xf32>
    %cst_8 = arith.constant dense<0.000000e+00> : vector<4x16xf32>
    %53 = vector.multi_reduction <add>, %52, %cst_8 [2] : vector<4x16x16xf32> to vector<4x16xf32>
    %54 = vector.shape_cast %53 : vector<4x16xf32> to vector<4x16x1xf32>
    %55 = tpu.reciprocal %54 {approx = true} : vector<4x16x1xf32> -> vector<4x16x1xf32>
    %56 = vector.broadcast %55 : vector<4x16x1xf32> to vector<4x16x16xf32>
    %57 = arith.mulf %52, %56 : vector<4x16x16xf32>
    %58 = arith.truncf %57 : vector<4x16x16xf32> to vector<4x16x16xbf16>
    "tpu.trace_start"() <{level = 10 : i32, message = "bqk,bkd->bqd"}> : () -> ()
    %cst_9 = arith.constant dense<0.000000e+00> : vector<4x16x32xf32>
    %59 = tpu.matmul %58, %46, %cst_9 {dimension_numbers = #tpu.dot_dimension_numbers<[2], [1], [1], [2], [0, 0, 0, 1, 1, 2], [0], [0]>} : vector<4x16x16xbf16>, vector<4x16x32xbf16>, vector<4x16x32xf32> -> vector<4x16x32xf32>
    "tpu.trace_stop"() : () -> ()
    %60 = vector.extract_strided_slice %59 {offsets = [0, 0, 0], sizes = [1, 16, 32], strides = [1, 1, 1]} : vector<4x16x32xf32> to vector<1x16x32xf32>
    %61 = vector.shape_cast %60 : vector<1x16x32xf32> to vector<16x32xf32>
    %62 = vector.extract_strided_slice %59 {offsets = [1, 0, 0], sizes = [1, 16, 32], strides = [1, 1, 1]} : vector<4x16x32xf32> to vector<1x16x32xf32>
    %63 = vector.shape_cast %62 : vector<1x16x32xf32> to vector<16x32xf32>
    %64 = vector.extract_strided_slice %59 {offsets = [2, 0, 0], sizes = [1, 16, 32], strides = [1, 1, 1]} : vector<4x16x32xf32> to vector<1x16x32xf32>
    %65 = vector.shape_cast %64 : vector<1x16x32xf32> to vector<16x32xf32>
    %66 = vector.extract_strided_slice %59 {offsets = [3, 0, 0], sizes = [1, 16, 32], strides = [1, 1, 1]} : vector<4x16x32xf32> to vector<1x16x32xf32>
    %67 = vector.shape_cast %66 : vector<1x16x32xf32> to vector<16x32xf32>
    %68 = tpu.concatenate %61, %63, %65, %67 in 1 : vector<16x32xf32>, vector<16x32xf32>, vector<16x32xf32>, vector<16x32xf32> -> vector<16x128xf32>
    %69 = arith.truncf %68 : vector<16x128xf32> to vector<16x128xbf16>
    %c0_10 = arith.constant 0 : index
    %c0_11 = arith.constant 0 : index
    %70 = vector.load %arg4[%c0_10, %c0_11] : memref<128x128xbf16, #tpu.memory_space<vmem>>, vector<128x128xbf16>
    %cst_12 = arith.constant dense<0.000000e+00> : vector<16x128xf32>
    %71 = tpu.matmul %69, %70, %cst_12 {dimension_numbers = #tpu.dot_dimension_numbers<[1], [0], [0], [1], [0, 0, 1, 1], [], []>} : vector<16x128xbf16>, vector<128x128xbf16>, vector<16x128xf32> -> vector<16x128xf32>
    %c0_13 = arith.constant 0 : index
    %c0_14 = arith.constant 0 : index
    %72 = vector.load %arg5[%c0_13, %c0_14] : memref<1x128xf32, #tpu.memory_space<vmem>>, vector<1x128xf32>
    %73 = vector.broadcast %72 : vector<1x128xf32> to vector<16x128xf32>
    %74 = arith.addf %71, %73 : vector<16x128xf32>
    %75 = arith.addf %1, %74 : vector<16x128xf32>
    %c0_15 = arith.constant 0 : index
    %c0_16 = arith.constant 0 : index
    %76 = vector.load %arg6[%c0_15, %c0_16] : memref<1x128xf32, #tpu.memory_space<vmem>>, vector<1x128xf32>
    %c0_17 = arith.constant 0 : index
    %c0_18 = arith.constant 0 : index
    %77 = vector.load %arg7[%c0_17, %c0_18] : memref<1x128xf32, #tpu.memory_space<vmem>>, vector<1x128xf32>
    %cst_19 = arith.constant dense<0.000000e+00> : vector<16xf32>
    %78 = vector.multi_reduction <add>, %75, %cst_19 [1] : vector<16x128xf32> to vector<16xf32>
    %79 = vector.shape_cast %78 : vector<16xf32> to vector<16x1xf32>
    %cst_20 = arith.constant 1.280000e+02 : f32
    %80 = vector.broadcast %cst_20 : f32 to vector<16x1xf32>
    %81 = arith.divf %79, %80 : vector<16x1xf32>
    %82 = vector.broadcast %81 : vector<16x1xf32> to vector<16x128xf32>
    %83 = arith.subf %75, %82 : vector<16x128xf32>
    %84 = arith.mulf %83, %83 : vector<16x128xf32>
    %cst_21 = arith.constant dense<0.000000e+00> : vector<16xf32>
    %85 = vector.multi_reduction <add>, %84, %cst_21 [1] : vector<16x128xf32> to vector<16xf32>
    %86 = vector.shape_cast %85 : vector<16xf32> to vector<16x1xf32>
    %cst_22 = arith.constant 1.280000e+02 : f32
    %87 = vector.broadcast %cst_22 : f32 to vector<16x1xf32>
    %88 = arith.divf %86, %87 : vector<16x1xf32>
    %cst_23 = arith.constant 9.99999974E-6 : f32
    %89 = vector.broadcast %cst_23 : f32 to vector<16x1xf32>
    %90 = arith.addf %88, %89 : vector<16x1xf32>
    %91 = math.rsqrt %90 : vector<16x1xf32>
    %92 = vector.broadcast %91 : vector<16x1xf32> to vector<16x128xf32>
    %93 = arith.mulf %83, %92 : vector<16x128xf32>
    %94 = vector.broadcast %76 : vector<1x128xf32> to vector<16x128xf32>
    %95 = arith.mulf %93, %94 : vector<16x128xf32>
    %96 = vector.broadcast %77 : vector<1x128xf32> to vector<16x128xf32>
    %97 = arith.addf %95, %96 : vector<16x128xf32>
    %98 = arith.truncf %97 : vector<16x128xf32> to vector<16x128xbf16>
    %c0_24 = arith.constant 0 : index
    %c0_25 = arith.constant 0 : index
    %99 = vector.load %arg8[%c0_24, %c0_25] : memref<128x128xbf16, #tpu.memory_space<vmem>>, vector<128x128xbf16>
    %cst_26 = arith.constant dense<0.000000e+00> : vector<16x128xf32>
    %100 = tpu.matmul %98, %99, %cst_26 {dimension_numbers = #tpu.dot_dimension_numbers<[1], [0], [0], [1], [0, 0, 1, 1], [], []>} : vector<16x128xbf16>, vector<128x128xbf16>, vector<16x128xf32> -> vector<16x128xf32>
    %c0_27 = arith.constant 0 : index
    %c0_28 = arith.constant 0 : index
    %101 = vector.load %arg9[%c0_27, %c0_28] : memref<1x128xf32, #tpu.memory_space<vmem>>, vector<1x128xf32>
    %102 = vector.broadcast %101 : vector<1x128xf32> to vector<16x128xf32>
    %103 = arith.addf %100, %102 : vector<16x128xf32>
    %cst_29 = arith.constant 0.000000e+00 : f32
    %104 = vector.broadcast %cst_29 : f32 to vector<16x128xf32>
    %105 = arith.maximumf %103, %104 : vector<16x128xf32>
    %106 = arith.truncf %105 : vector<16x128xf32> to vector<16x128xbf16>
    %c0_30 = arith.constant 0 : index
    %c0_31 = arith.constant 0 : index
    %107 = vector.load %arg10[%c0_30, %c0_31] : memref<128x128xbf16, #tpu.memory_space<vmem>>, vector<128x128xbf16>
    %cst_32 = arith.constant dense<0.000000e+00> : vector<16x128xf32>
    %108 = tpu.matmul %106, %107, %cst_32 {dimension_numbers = #tpu.dot_dimension_numbers<[1], [0], [0], [1], [0, 0, 1, 1], [], []>} : vector<16x128xbf16>, vector<128x128xbf16>, vector<16x128xf32> -> vector<16x128xf32>
    %c0_33 = arith.constant 0 : index
    %c0_34 = arith.constant 0 : index
    %109 = vector.load %arg11[%c0_33, %c0_34] : memref<1x128xf32, #tpu.memory_space<vmem>>, vector<1x128xf32>
    %110 = vector.broadcast %109 : vector<1x128xf32> to vector<16x128xf32>
    %111 = arith.addf %108, %110 : vector<16x128xf32>
    %112 = arith.addf %97, %111 : vector<16x128xf32>
    %c0_35 = arith.constant 0 : index
    %c0_36 = arith.constant 0 : index
    %113 = vector.load %arg12[%c0_35, %c0_36] : memref<1x128xf32, #tpu.memory_space<vmem>>, vector<1x128xf32>
    %c0_37 = arith.constant 0 : index
    %c0_38 = arith.constant 0 : index
    %114 = vector.load %arg13[%c0_37, %c0_38] : memref<1x128xf32, #tpu.memory_space<vmem>>, vector<1x128xf32>
    %cst_39 = arith.constant dense<0.000000e+00> : vector<16xf32>
    %115 = vector.multi_reduction <add>, %112, %cst_39 [1] : vector<16x128xf32> to vector<16xf32>
    %116 = vector.shape_cast %115 : vector<16xf32> to vector<16x1xf32>
    %cst_40 = arith.constant 1.280000e+02 : f32
    %117 = vector.broadcast %cst_40 : f32 to vector<16x1xf32>
    %118 = arith.divf %116, %117 : vector<16x1xf32>
    %119 = vector.broadcast %118 : vector<16x1xf32> to vector<16x128xf32>
    %120 = arith.subf %112, %119 : vector<16x128xf32>
    %121 = arith.mulf %120, %120 : vector<16x128xf32>
    %cst_41 = arith.constant dense<0.000000e+00> : vector<16xf32>
    %122 = vector.multi_reduction <add>, %121, %cst_41 [1] : vector<16x128xf32> to vector<16xf32>
    %123 = vector.shape_cast %122 : vector<16xf32> to vector<16x1xf32>
    %cst_42 = arith.constant 1.280000e+02 : f32
    %124 = vector.broadcast %cst_42 : f32 to vector<16x1xf32>
    %125 = arith.divf %123, %124 : vector<16x1xf32>
    %cst_43 = arith.constant 9.99999974E-6 : f32
    %126 = vector.broadcast %cst_43 : f32 to vector<16x1xf32>
    %127 = arith.addf %125, %126 : vector<16x1xf32>
    %128 = math.rsqrt %127 : vector<16x1xf32>
    %129 = vector.broadcast %128 : vector<16x1xf32> to vector<16x128xf32>
    %130 = arith.mulf %120, %129 : vector<16x128xf32>
    %131 = vector.broadcast %113 : vector<1x128xf32> to vector<16x128xf32>
    %132 = arith.mulf %130, %131 : vector<16x128xf32>
    %133 = vector.broadcast %114 : vector<1x128xf32> to vector<16x128xf32>
    %134 = arith.addf %132, %133 : vector<16x128xf32>
    %135 = vector.shape_cast %134 : vector<16x128xf32> to vector<1x16x128xf32>
    %c0_44 = arith.constant 0 : index
    %c0_45 = arith.constant 0 : index
    %c0_46 = arith.constant 0 : index
    %136 = vector.load %arg14[%c0_44, %c0_45, %c0_46] : memref<1x16x128xf32, #tpu.memory_space<vmem>>, vector<1x16x128xf32>
    tpu.vector_store %arg14[%c0_44, %c0_45, %c0_46], %135 {strides = array<i32>} : memref<1x16x128xf32, #tpu.memory_space<vmem>>, vector<1x16x128xf32>,
    return
  }
  func.func @transform_0(%arg0: i32) -> (i32, i32, i32) {
    %c0_i32 = arith.constant 0 : i32
    %c0_i32_0 = arith.constant 0 : i32
    %c0_i32_1 = arith.constant 0 : i32
    return %arg0, %c0_i32, %c0_i32_0 : i32, i32, i32
  }
  func.func @transform_1(%arg0: i32) -> (i32, i32) {
    %c0_i32 = arith.constant 0 : i32
    %c0_i32_0 = arith.constant 0 : i32
    %c0_i32_1 = arith.constant 0 : i32
    return %c0_i32, %c0_i32_0 : i32, i32
  }
  func.func @transform_2(%arg0: i32) -> (i32, i32) {
    %c0_i32 = arith.constant 0 : i32
    %c0_i32_0 = arith.constant 0 : i32
    %c0_i32_1 = arith.constant 0 : i32
    return %c0_i32, %c0_i32_0 : i32, i32
  }
  func.func @transform_3(%arg0: i32) -> (i32, i32) {
    %c0_i32 = arith.constant 0 : i32
    %c0_i32_0 = arith.constant 0 : i32
    %c0_i32_1 = arith.constant 0 : i32
    return %c0_i32, %c0_i32_0 : i32, i32
  }
  func.func @transform_4(%arg0: i32) -> (i32, i32) {
    %c0_i32 = arith.constant 0 : i32
    %c0_i32_0 = arith.constant 0 : i32
    %c0_i32_1 = arith.constant 0 : i32
    return %c0_i32, %c0_i32_0 : i32, i32
  }
  func.func @transform_5(%arg0: i32) -> (i32, i32) {
    %c0_i32 = arith.constant 0 : i32
    %c0_i32_0 = arith.constant 0 : i32
    %c0_i32_1 = arith.constant 0 : i32
    return %c0_i32, %c0_i32_0 : i32, i32
  }
  func.func @transform_6(%arg0: i32) -> (i32, i32) {
    %c0_i32 = arith.constant 0 : i32
    %c0_i32_0 = arith.constant 0 : i32
    %c0_i32_1 = arith.constant 0 : i32
    return %c0_i32, %c0_i32_0 : i32, i32
  }
  func.func @transform_7(%arg0: i32) -> (i32, i32) {
    %c0_i32 = arith.constant 0 : i32
    %c0_i32_0 = arith.constant 0 : i32
    %c0_i32_1 = arith.constant 0 : i32
    return %c0_i32, %c0_i32_0 : i32, i32
  }
  func.func @transform_8(%arg0: i32) -> (i32, i32) {
    %c0_i32 = arith.constant 0 : i32
    %c0_i32_0 = arith.constant 0 : i32
    %c0_i32_1 = arith.constant 0 : i32
    return %c0_i32, %c0_i32_0 : i32, i32
  }
  func.func @transform_9(%arg0: i32) -> (i32, i32) {
    %c0_i32 = arith.constant 0 : i32
    %c0_i32_0 = arith.constant 0 : i32
    %c0_i32_1 = arith.constant 0 : i32
    return %c0_i32, %c0_i32_0 : i32, i32
  }
  func.func @transform_10(%arg0: i32) -> (i32, i32) {
    %c0_i32 = arith.constant 0 : i32
    %c0_i32_0 = arith.constant 0 : i32
    %c0_i32_1 = arith.constant 0 : i32
    return %c0_i32, %c0_i32_0 : i32, i32
  }
  func.func @transform_11(%arg0: i32) -> (i32, i32) {
    %c0_i32 = arith.constant 0 : i32
    %c0_i32_0 = arith.constant 0 : i32
    %c0_i32_1 = arith.constant 0 : i32
    return %c0_i32, %c0_i32_0 : i32, i32
  }
  func.func @transform_12(%arg0: i32) -> (i32, i32) {
    %c0_i32 = arith.constant 0 : i32
    %c0_i32_0 = arith.constant 0 : i32
    %c0_i32_1 = arith.constant 0 : i32
    return %c0_i32, %c0_i32_0 : i32, i32
  }
  func.func @transform_13(%arg0: i32) -> (i32, i32, i32) {
    %c0_i32 = arith.constant 0 : i32
    %c0_i32_0 = arith.constant 0 : i32
    %c0_i32_1 = arith.constant 0 : i32
    return %arg0, %c0_i32, %c0_i32_0 : i32, i32, i32
  }
}

</mosaic_0001>

<llo_original>
// kernel: tpu_custom_call.1
$region0: #{tpu_custom_call.1}
  #allocation0 [shape = 'u32[]', space=smem, size = 0x4, offset = 0x4, fixed_abs, tag = 'smem constant byte address 0x4 - core index']
  #allocation1 [shape = 'u32[144,128]{1,0:T(1,128)}', space=vmem, size = 0x12000, scoped, tag = 'internal scratch']
  %s0 = inlined_call_operand.hbm [shape: f32[4,16,128], index: 0, kind: input, shape index: {}]
  %s1 = inlined_call_operand.hbm [shape: bf16[128,384], index: 1, kind: input, shape index: {}]
  %s2 = inlined_call_operand.vmem [shape: f32[1,384], index: 2, kind: input, shape index: {}]
  %s3 = inlined_call_operand.hbm [shape: bf16[128,128], index: 3, kind: input, shape index: {}]
  %s4 = inlined_call_operand.vmem [shape: f32[1,128], index: 4, kind: input, shape index: {}]
  %s5 = inlined_call_operand.vmem [shape: f32[1,128], index: 5, kind: input, shape index: {}]
  %s6 = inlined_call_operand.vmem [shape: f32[1,128], index: 6, kind: input, shape index: {}]
  %s7 = inlined_call_operand.hbm [shape: bf16[128,128], index: 7, kind: input, shape index: {}]
  %s8 = inlined_call_operand.vmem [shape: f32[1,128], index: 8, kind: input, shape index: {}]
  %s9 = inlined_call_operand.hbm [shape: bf16[128,128], index: 9, kind: input, shape index: {}]
  %s10 = inlined_call_operand.vmem [shape: f32[1,128], index: 10, kind: input, shape index: {}]
  %s11 = inlined_call_operand.vmem [shape: f32[1,128], index: 11, kind: input, shape index: {}]
  %s12 = inlined_call_operand.vmem [shape: f32[1,128], index: 12, kind: input, shape index: {}]
  %s13 = inlined_call_operand.hbm [shape: f32[4,16,128], index: 13, kind: output, shape index: {}]
  %s14 = sld [smem:[#allocation0]]
  $region105: #{tpu_custom_call.1} parent=0
    _
  %s16 = ssub.s32 1, %s14
  %s17 = scalar_select 0, %s16, %s14
  $region1: #{tpu_custom_call.1} parent=0
    #allocation2 [shape = 'u8[16384]{0}', space=vmem, size = 0x4000, scoped, tag = 'input window, operand 0']
    #allocation3 [shape = 's32[2]{0}', space=sflag, size = 0x8, scoped, tag = 'scoped memory for tpu_custom_call.1']
    #allocation4 [shape = 's32[2]{0}', space=sflag, size = 0x8, scoped, tag = 'scoped memory for tpu_custom_call.1']
    #allocation5 [shape = 'u8[98304]{0}', space=vmem, size = 0x18000, scoped, tag = 'input window, operand 1, single buffered']
    #allocation6 [shape = 's32[1]{0}', space=sflag, size = 0x4, scoped, tag = 'scoped memory for tpu_custom_call.1']
    #allocation7 [shape = 'u8[32768]{0}', space=vmem, size = 0x8000, scoped, tag = 'input window, operand 3, single buffered']
    #allocation8 [shape = 'u8[32768]{0}', space=vmem, size = 0x8000, scoped, tag = 'input window, operand 7, single buffered']
    #allocation9 [shape = 's32[1]{0}', space=sflag, size = 0x4, scoped, tag = 'scoped memory for tpu_custom_call.1']
    #allocation10 [shape = 'u8[32768]{0}', space=vmem, size = 0x8000, scoped, tag = 'input window, operand 9, single buffered']
    #allocation11 [shape = 'u8[16384]{0}', space=vmem, size = 0x4000, scoped, tag = 'output window, operand 0']
    %18 = vsyncpa [#allocation3], 0
    %s19 = scalar_lea.sflag [#allocation3], 1
    %20 = vsyncpa %s19, 0
    %21 = vsyncpa [#allocation6], 0
    %22 = vsyncpa [#allocation9], 0
    %23 = vsyncpa [#allocation4], 0
    %s24 = scalar_lea.sflag [#allocation4], 1
    %25 = vsyncpa %s24, 0
    loop: start=0, step=1, limit=6
    $region2: #{tpu_custom_call.1} parent=1 // loop_pre_header
      _
    $region3: #{tpu_custom_call.1} parent=1 // loop_header
      %s27 = sphi 0, %s31
      %p28 = scmp.ge.s32.totalorder %s27, 6
      %s37 = sphi 0, %s39
      %s40 = sphi 0, %s37
      %s41 = sphi 0, %s40
      %s57 = sphi 0, %s41
      %s61 = sphi 0, %s61
      %s63 = sphi 0, %s61
      %s64 = sphi 0, %s63
      %s78 = sphi 0, %s64
      %s82 = sphi 0, %s82
      %s84 = sphi 0, %s82
      %s85 = sphi 0, %s84
      %s99 = sphi 0, %s85
      %s103 = sphi 0, %s103
      %s105 = sphi 0, %s103
      %s106 = sphi 0, %s105
      %s120 = sphi 0, %s106
      %s124 = sphi 0, %s124
      %s126 = sphi 0, %s124
      %s127 = sphi 0, %s126
      %s141 = sphi 0, %s127
      %s145 = sphi 0, %s145
      %s147 = sphi 0, %s145
      %s148 = sphi 0, %s147
      %s162 = sphi 0, %s148
      %s166 = sphi 0, %s166
      %s168 = sphi 0, %s166
      %s169 = sphi 0, %s168
      %s183 = sphi 0, %s169
      %s187 = sphi 0, %s187
      %s189 = sphi 0, %s187
      %s190 = sphi 0, %s189
      %s204 = sphi 0, %s190
      %s208 = sphi 0, %s208
      %s210 = sphi 0, %s208
      %s211 = sphi 0, %s210
      %s225 = sphi 0, %s211
      %s229 = sphi 0, %s229
      %s231 = sphi 0, %s229
      %s232 = sphi 0, %s231
      %s246 = sphi 0, %s232
      %s250 = sphi 0, %s250
      %s252 = sphi 0, %s250
      %s253 = sphi 0, %s252
      %s267 = sphi 0, %s253
      %s271 = sphi 0, %s271
      %s273 = sphi 0, %s271
      %s274 = sphi 0, %s273
      %s288 = sphi 0, %s274
      %s292 = sphi 0, %s292
      %s294 = sphi 0, %s292
      %s295 = sphi 0, %s294
      %s309 = sphi 0, %s295
      %s315 = sphi 0, %s317
      %s318 = sphi 0, %s315
      %s319 = sphi 0, %s318
      %s335 = sphi 0, %s319
    $region4: #{tpu_custom_call.1} parent=1 // loop_header_branch
      %30 = sbr.rel (%p28) target = $region8
    $region5: #{tpu_custom_call.1} parent=1 // loop_body
      %s32 = ssub.s32 %s27, 1
      %s33 = ssub.s32 %s27, 2
      %s34 = sadd.s32 %s27, 1
      %s35 = ssub.s32 %s27, %s34
      %p36 = scmp.eq.s32.totalorder %s35, 0
      %s38 = sadd.s32 %s37, 1
      %s39 = scalar_select %p36, %s37, %s38
      %p42 = pneg %p36
      %p43 = scmp.eq.s32.totalorder %s27, 3
      %p44 = por %p42, %p43
      %p45 = scmp.ne.s32.totalorder %s37, %s40
      %p46 = scmp.eq.s32.totalorder %s27, 0
      %p47 = por %p45, %p46
      %p48 = scmp.ne.s32.totalorder %s37, %s40
      %p49 = scmp.eq.s32.totalorder %s32, 3
      %p50 = por %p48, %p49
      %p51 = scmp.ne.s32.totalorder %s40, %s41
      %p52 = scmp.eq.s32.totalorder %s32, 0
      %p53 = por %p51, %p52
      %p54 = scmp.ne.s32.totalorder %s40, %s41
      %p55 = scmp.eq.s32.totalorder %s33, 3
      %p56 = por %p54, %p55
      %p58 = scmp.ne.s32.totalorder %s41, %s57
      %p59 = scmp.eq.s32.totalorder %s33, 0
      %p60 = por %p58, %p59
      %s62 = sadd.s32 %s61, 1
      %p65 = scmp.eq.s32.totalorder %s27, 3
      %p66 = scmp.ne.s32.totalorder %s61, %s63
      %p67 = scmp.eq.s32.totalorder %s27, 0
      %p68 = por %p66, %p67
      %p69 = scmp.ne.s32.totalorder %s61, %s63
      %p70 = scmp.eq.s32.totalorder %s32, 3
      %p71 = por %p69, %p70
      %p72 = scmp.ne.s32.totalorder %s63, %s64
      %p73 = scmp.eq.s32.totalorder %s32, 0
      %p74 = por %p72, %p73
      %p75 = scmp.ne.s32.totalorder %s63, %s64
      %p76 = scmp.eq.s32.totalorder %s33, 3
      %p77 = por %p75, %p76
      %p79 = scmp.ne.s32.totalorder %s64, %s78
      %p80 = scmp.eq.s32.totalorder %s33, 0
      %p81 = por %p79, %p80
      %s83 = sadd.s32 %s82, 1
      %p86 = scmp.eq.s32.totalorder %s27, 3
      %p87 = scmp.ne.s32.totalorder %s82, %s84
      %p88 = scmp.eq.s32.totalorder %s27, 0
      %p89 = por %p87, %p88
      %p90 = scmp.ne.s32.totalorder %s82, %s84
      %p91 = scmp.eq.s32.totalorder %s32, 3
      %p92 = por %p90, %p91
      %p93 = scmp.ne.s32.totalorder %s84, %s85
      %p94 = scmp.eq.s32.totalorder %s32, 0
      %p95 = por %p93, %p94
      %p96 = scmp.ne.s32.totalorder %s84, %s85
      %p97 = scmp.eq.s32.totalorder %s33, 3
      %p98 = por %p96, %p97
      %p100 = scmp.ne.s32.totalorder %s85, %s99
      %p101 = scmp.eq.s32.totalorder %s33, 0
      %p102 = por %p100, %p101
      %s104 = sadd.s32 %s103, 1
      %p107 = scmp.eq.s32.totalorder %s27, 3
      %p108 = scmp.ne.s32.totalorder %s103, %s105
      %p109 = scmp.eq.s32.totalorder %s27, 0
      %p110 = por %p108, %p109
      %p111 = scmp.ne.s32.totalorder %s103, %s105
      %p112 = scmp.eq.s32.totalorder %s32, 3
      %p113 = por %p111, %p112
      %p114 = scmp.ne.s32.totalorder %s105, %s106
      %p115 = scmp.eq.s32.totalorder %s32, 0
      %p116 = por %p114, %p115
      %p117 = scmp.ne.s32.totalorder %s105, %s106
      %p118 = scmp.eq.s32.totalorder %s33, 3
      %p119 = por %p117, %p118
      %p121 = scmp.ne.s32.totalorder %s106, %s120
      %p122 = scmp.eq.s32.totalorder %s33, 0
      %p123 = por %p121, %p122
      %s125 = sadd.s32 %s124, 1
      %p128 = scmp.eq.s32.totalorder %s27, 3
      %p129 = scmp.ne.s32.totalorder %s124, %s126
      %p130 = scmp.eq.s32.totalorder %s27, 0
      %p131 = por %p129, %p130
      %p132 = scmp.ne.s32.totalorder %s124, %s126
      %p133 = scmp.eq.s32.totalorder %s32, 3
      %p134 = por %p132, %p133
      %p135 = scmp.ne.s32.totalorder %s126, %s127
      %p136 = scmp.eq.s32.totalorder %s32, 0
      %p137 = por %p135, %p136
      %p138 = scmp.ne.s32.totalorder %s126, %s127
      %p139 = scmp.eq.s32.totalorder %s33, 3
      %p140 = por %p138, %p139
      %p142 = scmp.ne.s32.totalorder %s127, %s141
      %p143 = scmp.eq.s32.totalorder %s33, 0
      %p144 = por %p142, %p143
      %s146 = sadd.s32 %s145, 1
      %p149 = scmp.eq.s32.totalorder %s27, 3
      %p150 = scmp.ne.s32.totalorder %s145, %s147
      %p151 = scmp.eq.s32.totalorder %s27, 0
      %p152 = por %p150, %p151
      %p153 = scmp.ne.s32.totalorder %s145, %s147
      %p154 = scmp.eq.s32.totalorder %s32, 3
      %p155 = por %p153, %p154
      %p156 = scmp.ne.s32.totalorder %s147, %s148
      %p157 = scmp.eq.s32.totalorder %s32, 0
      %p158 = por %p156, %p157
      %p159 = scmp.ne.s32.totalorder %s147, %s148
      %p160 = scmp.eq.s32.totalorder %s33, 3
      %p161 = por %p159, %p160
      %p163 = scmp.ne.s32.totalorder %s148, %s162
      %p164 = scmp.eq.s32.totalorder %s33, 0
      %p165 = por %p163, %p164
      %s167 = sadd.s32 %s166, 1
      %p170 = scmp.eq.s32.totalorder %s27, 3
      %p171 = scmp.ne.s32.totalorder %s166, %s168
      %p172 = scmp.eq.s32.totalorder %s27, 0
      %p173 = por %p171, %p172
      %p174 = scmp.ne.s32.totalorder %s166, %s168
      %p175 = scmp.eq.s32.totalorder %s32, 3
      %p176 = por %p174, %p175
      %p177 = scmp.ne.s32.totalorder %s168, %s169
      %p178 = scmp.eq.s32.totalorder %s32, 0
      %p179 = por %p177, %p178
      %p180 = scmp.ne.s32.totalorder %s168, %s169
      %p181 = scmp.eq.s32.totalorder %s33, 3
      %p182 = por %p180, %p181
      %p184 = scmp.ne.s32.totalorder %s169, %s183
      %p185 = scmp.eq.s32.totalorder %s33, 0
      %p186 = por %p184, %p185
      %s188 = sadd.s32 %s187, 1
      %p191 = scmp.eq.s32.totalorder %s27, 3
      %p192 = scmp.ne.s32.totalorder %s187, %s189
      %p193 = scmp.eq.s32.totalorder %s27, 0
      %p194 = por %p192, %p193
      %p195 = scmp.ne.s32.totalorder %s187, %s189
      %p196 = scmp.eq.s32.totalorder %s32, 3
      %p197 = por %p195, %p196
      %p198 = scmp.ne.s32.totalorder %s189, %s190
      %p199 = scmp.eq.s32.totalorder %s32, 0
      %p200 = por %p198, %p199
      %p201 = scmp.ne.s32.totalorder %s189, %s190
      %p202 = scmp.eq.s32.totalorder %s33, 3
      %p203 = por %p201, %p202
      %p205 = scmp.ne.s32.totalorder %s190, %s204
      %p206 = scmp.eq.s32.totalorder %s33, 0
      %p207 = por %p205, %p206
      %s209 = sadd.s32 %s208, 1
      %p212 = scmp.eq.s32.totalorder %s27, 3
      %p213 = scmp.ne.s32.totalorder %s208, %s210
      %p214 = scmp.eq.s32.totalorder %s27, 0
      %p215 = por %p213, %p214
      %p216 = scmp.ne.s32.totalorder %s208, %s210
      %p217 = scmp.eq.s32.totalorder %s32, 3
      %p218 = por %p216, %p217
      %p219 = scmp.ne.s32.totalorder %s210, %s211
      %p220 = scmp.eq.s32.totalorder %s32, 0
      %p221 = por %p219, %p220
      %p222 = scmp.ne.s32.totalorder %s210, %s211
      %p223 = scmp.eq.s32.totalorder %s33, 3
      %p224 = por %p222, %p223
      %p226 = scmp.ne.s32.totalorder %s211, %s225
      %p227 = scmp.eq.s32.totalorder %s33, 0
      %p228 = por %p226, %p227
      %s230 = sadd.s32 %s229, 1
      %p233 = scmp.eq.s32.totalorder %s27, 3
      %p234 = scmp.ne.s32.totalorder %s229, %s231
      %p235 = scmp.eq.s32.totalorder %s27, 0
      %p236 = por %p234, %p235
      %p237 = scmp.ne.s32.totalorder %s229, %s231
      %p238 = scmp.eq.s32.totalorder %s32, 3
      %p239 = por %p237, %p238
      %p240 = scmp.ne.s32.totalorder %s231, %s232
      %p241 = scmp.eq.s32.totalorder %s32, 0
      %p242 = por %p240, %p241
      %p243 = scmp.ne.s32.totalorder %s231, %s232
      %p244 = scmp.eq.s32.totalorder %s33, 3
      %p245 = por %p243, %p244
      %p247 = scmp.ne.s32.totalorder %s232, %s246
      %p248 = scmp.eq.s32.totalorder %s33, 0
      %p249 = por %p247, %p248
      %s251 = sadd.s32 %s250, 1
      %p254 = scmp.eq.s32.totalorder %s27, 3
      %p255 = scmp.ne.s32.totalorder %s250, %s252
      %p256 = scmp.eq.s32.totalorder %s27, 0
      %p257 = por %p255, %p256
      %p258 = scmp.ne.s32.totalorder %s250, %s252
      %p259 = scmp.eq.s32.totalorder %s32, 3
      %p260 = por %p258, %p259
      %p261 = scmp.ne.s32.totalorder %s252, %s253
      %p262 = scmp.eq.s32.totalorder %s32, 0
      %p263 = por %p261, %p262
      %p264 = scmp.ne.s32.totalorder %s252, %s253
      %p265 = scmp.eq.s32.totalorder %s33, 3
      %p266 = por %p264, %p265
      %p268 = scmp.ne.s32.totalorder %s253, %s267
      %p269 = scmp.eq.s32.totalorder %s33, 0
      %p270 = por %p268, %p269
      %s272 = sadd.s32 %s271, 1
      %p275 = scmp.eq.s32.totalorder %s27, 3
      %p276 = scmp.ne.s32.totalorder %s271, %s273
      %p277 = scmp.eq.s32.totalorder %s27, 0
      %p278 = por %p276, %p277
      %p279 = scmp.ne.s32.totalorder %s271, %s273
      %p280 = scmp.eq.s32.totalorder %s32, 3
      %p281 = por %p279, %p280
      %p282 = scmp.ne.s32.totalorder %s273, %s274
      %p283 = scmp.eq.s32.totalorder %s32, 0
      %p284 = por %p282, %p283
      %p285 = scmp.ne.s32.totalorder %s273, %s274
      %p286 = scmp.eq.s32.totalorder %s33, 3
      %p287 = por %p285, %p286
      %p289 = scmp.ne.s32.totalorder %s274, %s288
      %p290 = scmp.eq.s32.totalorder %s33, 0
      %p291 = por %p289, %p290
      %s293 = sadd.s32 %s292, 1
      %p296 = scmp.eq.s32.totalorder %s27, 3
      %p297 = scmp.ne.s32.totalorder %s292, %s294
      %p298 = scmp.eq.s32.totalorder %s27, 0
      %p299 = por %p297, %p298
      %p300 = scmp.ne.s32.totalorder %s292, %s294
      %p301 = scmp.eq.s32.totalorder %s32, 3
      %p302 = por %p300, %p301
      %p303 = scmp.ne.s32.totalorder %s294, %s295
      %p304 = scmp.eq.s32.totalorder %s32, 0
      %p305 = por %p303, %p304
      %p306 = scmp.ne.s32.totalorder %s294, %s295
      %p307 = scmp.eq.s32.totalorder %s33, 3
      %p308 = por %p306, %p307
      %p310 = scmp.ne.s32.totalorder %s295, %s309
      %p311 = scmp.eq.s32.totalorder %s33, 0
      %p312 = por %p310, %p311
      %s313 = ssub.s32 %s27, %s34
      %p314 = scmp.eq.s32.totalorder %s313, 0
      %s316 = sadd.s32 %s315, 1
      %s317 = scalar_select %p314, %s315, %s316
      %p320 = pneg %p314
      %p321 = scmp.eq.s32.totalorder %s27, 3
      %p322 = por %p320, %p321
      %p323 = scmp.ne.s32.totalorder %s315, %s318
      %p324 = scmp.eq.s32.totalorder %s27, 0
      %p325 = por %p323, %p324
      %p326 = scmp.ne.s32.totalorder %s315, %s318
      %p327 = scmp.eq.s32.totalorder %s32, 3
      %p328 = por %p326, %p327
      %p329 = scmp.ne.s32.totalorder %s318, %s319
      %p330 = scmp.eq.s32.totalorder %s32, 0
      %p331 = por %p329, %p330
      %p332 = scmp.ne.s32.totalorder %s318, %s319
      %p333 = scmp.eq.s32.totalorder %s33, 3
      %p334 = por %p332, %p333
      %p336 = scmp.ne.s32.totalorder %s319, %s335
      %p337 = scmp.eq.s32.totalorder %s33, 0
      %p338 = por %p336, %p337
      %p339 = scmp.le.s32.totalorder 1, %s27
      %p340 = scmp.lt.s32.totalorder %s27, 5
      %p341 = pnand %p339, %p340
      %p342 = pneg %p341
      // Predicated region
      $region9: #{tpu_custom_call.1} parent=5 // pred_check
        _
      $region10: #{tpu_custom_call.1} parent=5 // pred_check_branch
        %344 = sbr.rel (%p341) target = $region12
      $region11: #{tpu_custom_call.1} parent=5 // pred_region
        %s345 = ssub.s32 %s27, 1
        // Predicated region
        $region13: #{tpu_custom_call.1} parent=11 // pred_check
          %p346 = pneg %p74
        $region14: #{tpu_custom_call.1} parent=11 // pred_check_branch
          %348 = sbr.rel (%p346) target = $region16
        $region15: #{tpu_custom_call.1} parent=11 // pred_region
          %s350 = ssub.s32 3072, 3072
          %351 = vsyncadd [#allocation6], %s350
          %s352 = sshll.u32 [#allocation5], 4
          %s353 = int_to_ptr.vmem [resolvable:$true] %s352
          %358 = dma.hbm_to_vmem [thread:$0]  %s1, 3072, %s353, [#allocation6], 192, 192, 12
        $region16: #{tpu_custom_call.1} parent=11 // pred_fallthru
          _
        // Predicated region
        $region17: #{tpu_custom_call.1} parent=11 // pred_check
          %p359 = pneg %p95
        $region18: #{tpu_custom_call.1} parent=11 // pred_check_branch
          %361 = sbr.rel (%p359) target = $region20
        $region19: #{tpu_custom_call.1} parent=11 // pred_region
          _
        $region20: #{tpu_custom_call.1} parent=11 // pred_fallthru
          _
        // Predicated region
        $region21: #{tpu_custom_call.1} parent=11 // pred_check
          %p362 = pneg %p116
        $region22: #{tpu_custom_call.1} parent=11 // pred_check_branch
          %364 = sbr.rel (%p362) target = $region24
        $region23: #{tpu_custom_call.1} parent=11 // pred_region
          %s366 = ssub.s32 1024, 1024
          %367 = vsyncadd [#allocation6], %s366
          %s368 = sshll.u32 [#allocation7], 4
          %s369 = int_to_ptr.vmem [resolvable:$true] %s368
          %374 = dma.hbm_to_vmem [thread:$0]  %s3, 1024, %s369, [#allocation6], 64, 64, 4
        $region24: #{tpu_custom_call.1} parent=11 // pred_fallthru
          _
        // Predicated region
        $region25: #{tpu_custom_call.1} parent=11 // pred_check
          %p375 = pneg %p137
        $region26: #{tpu_custom_call.1} parent=11 // pred_check_branch
          %377 = sbr.rel (%p375) target = $region28
        $region27: #{tpu_custom_call.1} parent=11 // pred_region
          _
        $region28: #{tpu_custom_call.1} parent=11 // pred_fallthru
          _
        // Predicated region
        $region29: #{tpu_custom_call.1} parent=11 // pred_check
          %p378 = pneg %p158
        $region30: #{tpu_custom_call.1} parent=11 // pred_check_branch
          %380 = sbr.rel (%p378) target = $region32
        $region31: #{tpu_custom_call.1} parent=11 // pred_region
          _
        $region32: #{tpu_custom_call.1} parent=11 // pred_fallthru
          _
        // Predicated region
        $region33: #{tpu_custom_call.1} parent=11 // pred_check
          %p381 = pneg %p179
        $region34: #{tpu_custom_call.1} parent=11 // pred_check_branch
          %383 = sbr.rel (%p381) target = $region36
        $region35: #{tpu_custom_call.1} parent=11 // pred_region
          _
        $region36: #{tpu_custom_call.1} parent=11 // pred_fallthru
          _
        // Predicated region
        $region37: #{tpu_custom_call.1} parent=11 // pred_check
          %p384 = pneg %p200
        $region38: #{tpu_custom_call.1} parent=11 // pred_check_branch
          %386 = sbr.rel (%p384) target = $region40
        $region39: #{tpu_custom_call.1} parent=11 // pred_region
          %s388 = ssub.s32 1024, 1024
          %389 = vsyncadd [#allocation9], %s388
          %s390 = sshll.u32 [#allocation8], 4
          %s391 = int_to_ptr.vmem [resolvable:$true] %s390
          %396 = dma.hbm_to_vmem [thread:$0]  %s7, 1024, %s391, [#allocation9], 64, 64, 4
        $region40: #{tpu_custom_call.1} parent=11 // pred_fallthru
          _
        // Predicated region
        $region41: #{tpu_custom_call.1} parent=11 // pred_check
          %p397 = pneg %p221
        $region42: #{tpu_custom_call.1} parent=11 // pred_check_branch
          %399 = sbr.rel (%p397) target = $region44
        $region43: #{tpu_custom_call.1} parent=11 // pred_region
          _
        $region44: #{tpu_custom_call.1} parent=11 // pred_fallthru
          _
        // Predicated region
        $region45: #{tpu_custom_call.1} parent=11 // pred_check
          %p400 = pneg %p242
        $region46: #{tpu_custom_call.1} parent=11 // pred_check_branch
          %402 = sbr.rel (%p400) target = $region48
        $region47: #{tpu_custom_call.1} parent=11 // pred_region
          %s404 = ssub.s32 1024, 1024
          %405 = vsyncadd [#allocation9], %s404
          %s406 = sshll.u32 [#allocation10], 4
          %s407 = int_to_ptr.vmem [resolvable:$true] %s406
          %412 = dma.hbm_to_vmem [thread:$0]  %s9, 1024, %s407, [#allocation9], 64, 64, 4
        $region48: #{tpu_custom_call.1} parent=11 // pred_fallthru
          _
        // Predicated region
        $region49: #{tpu_custom_call.1} parent=11 // pred_check
          %p413 = pneg %p263
        $region50: #{tpu_custom_call.1} parent=11 // pred_check_branch
          %415 = sbr.rel (%p413) target = $region52
        $region51: #{tpu_custom_call.1} parent=11 // pred_region
          _
        $region52: #{tpu_custom_call.1} parent=11 // pred_fallthru
          _
        // Predicated region
        $region53: #{tpu_custom_call.1} parent=11 // pred_check
          %p416 = pneg %p284
        $region54: #{tpu_custom_call.1} parent=11 // pred_check_branch
          %418 = sbr.rel (%p416) target = $region56
        $region55: #{tpu_custom_call.1} parent=11 // pred_region
          _
        $region56: #{tpu_custom_call.1} parent=11 // pred_fallthru
          _
        // Predicated region
        $region57: #{tpu_custom_call.1} parent=11 // pred_check
          %p419 = pneg %p305
        $region58: #{tpu_custom_call.1} parent=11 // pred_check_branch
          %421 = sbr.rel (%p419) target = $region60
        $region59: #{tpu_custom_call.1} parent=11 // pred_region
          _
        $region60: #{tpu_custom_call.1} parent=11 // pred_fallthru
          _
      $region12: #{tpu_custom_call.1} parent=5 // pred_fallthru
        _
      %p422 = scmp.lt.s32.totalorder %s27, 4
      // Predicated region
      $region61: #{tpu_custom_call.1} parent=5 // pred_check
        %p423 = pneg %p422
      $region62: #{tpu_custom_call.1} parent=5 // pred_check_branch
        %425 = sbr.rel (%p423) target = $region64
      $region63: #{tpu_custom_call.1} parent=5 // pred_region
        // Predicated region
        $region65: #{tpu_custom_call.1} parent=63 // pred_check
          %p426 = pneg %p47
        $region66: #{tpu_custom_call.1} parent=63 // pred_check_branch
          %428 = sbr.rel (%p426) target = $region68
        $region67: #{tpu_custom_call.1} parent=63 // pred_region
          %s429 = sand.u32 %s37, 1
          %s430 = scalar_lea.sflag [#allocation3], %s429
          %s431 = sand.u32 %s37, 1
          %s432 = smul.addr %s431, 16
          %s433 = scalar_lea.vmem [#allocation2], %s432
          %s435 = ssub.s32 256, 256
          %436 = vsyncadd %s430, %s435
          %s437 = smul.addr %s27, 2
          %s438 = smul.addr %s437, 128
          %s439 = scalar_lea.hbm %s0, %s438
          %s440 = sshll.u32 %s433, 4
          %s441 = int_to_ptr.vmem [resolvable:$true] %s440
          %446 = dma.hbm_to_vmem [thread:$0]  %s439, 256, %s441, %s430, 128, 128, 8
        $region68: #{tpu_custom_call.1} parent=63 // pred_fallthru
          _
      $region64: #{tpu_custom_call.1} parent=5 // pred_fallthru
        _
      %p447 = scmp.le.s32.totalorder 1, %s27
      %p448 = scmp.lt.s32.totalorder %s27, 5
      %p449 = pnand %p447, %p448
      %p450 = pneg %p449
      // Predicated region
      $region69: #{tpu_custom_call.1} parent=5 // pred_check
        _
      $region70: #{tpu_custom_call.1} parent=5 // pred_check_branch
        %452 = sbr.rel (%p449) target = $region72
      $region71: #{tpu_custom_call.1} parent=5 // pred_region
        %s453 = ssub.s32 %s27, 1
        %s454 = sand.u32 %s40, 1
        %s455 = scalar_lea.sflag [#allocation3], %s454
        %s456 = sand.u32 %s40, 1
        %s457 = smul.addr %s456, 16
        %s458 = scalar_lea.vmem [#allocation2], %s457
        // Predicated region
        $region73: #{tpu_custom_call.1} parent=71 // pred_check
          %p459 = pneg %p53
        $region74: #{tpu_custom_call.1} parent=71 // pred_check_branch
          %461 = sbr.rel (%p459) target = $region76
        $region75: #{tpu_custom_call.1} parent=71 // pred_region
          %462 = dma.done %s455, 256
        $region76: #{tpu_custom_call.1} parent=71 // pred_fallthru
          _
        // Predicated region
        $region77: #{tpu_custom_call.1} parent=71 // pred_check
          %p463 = pneg %p74
        $region78: #{tpu_custom_call.1} parent=71 // pred_check_branch
          %465 = sbr.rel (%p463) target = $region80
        $region79: #{tpu_custom_call.1} parent=71 // pred_region
          %466 = dma.done [#allocation6], 3072
        $region80: #{tpu_custom_call.1} parent=71 // pred_fallthru
          _
        // Predicated region
        $region81: #{tpu_custom_call.1} parent=71 // pred_check
          %p467 = pneg %p116
        $region82: #{tpu_custom_call.1} parent=71 // pred_check_branch
          %469 = sbr.rel (%p467) target = $region84
        $region83: #{tpu_custom_call.1} parent=71 // pred_region
          %470 = dma.done [#allocation6], 1024
        $region84: #{tpu_custom_call.1} parent=71 // pred_fallthru
          _
        // Predicated region
        $region85: #{tpu_custom_call.1} parent=71 // pred_check
          %p471 = pneg %p200
        $region86: #{tpu_custom_call.1} parent=71 // pred_check_branch
          %473 = sbr.rel (%p471) target = $region88
        $region87: #{tpu_custom_call.1} parent=71 // pred_region
          %474 = dma.done [#allocation9], 1024
        $region88: #{tpu_custom_call.1} parent=71 // pred_fallthru
          _
        // Predicated region
        $region89: #{tpu_custom_call.1} parent=71 // pred_check
          %p475 = pneg %p242
        $region90: #{tpu_custom_call.1} parent=71 // pred_check_branch
          %477 = sbr.rel (%p475) target = $region92
        $region91: #{tpu_custom_call.1} parent=71 // pred_region
          %478 = dma.done [#allocation9], 1024
        $region92: #{tpu_custom_call.1} parent=71 // pred_fallthru
          _
        %s479 = sand.u32 %s40, 1
        %s480 = scalar_lea.sflag [#allocation3], %s479
        %s481 = sand.u32 %s40, 1
        %s482 = smul.addr %s481, 16
        %s483 = scalar_lea.vmem [#allocation2], %s482
        %p484 = pneg %p53
        %p485 = pneg %p50
        %p486 = pneg %p74
        %p487 = pneg %p71
        %p488 = pneg %p95
        %p489 = pneg %p92
        %p490 = pneg %p116
        %p491 = pneg %p113
        %p492 = pneg %p137
        %p493 = pneg %p134
        %p494 = pneg %p158
        %p495 = pneg %p155
        %p496 = pneg %p179
        %p497 = pneg %p176
        %p498 = pneg %p200
        %p499 = pneg %p197
        %p500 = pneg %p221
        %p501 = pneg %p218
        %p502 = pneg %p242
        %p503 = pneg %p239
        %p504 = pneg %p263
        %p505 = pneg %p260
        %p506 = pneg %p284
        %p507 = pneg %p281
        %p508 = pneg %p305
        %p509 = pneg %p302
        %p510 = pneg %p331
        %p511 = pneg %p328
        %s512 = sand.u32 %s318, 1
        %s513 = scalar_lea.sflag [#allocation4], %s512
        %s514 = sand.u32 %s318, 1
        %s515 = smul.addr %s514, 16
        %s516 = scalar_lea.vmem [#allocation11], %s515
        %v518 = vld [vmem:[%s458] sm:$0xff]
        %v519 = vld [vmem:[%s458 + $0x8] sm:$0xff]
        %v520 = vpack.c.bf16 %v519, %v518
        %v521 = vld [vmem:[#allocation5] sm:$0xff]
        %v522 = vld [vmem:[#allocation5 + $0x8] sm:$0xf]
        %v523 = vld [vmem:[#allocation5 + $0xc] sm:$0xff]
        %v524 = vld [vmem:[#allocation5 + $0x14] sm:$0xf]
        %v525 = vld [vmem:[#allocation5 + $0x18] sm:$0xff]
        %v526 = vld [vmem:[#allocation5 + $0x20] sm:$0xf]
        %v527 = vld [vmem:[#allocation5 + $0x24] sm:$0xff]
        %v528 = vld [vmem:[#allocation5 + $0x2c] sm:$0xf]
        %v529 = vld [vmem:[#allocation5 + $0x30] sm:$0xff]
        %v530 = vld [vmem:[#allocation5 + $0x38] sm:$0xf]
        %v531 = vld [vmem:[#allocation5 + $0x3c] sm:$0xff]
        %v532 = vld [vmem:[#allocation5 + $0x44] sm:$0xf]
        %v533 = vld [vmem:[#allocation5 + $0x48] sm:$0xff]
        %v534 = vld [vmem:[#allocation5 + $0x50] sm:$0xf]
        %v535 = vld [vmem:[#allocation5 + $0x54] sm:$0xff]
        %v536 = vld [vmem:[#allocation5 + $0x5c] sm:$0xf]
        %v537 = vld [vmem:[#allocation5 + $0x60] sm:$0xff]
        %v538 = vld [vmem:[#allocation5 + $0x68] sm:$0xf]
        %v539 = vld [vmem:[#allocation5 + $0x6c] sm:$0xff]
        %v540 = vld [vmem:[#allocation5 + $0x74] sm:$0xf]
        %v541 = vld [vmem:[#allocation5 + $0x78] sm:$0xff]
        %v542 = vld [vmem:[#allocation5 + $0x80] sm:$0xf]
        %v543 = vld [vmem:[#allocation5 + $0x84] sm:$0xff]
        %v544 = vld [vmem:[#allocation5 + $0x8c] sm:$0xf]
        %v545 = vld [vmem:[#allocation5 + $0x90] sm:$0xff]
        %v546 = vld [vmem:[#allocation5 + $0x98] sm:$0xf]
        %v547 = vld [vmem:[#allocation5 + $0x9c] sm:$0xff]
        %v548 = vld [vmem:[#allocation5 + $0xa4] sm:$0xf]
        %v549 = vld [vmem:[#allocation5 + $0xa8] sm:$0xff]
        %v550 = vld [vmem:[#allocation5 + $0xb0] sm:$0xf]
        %v551 = vld [vmem:[#allocation5 + $0xb4] sm:$0xff]
        %v552 = vld [vmem:[#allocation5 + $0xbc] sm:$0xf]
        %v553 = vld [vmem:[%s2] sm:$0x7]
        %v555 = vlaneseq
        %v556 = vshrl.u32 %v555, 7
        %v557 = vsub.s32 0, %v556
        %v558 = vrot.slane %v553, %v557
        %v559 = vlaneseq
        %v560 = vshrl.u32 %v559, 7
        %v561 = vsub.s32 1, %v560
        %v562 = vrot.slane %v553, %v561
        %v563 = vlaneseq
        %v564 = vshrl.u32 %v563, 7
        %v565 = vsub.s32 2, %v564
        %v566 = vrot.slane %v553, %v565
        %v602 = vunpack.c.l.b16 %v521
        %v603 = vunpack.c.h.b16 %v521
        %v604 = vunpack.c.l.b16 %v522
        %v605 = vunpack.c.l.b16 %v523
        %v606 = vunpack.c.h.b16 %v523
        %v607 = vunpack.c.l.b16 %v524
        %v608 = vunpack.c.l.b16 %v525
        %v609 = vunpack.c.h.b16 %v525
        %v610 = vunpack.c.l.b16 %v526
        %v611 = vunpack.c.l.b16 %v527
        %v612 = vunpack.c.h.b16 %v527
        %v613 = vunpack.c.l.b16 %v528
        %v614 = vunpack.c.l.b16 %v529
        %v615 = vunpack.c.h.b16 %v529
        %v616 = vunpack.c.l.b16 %v530
        %v617 = vunpack.c.l.b16 %v531
        %v618 = vunpack.c.h.b16 %v531
        %v619 = vunpack.c.l.b16 %v532
        %v620 = vunpack.c.l.b16 %v533
        %v621 = vunpack.c.h.b16 %v533
        %v622 = vunpack.c.l.b16 %v534
        %v623 = vunpack.c.l.b16 %v535
        %v624 = vunpack.c.h.b16 %v535
        %v625 = vunpack.c.l.b16 %v536
        %v626 = vunpack.c.l.b16 %v537
        %v627 = vunpack.c.h.b16 %v537
        %v628 = vunpack.c.l.b16 %v538
        %v629 = vunpack.c.l.b16 %v539
        %v630 = vunpack.c.h.b16 %v539
        %v631 = vunpack.c.l.b16 %v540
        %v632 = vunpack.c.l.b16 %v541
        %v633 = vunpack.c.h.b16 %v541
        %v634 = vunpack.c.l.b16 %v542
        %v635 = vunpack.c.l.b16 %v543
        %v636 = vunpack.c.h.b16 %v543
        %v637 = vunpack.c.l.b16 %v544
        %v638 = vunpack.c.l.b16 %v545
        %v639 = vunpack.c.h.b16 %v545
        %v640 = vunpack.c.l.b16 %v546
        %v641 = vunpack.c.l.b16 %v547
        %v642 = vunpack.c.h.b16 %v547
        %v643 = vunpack.c.l.b16 %v548
        %v644 = vunpack.c.l.b16 %v549
        %v645 = vunpack.c.h.b16 %v549
        %v646 = vunpack.c.l.b16 %v550
        %v647 = vunpack.c.l.b16 %v551
        %v648 = vunpack.c.h.b16 %v551
        %v649 = vunpack.c.l.b16 %v552
        %v650 = vpack.c.b16 %v605, %v602
        %v651 = vpack.c.b16 %v606, %v603
        %v652 = vpack.c.b16 %v607, %v604
        %v653 = vpack.c.b16 %v611, %v608
        %v654 = vpack.c.b16 %v612, %v609
        %v655 = vpack.c.b16 %v613, %v610
        %v656 = vpack.c.b16 %v617, %v614
        %v657 = vpack.c.b16 %v618, %v615
        %v658 = vpack.c.b16 %v619, %v616
        %v659 = vpack.c.b16 %v623, %v620
        %v660 = vpack.c.b16 %v624, %v621
        %v661 = vpack.c.b16 %v625, %v622
        %v662 = vpack.c.b16 %v629, %v626
        %v663 = vpack.c.b16 %v630, %v627
        %v664 = vpack.c.b16 %v631, %v628
        %v665 = vpack.c.b16 %v635, %v632
        %v666 = vpack.c.b16 %v636, %v633
        %v667 = vpack.c.b16 %v637, %v634
        %v668 = vpack.c.b16 %v641, %v638
        %v669 = vpack.c.b16 %v642, %v639
        %v670 = vpack.c.b16 %v643, %v640
        %v671 = vpack.c.b16 %v647, %v644
        %v672 = vpack.c.b16 %v648, %v645
        %v673 = vpack.c.b16 %v649, %v646
        %698 = vmatprep.subr.bf16.mxu0 %v651
        %699 = vmatpush1.bf16.msra.mxu0 %v650
        %700 = vmatprep.subr.bf16.mxu0 %v654
        %701 = vmatpush1.bf16.msra.mxu0 %v653
        %702 = vmatprep.subr.bf16.mxu0 %v657
        %703 = vmatpush1.bf16.msra.mxu0 %v656
        %704 = vmatprep.subr.bf16.mxu0 %v660
        %705 = vmatpush1.bf16.msra.mxu0 %v659
        %706 = vmatprep.subr.bf16.mxu0 %v663
        %707 = vmatpush1.bf16.msra.mxu0 %v662
        %708 = vmatprep.subr.bf16.mxu0 %v666
        %709 = vmatpush1.bf16.msra.mxu0 %v665
        %710 = vmatprep.subr.bf16.mxu0 %v669
        %711 = vmatpush1.bf16.msra.mxu0 %v668
        %712 = vmatprep.subr.bf16.mxu0 %v672
        %713 = vmatpush1.bf16.msra.mxu0 %v671
        %714 = vmatprep.subr.bf16.mxu0 0
        %715 = vmatpush1.bf16.msra.mxu0 0
        %716 = vmatprep.subr.bf16.mxu0 0
        %717 = vmatpush1.bf16.msra.mxu0 0
        %718 = vmatprep.subr.bf16.mxu0 0
        %719 = vmatpush1.bf16.msra.mxu0 0
        %720 = vmatprep.subr.bf16.mxu0 0
        %721 = vmatpush1.bf16.msra.mxu0 0
        %722 = vmatprep.subr.bf16.mxu0 0
        %723 = vmatpush1.bf16.msra.mxu0 0
        %724 = vmatprep.subr.bf16.mxu0 0
        %725 = vmatpush1.bf16.msra.mxu0 0
        %726 = vmatprep.subr.bf16.mxu0 0
        %727 = vmatpush1.bf16.msra.mxu0 0
        %728 = vmatprep.subr.bf16.mxu0 0
        %729 = vmatpush1.bf16.msra.mxu0 0
        %730 = vmatprep.mubr.bf16.mxu0 0
        %731 = vmatmul.mubr.bf16.gmra.mrb[0].mxu0 %v520
        %v732 = vpop.f32.mrb[0].mxu0
        %v733 = vadd.f32 %v558, %v732
        %v734 = vpop.f32.mrb[0].mxu0
        %v735 = vadd.f32 %v562, %v734
        %v736 = vpop.f32.mrb[0].mxu0
        %v737 = vadd.f32 %v558, %v736
        %v738 = vpop.f32.mrb[0].mxu0
        %v739 = vadd.f32 %v562, %v738
        %740 = vdwg.mxu0
        %741 = vmatprep.subr.bf16.mxu0 0
        %742 = vmatpush1.bf16.msra.mxu0 %v652
        %743 = vmatprep.subr.bf16.mxu0 0
        %744 = vmatpush1.bf16.msra.mxu0 %v655
        %745 = vmatprep.subr.bf16.mxu0 0
        %746 = vmatpush1.bf16.msra.mxu0 %v658
        %747 = vmatprep.subr.bf16.mxu0 0
        %748 = vmatpush1.bf16.msra.mxu0 %v661
        %749 = vmatprep.subr.bf16.mxu0 0
        %750 = vmatpush1.bf16.msra.mxu0 %v664
        %751 = vmatprep.subr.bf16.mxu0 0
        %752 = vmatpush1.bf16.msra.mxu0 %v667
        %753 = vmatprep.subr.bf16.mxu0 0
        %754 = vmatpush1.bf16.msra.mxu0 %v670
        %755 = vmatprep.subr.bf16.mxu0 0
        %756 = vmatpush1.bf16.msra.mxu0 %v673
        %757 = vmatprep.subr.bf16.mxu0 0
        %758 = vmatpush1.bf16.msra.mxu0 0
        %759 = vmatprep.subr.bf16.mxu0 0
        %760 = vmatpush1.bf16.msra.mxu0 0
        %761 = vmatprep.subr.bf16.mxu0 0
        %762 = vmatpush1.bf16.msra.mxu0 0
        %763 = vmatprep.subr.bf16.mxu0 0
        %764 = vmatpush1.bf16.msra.mxu0 0
        %765 = vmatprep.subr.bf16.mxu0 0
        %766 = vmatpush1.bf16.msra.mxu0 0
        %767 = vmatprep.subr.bf16.mxu0 0
        %768 = vmatpush1.bf16.msra.mxu0 0
        %769 = vmatprep.subr.bf16.mxu0 0
        %770 = vmatpush1.bf16.msra.mxu0 0
        %771 = vmatprep.subr.bf16.mxu0 0
        %772 = vmatpush1.bf16.msra.mxu0 0
        %773 = vmatprep.mubr.bf16.mxu0 0
        %774 = vmatmul.mubr.bf16.gmra.mrb[0].mxu0 %v520
        %v775 = vpop.f32.mrb[0].mxu0
        %v776 = vadd.f32 %v566, %v775
        %v777 = vpop.f32.mrb[0].mxu0
        %v778 = vpop.f32.mrb[0].mxu0
        %v779 = vadd.f32 %v566, %v778
        %v780 = vpop.f32.mrb[0].mxu0
        %781 = vdwg.mxu0
        %v782 = vpack.c.bf16 %v737, %v733
        %784 = vrot.lane.b32.xlu0 %v782, 96
        %v785 = vpop.permute.xlu0 %784
        %786 = vrot.lane.b32.xlu0 %v782, 64
        %v787 = vpop.permute.xlu0 %786
        %788 = vrot.lane.b32.xlu0 %v782, 32
        %v789 = vpop.permute.xlu0 %788
        %v790 = vpack.c.bf16 %v739, %v735
        %792 = vrot.lane.b32.xlu0 %v790, 96
        %v793 = vpop.permute.xlu0 %792
        %794 = vrot.lane.b32.xlu0 %v790, 64
        %v795 = vpop.permute.xlu0 %794
        %796 = vrot.lane.b32.xlu0 %v790, 32
        %v797 = vpop.permute.xlu0 %796
        %v798 = vpack.c.bf16 %v779, %v776
        %800 = vrot.lane.b32.xlu0 %v798, 96
        %v801 = vpop.permute.xlu0 %800
        %803 = vrot.lane.b32.xlu0 %v798, 64
        %v804 = vpop.permute.xlu0 %803
        %806 = vrot.lane.b32.xlu0 %v798, 32
        %v807 = vpop.permute.xlu0 %806
        %vm809 = vcmask 261120
        %v811 = vsel %vm809, %v782, 0
        %v814 = vsel %vm809, %v790, 0
        %816 = vmatprep.subr.bf16.mxu0 0
        %817 = vmatpush1.bf16.xpose.msra.mxu0 %v814
        %818 = vmatprep.subr.bf16.mxu0 0
        %819 = vmatpush1.bf16.xpose.msra.mxu0 0
        %820 = vmatprep.subr.bf16.mxu0 0
        %821 = vmatpush1.bf16.xpose.msra.mxu0 0
        %822 = vmatprep.subr.bf16.mxu0 0
        %823 = vmatpush1.bf16.xpose.msra.mxu0 0
        %824 = vmatprep.subr.bf16.mxu0 0
        %825 = vmatpush1.bf16.xpose.msra.mxu0 0
        %826 = vmatprep.subr.bf16.mxu0 0
        %827 = vmatpush1.bf16.xpose.msra.mxu0 0
        %828 = vmatprep.subr.bf16.mxu0 0
        %829 = vmatpush1.bf16.xpose.msra.mxu0 0
        %830 = vmatprep.subr.bf16.mxu0 0
        %831 = vmatpush1.bf16.xpose.msra.mxu0 0
        %832 = vmatprep.subr.bf16.mxu0 0
        %833 = vmatpush1.bf16.xpose.msra.mxu0 0
        %834 = vmatprep.subr.bf16.mxu0 0
        %835 = vmatpush1.bf16.xpose.msra.mxu0 0
        %836 = vmatprep.subr.bf16.mxu0 0
        %837 = vmatpush1.bf16.xpose.msra.mxu0 0
        %838 = vmatprep.subr.bf16.mxu0 0
        %839 = vmatpush1.bf16.xpose.msra.mxu0 0
        %840 = vmatprep.subr.bf16.mxu0 0
        %841 = vmatpush1.bf16.xpose.msra.mxu0 0
        %842 = vmatprep.subr.bf16.mxu0 0
        %843 = vmatpush1.bf16.xpose.msra.mxu0 0
        %844 = vmatprep.subr.bf16.mxu0 0
        %845 = vmatpush1.bf16.xpose.msra.mxu0 0
        %846 = vmatprep.subr.bf16.mxu0 0
        %847 = vmatpush1.bf16.xpose.msra.mxu0 0
        %848 = vmatprep.mubr.bf16.mxu0 0
        %849 = vmatmul.mubr.bf16.gmra.mrb[0].mxu0 %v811
        %v850 = vpop.f32.mrb[0].mxu0
        %v851 = vadd.f32 0.0, %v850
        %v852 = vpop.f32.mrb[0].mxu0
        %v853 = vpop.f32.mrb[0].mxu0
        %v854 = vadd.f32 0.0, %v853
        %v855 = vpop.f32.mrb[0].mxu0
        %856 = vdwg.mxu0
        %v858 = vsel %vm809, %v785, 0
        %v861 = vsel %vm809, %v793, 0
        %863 = vmatprep.subr.bf16.mxu0 0
        %864 = vmatpush1.bf16.xpose.msra.mxu0 %v861
        %865 = vmatprep.subr.bf16.mxu0 0
        %866 = vmatpush1.bf16.xpose.msra.mxu0 0
        %867 = vmatprep.subr.bf16.mxu0 0
        %868 = vmatpush1.bf16.xpose.msra.mxu0 0
        %869 = vmatprep.subr.bf16.mxu0 0
        %870 = vmatpush1.bf16.xpose.msra.mxu0 0
        %871 = vmatprep.subr.bf16.mxu0 0
        %872 = vmatpush1.bf16.xpose.msra.mxu0 0
        %873 = vmatprep.subr.bf16.mxu0 0
        %874 = vmatpush1.bf16.xpose.msra.mxu0 0
        %875 = vmatprep.subr.bf16.mxu0 0
        %876 = vmatpush1.bf16.xpose.msra.mxu0 0
        %877 = vmatprep.subr.bf16.mxu0 0
        %878 = vmatpush1.bf16.xpose.msra.mxu0 0
        %879 = vmatprep.subr.bf16.mxu0 0
        %880 = vmatpush1.bf16.xpose.msra.mxu0 0
        %881 = vmatprep.subr.bf16.mxu0 0
        %882 = vmatpush1.bf16.xpose.msra.mxu0 0
        %883 = vmatprep.subr.bf16.mxu0 0
        %884 = vmatpush1.bf16.xpose.msra.mxu0 0
        %885 = vmatprep.subr.bf16.mxu0 0
        %886 = vmatpush1.bf16.xpose.msra.mxu0 0
        %887 = vmatprep.subr.bf16.mxu0 0
        %888 = vmatpush1.bf16.xpose.msra.mxu0 0
        %889 = vmatprep.subr.bf16.mxu0 0
        %890 = vmatpush1.bf16.xpose.msra.mxu0 0
        %891 = vmatprep.subr.bf16.mxu0 0
        %892 = vmatpush1.bf16.xpose.msra.mxu0 0
        %893 = vmatprep.subr.bf16.mxu0 0
        %894 = vmatpush1.bf16.xpose.msra.mxu0 0
        %895 = vmatprep.mubr.bf16.mxu0 0
        %896 = vmatmul.mubr.bf16.gmra.mrb[0].mxu0 %v858
        %v897 = vpop.f32.mrb[0].mxu0
        %v898 = vadd.f32 0.0, %v897
        %v899 = vpop.f32.mrb[0].mxu0
        %v900 = vpop.f32.mrb[0].mxu0
        %v901 = vadd.f32 0.0, %v900
        %v902 = vpop.f32.mrb[0].mxu0
        %903 = vdwg.mxu0
        %v905 = vsel %vm809, %v787, 0
        %v908 = vsel %vm809, %v795, 0
        %910 = vmatprep.subr.bf16.mxu0 0
        %911 = vmatpush1.bf16.xpose.msra.mxu0 %v908
        %912 = vmatprep.subr.bf16.mxu0 0
        %913 = vmatpush1.bf16.xpose.msra.mxu0 0
        %914 = vmatprep.subr.bf16.mxu0 0
        %915 = vmatpush1.bf16.xpose.msra.mxu0 0
        %916 = vmatprep.subr.bf16.mxu0 0
        %917 = vmatpush1.bf16.xpose.msra.mxu0 0
        %918 = vmatprep.subr.bf16.mxu0 0
        %919 = vmatpush1.bf16.xpose.msra.mxu0 0
        %920 = vmatprep.subr.bf16.mxu0 0
        %921 = vmatpush1.bf16.xpose.msra.mxu0 0
        %922 = vmatprep.subr.bf16.mxu0 0
        %923 = vmatpush1.bf16.xpose.msra.mxu0 0
        %924 = vmatprep.subr.bf16.mxu0 0
        %925 = vmatpush1.bf16.xpose.msra.mxu0 0
        %926 = vmatprep.subr.bf16.mxu0 0
        %927 = vmatpush1.bf16.xpose.msra.mxu0 0
        %928 = vmatprep.subr.bf16.mxu0 0
        %929 = vmatpush1.bf16.xpose.msra.mxu0 0
        %930 = vmatprep.subr.bf16.mxu0 0
        %931 = vmatpush1.bf16.xpose.msra.mxu0 0
        %932 = vmatprep.subr.bf16.mxu0 0
        %933 = vmatpush1.bf16.xpose.msra.mxu0 0
        %934 = vmatprep.subr.bf16.mxu0 0
        %935 = vmatpush1.bf16.xpose.msra.mxu0 0
        %936 = vmatprep.subr.bf16.mxu0 0
        %937 = vmatpush1.bf16.xpose.msra.mxu0 0
        %938 = vmatprep.subr.bf16.mxu0 0
        %939 = vmatpush1.bf16.xpose.msra.mxu0 0
        %940 = vmatprep.subr.bf16.mxu0 0
        %941 = vmatpush1.bf16.xpose.msra.mxu0 0
        %942 = vmatprep.mubr.bf16.mxu0 0
        %943 = vmatmul.mubr.bf16.gmra.mrb[0].mxu0 %v905
        %v944 = vpop.f32.mrb[0].mxu0
        %v945 = vadd.f32 0.0, %v944
        %v946 = vpop.f32.mrb[0].mxu0
        %v947 = vpop.f32.mrb[0].mxu0
        %v948 = vadd.f32 0.0, %v947
        %v949 = vpop.f32.mrb[0].mxu0
        %950 = vdwg.mxu0
        %v952 = vsel %vm809, %v789, 0
        %v955 = vsel %vm809, %v797, 0
        %957 = vmatprep.subr.bf16.mxu0 0
        %958 = vmatpush1.bf16.xpose.msra.mxu0 %v955
        %959 = vmatprep.subr.bf16.mxu0 0
        %960 = vmatpush1.bf16.xpose.msra.mxu0 0
        %961 = vmatprep.subr.bf16.mxu0 0
        %962 = vmatpush1.bf16.xpose.msra.mxu0 0
        %963 = vmatprep.subr.bf16.mxu0 0
        %964 = vmatpush1.bf16.xpose.msra.mxu0 0
        %965 = vmatprep.subr.bf16.mxu0 0
        %966 = vmatpush1.bf16.xpose.msra.mxu0 0
        %967 = vmatprep.subr.bf16.mxu0 0
        %968 = vmatpush1.bf16.xpose.msra.mxu0 0
        %969 = vmatprep.subr.bf16.mxu0 0
        %970 = vmatpush1.bf16.xpose.msra.mxu0 0
        %971 = vmatprep.subr.bf16.mxu0 0
        %972 = vmatpush1.bf16.xpose.msra.mxu0 0
        %973 = vmatprep.subr.bf16.mxu0 0
        %974 = vmatpush1.bf16.xpose.msra.mxu0 0
        %975 = vmatprep.subr.bf16.mxu0 0
        %976 = vmatpush1.bf16.xpose.msra.mxu0 0
        %977 = vmatprep.subr.bf16.mxu0 0
        %978 = vmatpush1.bf16.xpose.msra.mxu0 0
        %979 = vmatprep.subr.bf16.mxu0 0
        %980 = vmatpush1.bf16.xpose.msra.mxu0 0
        %981 = vmatprep.subr.bf16.mxu0 0
        %982 = vmatpush1.bf16.xpose.msra.mxu0 0
        %983 = vmatprep.subr.bf16.mxu0 0
        %984 = vmatpush1.bf16.xpose.msra.mxu0 0
        %985 = vmatprep.subr.bf16.mxu0 0
        %986 = vmatpush1.bf16.xpose.msra.mxu0 0
        %987 = vmatprep.subr.bf16.mxu0 0
        %988 = vmatpush1.bf16.xpose.msra.mxu0 0
        %989 = vmatprep.mubr.bf16.mxu0 0
        %990 = vmatmul.mubr.bf16.gmra.mrb[0].mxu0 %v952
        %v991 = vpop.f32.mrb[0].mxu0
        %v992 = vadd.f32 0.0, %v991
        %v993 = vpop.f32.mrb[0].mxu0
        %v994 = vpop.f32.mrb[0].mxu0
        %v995 = vadd.f32 0.0, %v994
        %v996 = vpop.f32.mrb[0].mxu0
        %997 = vdwg.mxu0
        %vm998 = vcmask 130048
        %v999 = vsel %vm998, %v851, -inf
        %1000 = vmax.xlane.f32.xlu0 %v999
        %v1001 = vpop.xlane.xlu0 %1000
        %v1002 = vsel %vm998, %v854, -inf
        %1003 = vmax.xlane.f32.xlu0 %v1002
        %v1004 = vpop.xlane.xlu0 %1003
        %v1005 = vsel %vm998, %v898, -inf
        %1006 = vmax.xlane.f32.xlu0 %v1005
        %v1007 = vpop.xlane.xlu0 %1006
        %v1008 = vsel %vm998, %v901, -inf
        %1009 = vmax.xlane.f32.xlu0 %v1008
        %v1010 = vpop.xlane.xlu0 %1009
        %v1011 = vsel %vm998, %v945, -inf
        %1012 = vmax.xlane.f32.xlu0 %v1011
        %v1013 = vpop.xlane.xlu0 %1012
        %v1014 = vsel %vm998, %v948, -inf
        %1015 = vmax.xlane.f32.xlu0 %v1014
        %v1016 = vpop.xlane.xlu0 %1015
        %v1017 = vsel %vm998, %v992, -inf
        %1018 = vmax.xlane.f32.xlu0 %v1017
        %v1019 = vpop.xlane.xlu0 %1018
        %v1020 = vsel %vm998, %v995, -inf
        %1021 = vmax.xlane.f32.xlu0 %v1020
        %v1022 = vpop.xlane.xlu0 %1021
        %v1023 = vsub.f32 %v851, %v1001
        %v1024 = vsub.f32 %v854, %v1004
        %v1025 = vsub.f32 %v898, %v1007
        %v1026 = vsub.f32 %v901, %v1010
        %v1027 = vsub.f32 %v945, %v1013
        %v1028 = vsub.f32 %v948, %v1016
        %v1029 = vsub.f32 %v992, %v1019
        %v1030 = vsub.f32 %v995, %v1022
        %v1031 = vmul.f32 %v1023, 1.442695
        %v1032 = vpow.pop %v1031
        %v1033 = vmul.f32 %v1024, 1.442695
        %v1034 = vpow.pop %v1033
        %v1035 = vmul.f32 %v1025, 1.442695
        %v1036 = vpow.pop %v1035
        %v1037 = vmul.f32 %v1026, 1.442695
        %v1038 = vpow.pop %v1037
        %v1039 = vmul.f32 %v1027, 1.442695
        %v1040 = vpow.pop %v1039
        %v1041 = vmul.f32 %v1028, 1.442695
        %v1042 = vpow.pop %v1041
        %v1043 = vmul.f32 %v1029, 1.442695
        %v1044 = vpow.pop %v1043
        %v1045 = vmul.f32 %v1030, 1.442695
        %v1046 = vpow.pop %v1045
        %v1047 = vsel %vm998, %v1032, 0.0
        %1048 = vadd.xlane.f32.xlu0 %v1047
        %v1049 = vpop.xlane.xlu0 %1048
        %v1050 = vsel %vm998, %v1034, 0.0
        %1051 = vadd.xlane.f32.xlu0 %v1050
        %v1052 = vpop.xlane.xlu0 %1051
        %v1053 = vsel %vm998, %v1036, 0.0
        %1054 = vadd.xlane.f32.xlu0 %v1053
        %v1055 = vpop.xlane.xlu0 %1054
        %v1056 = vsel %vm998, %v1038, 0.0
        %1057 = vadd.xlane.f32.xlu0 %v1056
        %v1058 = vpop.xlane.xlu0 %1057
        %v1059 = vsel %vm998, %v1040, 0.0
        %1060 = vadd.xlane.f32.xlu0 %v1059
        %v1061 = vpop.xlane.xlu0 %1060
        %v1062 = vsel %vm998, %v1042, 0.0
        %1063 = vadd.xlane.f32.xlu0 %v1062
        %v1064 = vpop.xlane.xlu0 %1063
        %v1065 = vsel %vm998, %v1044, 0.0
        %1066 = vadd.xlane.f32.xlu0 %v1065
        %v1067 = vpop.xlane.xlu0 %1066
        %v1068 = vsel %vm998, %v1046, 0.0
        %1069 = vadd.xlane.f32.xlu0 %v1068
        %v1070 = vpop.xlane.xlu0 %1069
        %v1071 = vrcp.pop %v1049
        %v1072 = vrcp.pop %v1052
        %v1073 = vrcp.pop %v1055
        %v1074 = vrcp.pop %v1058
        %v1075 = vrcp.pop %v1061
        %v1076 = vrcp.pop %v1064
        %v1077 = vrcp.pop %v1067
        %v1078 = vrcp.pop %v1070
        %v1079 = vmul.f32 %v1032, %v1071
        %v1080 = vmul.f32 %v1034, %v1072
        %v1081 = vmul.f32 %v1036, %v1073
        %v1082 = vmul.f32 %v1038, %v1074
        %v1083 = vmul.f32 %v1040, %v1075
        %v1084 = vmul.f32 %v1042, %v1076
        %v1085 = vmul.f32 %v1044, %v1077
        %v1086 = vmul.f32 %v1046, %v1078
        %v1087 = vpack.c.bf16 %v1080, %v1079
        %v1088 = vpack.c.bf16 %v1082, %v1081
        %v1089 = vpack.c.bf16 %v1084, %v1083
        %v1090 = vpack.c.bf16 %v1086, %v1085
        %v1092 = vsel %vm998, %v1087, 0
        %1094 = vmatprep.subr.bf16.mxu0 0
        %1095 = vmatpush1.bf16.msra.mxu0 %v798
        %1096 = vmatprep.subr.bf16.mxu0 0
        %1097 = vmatpush1.bf16.msra.mxu0 0
        %1098 = vmatprep.subr.bf16.mxu0 0
        %1099 = vmatpush1.bf16.msra.mxu0 0
        %1100 = vmatprep.subr.bf16.mxu0 0
        %1101 = vmatpush1.bf16.msra.mxu0 0
        %1102 = vmatprep.subr.bf16.mxu0 0
        %1103 = vmatpush1.bf16.msra.mxu0 0
        %1104 = vmatprep.subr.bf16.mxu0 0
        %1105 = vmatpush1.bf16.msra.mxu0 0
        %1106 = vmatprep.subr.bf16.mxu0 0
        %1107 = vmatpush1.bf16.msra.mxu0 0
        %1108 = vmatprep.subr.bf16.mxu0 0
        %1109 = vmatpush1.bf16.msra.mxu0 0
        %1110 = vmatprep.subr.bf16.mxu0 0
        %1111 = vmatpush1.bf16.msra.mxu0 0
        %1112 = vmatprep.subr.bf16.mxu0 0
        %1113 = vmatpush1.bf16.msra.mxu0 0
        %1114 = vmatprep.subr.bf16.mxu0 0
        %1115 = vmatpush1.bf16.msra.mxu0 0
        %1116 = vmatprep.subr.bf16.mxu0 0
        %1117 = vmatpush1.bf16.msra.mxu0 0
        %1118 = vmatprep.subr.bf16.mxu0 0
        %1119 = vmatpush1.bf16.msra.mxu0 0
        %1120 = vmatprep.subr.bf16.mxu0 0
        %1121 = vmatpush1.bf16.msra.mxu0 0
        %1122 = vmatprep.subr.bf16.mxu0 0
        %1123 = vmatpush1.bf16.msra.mxu0 0
        %1124 = vmatprep.subr.bf16.mxu0 0
        %1125 = vmatpush1.bf16.msra.mxu0 0
        %1126 = vmatprep.mubr.bf16.mxu0 0
        %1127 = vmatmul.mubr.bf16.gmra.mrb[0].mxu0 %v1092
        %v1128 = vpop.f32.mrb[0].mxu0
        %v1129 = vadd.f32 0.0, %v1128
        %v1130 = vpop.f32.mrb[0].mxu0
        %v1131 = vpop.f32.mrb[0].mxu0
        %v1132 = vadd.f32 0.0, %v1131
        %v1133 = vpop.f32.mrb[0].mxu0
        %1134 = vdwg.mxu0
        %v1136 = vsel %vm998, %v1088, 0
        %1138 = vmatprep.subr.bf16.mxu0 0
        %1139 = vmatpush1.bf16.msra.mxu0 %v801
        %1140 = vmatprep.subr.bf16.mxu0 0
        %1141 = vmatpush1.bf16.msra.mxu0 0
        %1142 = vmatprep.subr.bf16.mxu0 0
        %1143 = vmatpush1.bf16.msra.mxu0 0
        %1144 = vmatprep.subr.bf16.mxu0 0
        %1145 = vmatpush1.bf16.msra.mxu0 0
        %1146 = vmatprep.subr.bf16.mxu0 0
        %1147 = vmatpush1.bf16.msra.mxu0 0
        %1148 = vmatprep.subr.bf16.mxu0 0
        %1149 = vmatpush1.bf16.msra.mxu0 0
        %1150 = vmatprep.subr.bf16.mxu0 0
        %1151 = vmatpush1.bf16.msra.mxu0 0
        %1152 = vmatprep.subr.bf16.mxu0 0
        %1153 = vmatpush1.bf16.msra.mxu0 0
        %1154 = vmatprep.subr.bf16.mxu0 0
        %1155 = vmatpush1.bf16.msra.mxu0 0
        %1156 = vmatprep.subr.bf16.mxu0 0
        %1157 = vmatpush1.bf16.msra.mxu0 0
        %1158 = vmatprep.subr.bf16.mxu0 0
        %1159 = vmatpush1.bf16.msra.mxu0 0
        %1160 = vmatprep.subr.bf16.mxu0 0
        %1161 = vmatpush1.bf16.msra.mxu0 0
        %1162 = vmatprep.subr.bf16.mxu0 0
        %1163 = vmatpush1.bf16.msra.mxu0 0
        %1164 = vmatprep.subr.bf16.mxu0 0
        %1165 = vmatpush1.bf16.msra.mxu0 0
        %1166 = vmatprep.subr.bf16.mxu0 0
        %1167 = vmatpush1.bf16.msra.mxu0 0
        %1168 = vmatprep.subr.bf16.mxu0 0
        %1169 = vmatpush1.bf16.msra.mxu0 0
        %1170 = vmatprep.mubr.bf16.mxu0 0
        %1171 = vmatmul.mubr.bf16.gmra.mrb[0].mxu0 %v1136
        %v1172 = vpop.f32.mrb[0].mxu0
        %v1173 = vadd.f32 0.0, %v1172
        %v1174 = vpop.f32.mrb[0].mxu0
        %v1175 = vpop.f32.mrb[0].mxu0
        %v1176 = vadd.f32 0.0, %v1175
        %v1177 = vpop.f32.mrb[0].mxu0
        %1178 = vdwg.mxu0
        %v1180 = vsel %vm998, %v1089, 0
        %1182 = vmatprep.subr.bf16.mxu0 0
        %1183 = vmatpush1.bf16.msra.mxu0 %v804
        %1184 = vmatprep.subr.bf16.mxu0 0
        %1185 = vmatpush1.bf16.msra.mxu0 0
        %1186 = vmatprep.subr.bf16.mxu0 0
        %1187 = vmatpush1.bf16.msra.mxu0 0
        %1188 = vmatprep.subr.bf16.mxu0 0
        %1189 = vmatpush1.bf16.msra.mxu0 0
        %1190 = vmatprep.subr.bf16.mxu0 0
        %1191 = vmatpush1.bf16.msra.mxu0 0
        %1192 = vmatprep.subr.bf16.mxu0 0
        %1193 = vmatpush1.bf16.msra.mxu0 0
        %1194 = vmatprep.subr.bf16.mxu0 0
        %1195 = vmatpush1.bf16.msra.mxu0 0
        %1196 = vmatprep.subr.bf16.mxu0 0
        %1197 = vmatpush1.bf16.msra.mxu0 0
        %1198 = vmatprep.subr.bf16.mxu0 0
        %1199 = vmatpush1.bf16.msra.mxu0 0
        %1200 = vmatprep.subr.bf16.mxu0 0
        %1201 = vmatpush1.bf16.msra.mxu0 0
        %1202 = vmatprep.subr.bf16.mxu0 0
        %1203 = vmatpush1.bf16.msra.mxu0 0
        %1204 = vmatprep.subr.bf16.mxu0 0
        %1205 = vmatpush1.bf16.msra.mxu0 0
        %1206 = vmatprep.subr.bf16.mxu0 0
        %1207 = vmatpush1.bf16.msra.mxu0 0
        %1208 = vmatprep.subr.bf16.mxu0 0
        %1209 = vmatpush1.bf16.msra.mxu0 0
        %1210 = vmatprep.subr.bf16.mxu0 0
        %1211 = vmatpush1.bf16.msra.mxu0 0
        %1212 = vmatprep.subr.bf16.mxu0 0
        %1213 = vmatpush1.bf16.msra.mxu0 0
        %1214 = vmatprep.mubr.bf16.mxu0 0
        %1215 = vmatmul.mubr.bf16.gmra.mrb[0].mxu0 %v1180
        %v1216 = vpop.f32.mrb[0].mxu0
        %v1217 = vadd.f32 0.0, %v1216
        %v1218 = vpop.f32.mrb[0].mxu0
        %v1219 = vpop.f32.mrb[0].mxu0
        %v1220 = vadd.f32 0.0, %v1219
        %v1221 = vpop.f32.mrb[0].mxu0
        %1222 = vdwg.mxu0
        %v1224 = vsel %vm998, %v1090, 0
        %1226 = vmatprep.subr.bf16.mxu0 0
        %1227 = vmatpush1.bf16.msra.mxu0 %v807
        %1228 = vmatprep.subr.bf16.mxu0 0
        %1229 = vmatpush1.bf16.msra.mxu0 0
        %1230 = vmatprep.subr.bf16.mxu0 0
        %1231 = vmatpush1.bf16.msra.mxu0 0
        %1232 = vmatprep.subr.bf16.mxu0 0
        %1233 = vmatpush1.bf16.msra.mxu0 0
        %1234 = vmatprep.subr.bf16.mxu0 0
        %1235 = vmatpush1.bf16.msra.mxu0 0
        %1236 = vmatprep.subr.bf16.mxu0 0
        %1237 = vmatpush1.bf16.msra.mxu0 0
        %1238 = vmatprep.subr.bf16.mxu0 0
        %1239 = vmatpush1.bf16.msra.mxu0 0
        %1240 = vmatprep.subr.bf16.mxu0 0
        %1241 = vmatpush1.bf16.msra.mxu0 0
        %1242 = vmatprep.subr.bf16.mxu0 0
        %1243 = vmatpush1.bf16.msra.mxu0 0
        %1244 = vmatprep.subr.bf16.mxu0 0
        %1245 = vmatpush1.bf16.msra.mxu0 0
        %1246 = vmatprep.subr.bf16.mxu0 0
        %1247 = vmatpush1.bf16.msra.mxu0 0
        %1248 = vmatprep.subr.bf16.mxu0 0
        %1249 = vmatpush1.bf16.msra.mxu0 0
        %1250 = vmatprep.subr.bf16.mxu0 0
        %1251 = vmatpush1.bf16.msra.mxu0 0
        %1252 = vmatprep.subr.bf16.mxu0 0
        %1253 = vmatpush1.bf16.msra.mxu0 0
        %1254 = vmatprep.subr.bf16.mxu0 0
        %1255 = vmatpush1.bf16.msra.mxu0 0
        %1256 = vmatprep.subr.bf16.mxu0 0
        %1257 = vmatpush1.bf16.msra.mxu0 0
        %1258 = vmatprep.mubr.bf16.mxu0 0
        %1259 = vmatmul.mubr.bf16.gmra.mrb[0].mxu0 %v1224
        %v1260 = vpop.f32.mrb[0].mxu0
        %v1261 = vadd.f32 0.0, %v1260
        %v1262 = vpop.f32.mrb[0].mxu0
        %v1263 = vpop.f32.mrb[0].mxu0
        %v1264 = vadd.f32 0.0, %v1263
        %v1265 = vpop.f32.mrb[0].mxu0
        %1266 = vdwg.mxu0
        %1269 = vrot.lane.b32.xlu0 %v1173, 32
        %v1270 = vpop.permute.xlu0 %1269
        %1271 = vrot.lane.b32.xlu0 %v1176, 32
        %v1272 = vpop.permute.xlu0 %1271
        %1277 = vrot.lane.b32.xlu0 %v1217, 64
        %v1278 = vpop.permute.xlu0 %1277
        %1279 = vrot.lane.b32.xlu0 %v1220, 64
        %v1280 = vpop.permute.xlu0 %1279
        %1285 = vrot.lane.b32.xlu0 %v1261, 96
        %v1286 = vpop.permute.xlu0 %1285
        %1287 = vrot.lane.b32.xlu0 %v1264, 96
        %v1288 = vpop.permute.xlu0 %1287
        %v1291 = vsel %vm809, %v1129, %v1270
        %v1292 = vsel %vm809, %v1132, %v1272
        %vm1293 = vcmask 523264
        %v1294 = vsel %vm1293, %v1291, %v1278
        %v1295 = vsel %vm1293, %v1292, %v1280
        %vm1296 = vcmask 785408
        %v1297 = vsel %vm1296, %v1294, %v1286
        %v1298 = vsel %vm1296, %v1295, %v1288
        %v1299 = vpack.c.bf16 %v1298, %v1297
        %v1300 = vld [vmem:[#allocation7] sm:$0xf]
        %v1301 = vld [vmem:[#allocation7 + $0x4] sm:$0xf]
        %v1302 = vld [vmem:[#allocation7 + $0x8] sm:$0xf]
        %v1303 = vld [vmem:[#allocation7 + $0xc] sm:$0xf]
        %v1304 = vld [vmem:[#allocation7 + $0x10] sm:$0xf]
        %v1305 = vld [vmem:[#allocation7 + $0x14] sm:$0xf]
        %v1306 = vld [vmem:[#allocation7 + $0x18] sm:$0xf]
        %v1307 = vld [vmem:[#allocation7 + $0x1c] sm:$0xf]
        %v1308 = vld [vmem:[#allocation7 + $0x20] sm:$0xf]
        %v1309 = vld [vmem:[#allocation7 + $0x24] sm:$0xf]
        %v1310 = vld [vmem:[#allocation7 + $0x28] sm:$0xf]
        %v1311 = vld [vmem:[#allocation7 + $0x2c] sm:$0xf]
        %v1312 = vld [vmem:[#allocation7 + $0x30] sm:$0xf]
        %v1313 = vld [vmem:[#allocation7 + $0x34] sm:$0xf]
        %v1314 = vld [vmem:[#allocation7 + $0x38] sm:$0xf]
        %v1315 = vld [vmem:[#allocation7 + $0x3c] sm:$0xf]
        %v1316 = vld [vmem:[%s4] sm:$0x1]
        %v1318 = vlaneseq
        %v1319 = vshrl.u32 %v1318, 7
        %v1320 = vsub.s32 0, %v1319
        %v1321 = vrot.slane %v1316, %v1320
        %v1339 = vunpack.c.l.b16 %v1300
        %v1340 = vunpack.c.l.b16 %v1301
        %v1341 = vunpack.c.l.b16 %v1302
        %v1342 = vunpack.c.l.b16 %v1303
        %v1343 = vunpack.c.l.b16 %v1304
        %v1344 = vunpack.c.l.b16 %v1305
        %v1345 = vunpack.c.l.b16 %v1306
        %v1346 = vunpack.c.l.b16 %v1307
        %v1347 = vunpack.c.l.b16 %v1308
        %v1348 = vunpack.c.l.b16 %v1309
        %v1349 = vunpack.c.l.b16 %v1310
        %v1350 = vunpack.c.l.b16 %v1311
        %v1351 = vunpack.c.l.b16 %v1312
        %v1352 = vunpack.c.l.b16 %v1313
        %v1353 = vunpack.c.l.b16 %v1314
        %v1354 = vunpack.c.l.b16 %v1315
        %v1355 = vpack.c.b16 %v1340, %v1339
        %v1356 = vpack.c.b16 %v1342, %v1341
        %v1357 = vpack.c.b16 %v1344, %v1343
        %v1358 = vpack.c.b16 %v1346, %v1345
        %v1359 = vpack.c.b16 %v1348, %v1347
        %v1360 = vpack.c.b16 %v1350, %v1349
        %v1361 = vpack.c.b16 %v1352, %v1351
        %v1362 = vpack.c.b16 %v1354, %v1353
        %1371 = vmatprep.subr.bf16.mxu0 0
        %1372 = vmatpush1.bf16.msra.mxu0 %v1355
        %1373 = vmatprep.subr.bf16.mxu0 0
        %1374 = vmatpush1.bf16.msra.mxu0 %v1356
        %1375 = vmatprep.subr.bf16.mxu0 0
        %1376 = vmatpush1.bf16.msra.mxu0 %v1357
        %1377 = vmatprep.subr.bf16.mxu0 0
        %1378 = vmatpush1.bf16.msra.mxu0 %v1358
        %1379 = vmatprep.subr.bf16.mxu0 0
        %1380 = vmatpush1.bf16.msra.mxu0 %v1359
        %1381 = vmatprep.subr.bf16.mxu0 0
        %1382 = vmatpush1.bf16.msra.mxu0 %v1360
        %1383 = vmatprep.subr.bf16.mxu0 0
        %1384 = vmatpush1.bf16.msra.mxu0 %v1361
        %1385 = vmatprep.subr.bf16.mxu0 0
        %1386 = vmatpush1.bf16.msra.mxu0 %v1362
        %1387 = vmatprep.subr.bf16.mxu0 0
        %1388 = vmatpush1.bf16.msra.mxu0 0
        %1389 = vmatprep.subr.bf16.mxu0 0
        %1390 = vmatpush1.bf16.msra.mxu0 0
        %1391 = vmatprep.subr.bf16.mxu0 0
        %1392 = vmatpush1.bf16.msra.mxu0 0
        %1393 = vmatprep.subr.bf16.mxu0 0
        %1394 = vmatpush1.bf16.msra.mxu0 0
        %1395 = vmatprep.subr.bf16.mxu0 0
        %1396 = vmatpush1.bf16.msra.mxu0 0
        %1397 = vmatprep.subr.bf16.mxu0 0
        %1398 = vmatpush1.bf16.msra.mxu0 0
        %1399 = vmatprep.subr.bf16.mxu0 0
        %1400 = vmatpush1.bf16.msra.mxu0 0
        %1401 = vmatprep.subr.bf16.mxu0 0
        %1402 = vmatpush1.bf16.msra.mxu0 0
        %1403 = vmatprep.mubr.bf16.mxu0 0
        %1404 = vmatmul.mubr.bf16.gmra.mrb[0].mxu0 %v1299
        %v1405 = vpop.f32.mrb[0].mxu0
        %v1406 = vadd.f32 %v1321, %v1405
        %v1407 = vpop.f32.mrb[0].mxu0
        %v1408 = vpop.f32.mrb[0].mxu0
        %v1409 = vadd.f32 %v1321, %v1408
        %v1410 = vpop.f32.mrb[0].mxu0
        %1411 = vdwg.mxu0
        %v1412 = vadd.f32 %v518, %v1406
        %v1413 = vadd.f32 %v519, %v1409
        %v1414 = vld [vmem:[%s5] sm:$0x1]
        %v1415 = vld [vmem:[%s6] sm:$0x1]
        %1416 = vadd.xlane.f32.xlu0 %v1412
        %v1417 = vpop.xlane.xlu0 %1416
        %1418 = vadd.xlane.f32.xlu0 %v1413
        %v1419 = vpop.xlane.xlu0 %1418
        %v1420 = vrcp.pop 128.0
        %v1421 = vmul.f32 %v1417, %v1420
        %v1422 = vmul.f32 %v1419, %v1420
        %v1423 = vsub.f32 %v1412, %v1421
        %v1424 = vsub.f32 %v1413, %v1422
        %v1425 = vmul.f32 %v1423, %v1423
        %v1426 = vmul.f32 %v1424, %v1424
        %1427 = vadd.xlane.f32.xlu0 %v1425
        %v1428 = vpop.xlane.xlu0 %1427
        %1429 = vadd.xlane.f32.xlu0 %v1426
        %v1430 = vpop.xlane.xlu0 %1429
        %v1431 = vmul.f32 %v1428, %v1420
        %v1432 = vmul.f32 %v1430, %v1420
        %v1433 = vadd.f32 %v1431, 1e-05
        %v1434 = vadd.f32 %v1432, 1e-05
        %v1435 = vrsqrt.pop %v1433
        %v1436 = vrsqrt.pop %v1434
        %v1437 = vmul.f32 %v1423, %v1435
        %v1438 = vmul.f32 %v1424, %v1436
        %v1440 = vlaneseq
        %v1441 = vshrl.u32 %v1440, 7
        %v1442 = vsub.s32 0, %v1441
        %v1443 = vrot.slane %v1414, %v1442
        %v1445 = vmul.f32 %v1437, %v1443
        %v1446 = vmul.f32 %v1438, %v1443
        %v1448 = vlaneseq
        %v1449 = vshrl.u32 %v1448, 7
        %v1450 = vsub.s32 0, %v1449
        %v1451 = vrot.slane %v1415, %v1450
        %v1453 = vadd.f32 %v1445, %v1451
        %v1454 = vadd.f32 %v1446, %v1451
        %v1455 = vpack.c.bf16 %v1454, %v1453
        %v1456 = vld [vmem:[#allocation8] sm:$0xf]
        %v1457 = vld [vmem:[#allocation8 + $0x4] sm:$0xf]
        %v1458 = vld [vmem:[#allocation8 + $0x8] sm:$0xf]
        %v1459 = vld [vmem:[#allocation8 + $0xc] sm:$0xf]
        %v1460 = vld [vmem:[#allocation8 + $0x10] sm:$0xf]
        %v1461 = vld [vmem:[#allocation8 + $0x14] sm:$0xf]
        %v1462 = vld [vmem:[#allocation8 + $0x18] sm:$0xf]
        %v1463 = vld [vmem:[#allocation8 + $0x1c] sm:$0xf]
        %v1464 = vld [vmem:[#allocation8 + $0x20] sm:$0xf]
        %v1465 = vld [vmem:[#allocation8 + $0x24] sm:$0xf]
        %v1466 = vld [vmem:[#allocation8 + $0x28] sm:$0xf]
        %v1467 = vld [vmem:[#allocation8 + $0x2c] sm:$0xf]
        %v1468 = vld [vmem:[#allocation8 + $0x30] sm:$0xf]
        %v1469 = vld [vmem:[#allocation8 + $0x34] sm:$0xf]
        %v1470 = vld [vmem:[#allocation8 + $0x38] sm:$0xf]
        %v1471 = vld [vmem:[#allocation8 + $0x3c] sm:$0xf]
        %v1472 = vld [vmem:[%s8] sm:$0x1]
        %v1474 = vlaneseq
        %v1475 = vshrl.u32 %v1474, 7
        %v1476 = vsub.s32 0, %v1475
        %v1477 = vrot.slane %v1472, %v1476
        %v1495 = vunpack.c.l.b16 %v1456
        %v1496 = vunpack.c.l.b16 %v1457
        %v1497 = vunpack.c.l.b16 %v1458
        %v1498 = vunpack.c.l.b16 %v1459
        %v1499 = vunpack.c.l.b16 %v1460
        %v1500 = vunpack.c.l.b16 %v1461
        %v1501 = vunpack.c.l.b16 %v1462
        %v1502 = vunpack.c.l.b16 %v1463
        %v1503 = vunpack.c.l.b16 %v1464
        %v1504 = vunpack.c.l.b16 %v1465
        %v1505 = vunpack.c.l.b16 %v1466
        %v1506 = vunpack.c.l.b16 %v1467
        %v1507 = vunpack.c.l.b16 %v1468
        %v1508 = vunpack.c.l.b16 %v1469
        %v1509 = vunpack.c.l.b16 %v1470
        %v1510 = vunpack.c.l.b16 %v1471
        %v1511 = vpack.c.b16 %v1496, %v1495
        %v1512 = vpack.c.b16 %v1498, %v1497
        %v1513 = vpack.c.b16 %v1500, %v1499
        %v1514 = vpack.c.b16 %v1502, %v1501
        %v1515 = vpack.c.b16 %v1504, %v1503
        %v1516 = vpack.c.b16 %v1506, %v1505
        %v1517 = vpack.c.b16 %v1508, %v1507
        %v1518 = vpack.c.b16 %v1510, %v1509
        %1527 = vmatprep.subr.bf16.mxu0 0
        %1528 = vmatpush1.bf16.msra.mxu0 %v1511
        %1529 = vmatprep.subr.bf16.mxu0 0
        %1530 = vmatpush1.bf16.msra.mxu0 %v1512
        %1531 = vmatprep.subr.bf16.mxu0 0
        %1532 = vmatpush1.bf16.msra.mxu0 %v1513
        %1533 = vmatprep.subr.bf16.mxu0 0
        %1534 = vmatpush1.bf16.msra.mxu0 %v1514
        %1535 = vmatprep.subr.bf16.mxu0 0
        %1536 = vmatpush1.bf16.msra.mxu0 %v1515
        %1537 = vmatprep.subr.bf16.mxu0 0
        %1538 = vmatpush1.bf16.msra.mxu0 %v1516
        %1539 = vmatprep.subr.bf16.mxu0 0
        %1540 = vmatpush1.bf16.msra.mxu0 %v1517
        %1541 = vmatprep.subr.bf16.mxu0 0
        %1542 = vmatpush1.bf16.msra.mxu0 %v1518
        %1543 = vmatprep.subr.bf16.mxu0 0
        %1544 = vmatpush1.bf16.msra.mxu0 0
        %1545 = vmatprep.subr.bf16.mxu0 0
        %1546 = vmatpush1.bf16.msra.mxu0 0
        %1547 = vmatprep.subr.bf16.mxu0 0
        %1548 = vmatpush1.bf16.msra.mxu0 0
        %1549 = vmatprep.subr.bf16.mxu0 0
        %1550 = vmatpush1.bf16.msra.mxu0 0
        %1551 = vmatprep.subr.bf16.mxu0 0
        %1552 = vmatpush1.bf16.msra.mxu0 0
        %1553 = vmatprep.subr.bf16.mxu0 0
        %1554 = vmatpush1.bf16.msra.mxu0 0
        %1555 = vmatprep.subr.bf16.mxu0 0
        %1556 = vmatpush1.bf16.msra.mxu0 0
        %1557 = vmatprep.subr.bf16.mxu0 0
        %1558 = vmatpush1.bf16.msra.mxu0 0
        %1559 = vmatprep.mubr.bf16.mxu0 0
        %1560 = vmatmul.mubr.bf16.gmra.mrb[0].mxu0 %v1455
        %v1561 = vpop.f32.mrb[0].mxu0
        %v1562 = vadd.f32 %v1477, %v1561
        %v1563 = vpop.f32.mrb[0].mxu0
        %v1564 = vpop.f32.mrb[0].mxu0
        %v1565 = vadd.f32 %v1477, %v1564
        %v1566 = vpop.f32.mrb[0].mxu0
        %1567 = vdwg.mxu0
        %v1568 = vmax.f32 %v1562, 0.0
        %v1569 = vmax.f32 %v1565, 0.0
        %v1570 = vpack.c.bf16 %v1569, %v1568
        %v1571 = vld [vmem:[#allocation10] sm:$0xf]
        %v1572 = vld [vmem:[#allocation10 + $0x4] sm:$0xf]
        %v1573 = vld [vmem:[#allocation10 + $0x8] sm:$0xf]
        %v1574 = vld [vmem:[#allocation10 + $0xc] sm:$0xf]
        %v1575 = vld [vmem:[#allocation10 + $0x10] sm:$0xf]
        %v1576 = vld [vmem:[#allocation10 + $0x14] sm:$0xf]
        %v1577 = vld [vmem:[#allocation10 + $0x18] sm:$0xf]
        %v1578 = vld [vmem:[#allocation10 + $0x1c] sm:$0xf]
        %v1579 = vld [vmem:[#allocation10 + $0x20] sm:$0xf]
        %v1580 = vld [vmem:[#allocation10 + $0x24] sm:$0xf]
        %v1581 = vld [vmem:[#allocation10 + $0x28] sm:$0xf]
        %v1582 = vld [vmem:[#allocation10 + $0x2c] sm:$0xf]
        %v1583 = vld [vmem:[#allocation10 + $0x30] sm:$0xf]
        %v1584 = vld [vmem:[#allocation10 + $0x34] sm:$0xf]
        %v1585 = vld [vmem:[#allocation10 + $0x38] sm:$0xf]
        %v1586 = vld [vmem:[#allocation10 + $0x3c] sm:$0xf]
        %v1587 = vld [vmem:[%s10] sm:$0x1]
        %v1589 = vlaneseq
        %v1590 = vshrl.u32 %v1589, 7
        %v1591 = vsub.s32 0, %v1590
        %v1592 = vrot.slane %v1587, %v1591
        %v1610 = vunpack.c.l.b16 %v1571
        %v1611 = vunpack.c.l.b16 %v1572
        %v1612 = vunpack.c.l.b16 %v1573
        %v1613 = vunpack.c.l.b16 %v1574
        %v1614 = vunpack.c.l.b16 %v1575
        %v1615 = vunpack.c.l.b16 %v1576
        %v1616 = vunpack.c.l.b16 %v1577
        %v1617 = vunpack.c.l.b16 %v1578
        %v1618 = vunpack.c.l.b16 %v1579
        %v1619 = vunpack.c.l.b16 %v1580
        %v1620 = vunpack.c.l.b16 %v1581
        %v1621 = vunpack.c.l.b16 %v1582
        %v1622 = vunpack.c.l.b16 %v1583
        %v1623 = vunpack.c.l.b16 %v1584
        %v1624 = vunpack.c.l.b16 %v1585
        %v1625 = vunpack.c.l.b16 %v1586
        %v1626 = vpack.c.b16 %v1611, %v1610
        %v1627 = vpack.c.b16 %v1613, %v1612
        %v1628 = vpack.c.b16 %v1615, %v1614
        %v1629 = vpack.c.b16 %v1617, %v1616
        %v1630 = vpack.c.b16 %v1619, %v1618
        %v1631 = vpack.c.b16 %v1621, %v1620
        %v1632 = vpack.c.b16 %v1623, %v1622
        %v1633 = vpack.c.b16 %v1625, %v1624
        %1642 = vmatprep.subr.bf16.mxu0 0
        %1643 = vmatpush1.bf16.msra.mxu0 %v1626
        %1644 = vmatprep.subr.bf16.mxu0 0
        %1645 = vmatpush1.bf16.msra.mxu0 %v1627
        %1646 = vmatprep.subr.bf16.mxu0 0
        %1647 = vmatpush1.bf16.msra.mxu0 %v1628
        %1648 = vmatprep.subr.bf16.mxu0 0
        %1649 = vmatpush1.bf16.msra.mxu0 %v1629
        %1650 = vmatprep.subr.bf16.mxu0 0
        %1651 = vmatpush1.bf16.msra.mxu0 %v1630
        %1652 = vmatprep.subr.bf16.mxu0 0
        %1653 = vmatpush1.bf16.msra.mxu0 %v1631
        %1654 = vmatprep.subr.bf16.mxu0 0
        %1655 = vmatpush1.bf16.msra.mxu0 %v1632
        %1656 = vmatprep.subr.bf16.mxu0 0
        %1657 = vmatpush1.bf16.msra.mxu0 %v1633
        %1658 = vmatprep.subr.bf16.mxu0 0
        %1659 = vmatpush1.bf16.msra.mxu0 0
        %1660 = vmatprep.subr.bf16.mxu0 0
        %1661 = vmatpush1.bf16.msra.mxu0 0
        %1662 = vmatprep.subr.bf16.mxu0 0
        %1663 = vmatpush1.bf16.msra.mxu0 0
        %1664 = vmatprep.subr.bf16.mxu0 0
        %1665 = vmatpush1.bf16.msra.mxu0 0
        %1666 = vmatprep.subr.bf16.mxu0 0
        %1667 = vmatpush1.bf16.msra.mxu0 0
        %1668 = vmatprep.subr.bf16.mxu0 0
        %1669 = vmatpush1.bf16.msra.mxu0 0
        %1670 = vmatprep.subr.bf16.mxu0 0
        %1671 = vmatpush1.bf16.msra.mxu0 0
        %1672 = vmatprep.subr.bf16.mxu0 0
        %1673 = vmatpush1.bf16.msra.mxu0 0
        %1674 = vmatprep.mubr.bf16.mxu0 0
        %1675 = vmatmul.mubr.bf16.gmra.mrb[0].mxu0 %v1570
        %v1676 = vpop.f32.mrb[0].mxu0
        %v1677 = vadd.f32 %v1592, %v1676
        %v1678 = vpop.f32.mrb[0].mxu0
        %v1679 = vpop.f32.mrb[0].mxu0
        %v1680 = vadd.f32 %v1592, %v1679
        %v1681 = vpop.f32.mrb[0].mxu0
        %1682 = vdwg.mxu0
        %v1683 = vadd.f32 %v1453, %v1677
        %v1684 = vadd.f32 %v1454, %v1680
        %v1685 = vld [vmem:[%s11] sm:$0x1]
        %v1686 = vld [vmem:[%s12] sm:$0x1]
        %1687 = vadd.xlane.f32.xlu0 %v1683
        %v1688 = vpop.xlane.xlu0 %1687
        %1689 = vadd.xlane.f32.xlu0 %v1684
        %v1690 = vpop.xlane.xlu0 %1689
        %v1691 = vmul.f32 %v1688, %v1420
        %v1692 = vmul.f32 %v1690, %v1420
        %v1693 = vsub.f32 %v1683, %v1691
        %v1694 = vsub.f32 %v1684, %v1692
        %v1695 = vmul.f32 %v1693, %v1693
        %v1696 = vmul.f32 %v1694, %v1694
        %1697 = vadd.xlane.f32.xlu0 %v1695
        %v1698 = vpop.xlane.xlu0 %1697
        %1699 = vadd.xlane.f32.xlu0 %v1696
        %v1700 = vpop.xlane.xlu0 %1699
        %v1701 = vmul.f32 %v1698, %v1420
        %v1702 = vmul.f32 %v1700, %v1420
        %v1703 = vadd.f32 %v1701, 1e-05
        %v1704 = vadd.f32 %v1702, 1e-05
        %v1705 = vrsqrt.pop %v1703
        %v1706 = vrsqrt.pop %v1704
        %v1707 = vmul.f32 %v1693, %v1705
        %v1708 = vmul.f32 %v1694, %v1706
        %v1710 = vlaneseq
        %v1711 = vshrl.u32 %v1710, 7
        %v1712 = vsub.s32 0, %v1711
        %v1713 = vrot.slane %v1685, %v1712
        %v1715 = vmul.f32 %v1707, %v1713
        %v1716 = vmul.f32 %v1708, %v1713
        %v1718 = vlaneseq
        %v1719 = vshrl.u32 %v1718, 7
        %v1720 = vsub.s32 0, %v1719
        %v1721 = vrot.slane %v1686, %v1720
        %v1723 = vadd.f32 %v1715, %v1721
        %v1724 = vadd.f32 %v1716, %v1721
        %1725 = vst [vmem:[%s516] sm:$0xff] %v1723
        %1726 = vst [vmem:[%s516 + $0x8] sm:$0xff] %v1724
        %s1727 = sand.u32 %s318, 1
        %s1728 = scalar_lea.sflag [#allocation4], %s1727
        %s1729 = sand.u32 %s318, 1
        %s1730 = smul.addr %s1729, 16
        %s1731 = scalar_lea.vmem [#allocation11], %s1730
        // Predicated region
        $region93: #{tpu_custom_call.1} parent=71 // pred_check
          %p1732 = pneg %p328
        $region94: #{tpu_custom_call.1} parent=71 // pred_check_branch
          %1734 = sbr.rel (%p1732) target = $region96
        $region95: #{tpu_custom_call.1} parent=71 // pred_region
          %s1736 = ssub.s32 256, 256
          %1737 = vsyncadd %s1728, %s1736
          %s1738 = smul.addr %s32, 2
          %s1739 = smul.addr %s1738, 128
          %s1740 = scalar_lea.hbm %s13, %s1739
          %s1741 = sshll.u32 %s1731, 4
          %s1742 = int_to_ptr.vmem [resolvable:$true] %s1741
          %1747 = dma.vmem_to_hbm [thread:$0]  %s1742, 256, %s1740, %s1728, 128, 128, 8
        $region96: #{tpu_custom_call.1} parent=71 // pred_fallthru
          _
      $region72: #{tpu_custom_call.1} parent=5 // pred_fallthru
        _
      %p1748 = scmp.le.s32.totalorder 2, %s27
      // Predicated region
      $region97: #{tpu_custom_call.1} parent=5 // pred_check
        %p1749 = pneg %p1748
      $region98: #{tpu_custom_call.1} parent=5 // pred_check_branch
        %1751 = sbr.rel (%p1749) target = $region100
      $region99: #{tpu_custom_call.1} parent=5 // pred_region
        %s1752 = ssub.s32 %s27, 2
        // Predicated region
        $region101: #{tpu_custom_call.1} parent=99 // pred_check
          %p1753 = pneg %p334
        $region102: #{tpu_custom_call.1} parent=99 // pred_check_branch
          %1755 = sbr.rel (%p1753) target = $region104
        $region103: #{tpu_custom_call.1} parent=99 // pred_region
          %s1756 = sand.u32 %s319, 1
          %s1757 = scalar_lea.sflag [#allocation4], %s1756
          %s1758 = sand.u32 %s319, 1
          %s1759 = smul.addr %s1758, 16
          %s1760 = scalar_lea.vmem [#allocation11], %s1759
          %1761 = dma.done %s1757, 256
        $region104: #{tpu_custom_call.1} parent=99 // pred_fallthru
          _
      $region100: #{tpu_custom_call.1} parent=5 // pred_fallthru
        _
    $region6: #{tpu_custom_call.1} parent=1 // loop_footer
      %s31 = sadd.s32 1, %s27
    $region7: #{tpu_custom_call.1} parent=1 // loop_footer_branch
      %26 = sbr.rel target = $region3
    $region8: #{tpu_custom_call.1} parent=1 // loop_exit
      _
    %1762 = vsyncpa [#allocation3], 1
    %s1763 = scalar_lea.sflag [#allocation3], 1
    %1764 = vsyncpa %s1763, 1
    %1765 = vsyncpa [#allocation6], 1
    %1766 = vsyncpa [#allocation9], 1
    %1767 = vsyncpa [#allocation4], 1
    %s1768 = scalar_lea.sflag [#allocation4], 1
    %1769 = vsyncpa %s1768, 1

// kernel: tpu_custom_call.1
$region0: #{tpu_custom_call.1}
  #allocation0 [shape = 'u32[]', space=smem, size = 0x4, offset = 0x4, fixed_abs, tag = 'smem constant byte address 0x4 - core index']
  #allocation1 [shape = 'u32[144,128]{1,0:T(1,128)}', space=vmem, size = 0x12000, scoped, tag = 'internal scratch']
  %s0 = inlined_call_operand.hbm [shape: f32[4,16,128], index: 0, kind: input, shape index: {}]
  %s1 = inlined_call_operand.hbm [shape: bf16[128,384], index: 1, kind: input, shape index: {}]
  %s2 = inlined_call_operand.vmem [shape: f32[1,384], index: 2, kind: input, shape index: {}]
  %s3 = inlined_call_operand.hbm [shape: bf16[128,128], index: 3, kind: input, shape index: {}]
  %s4 = inlined_call_operand.vmem [shape: f32[1,128], index: 4, kind: input, shape index: {}]
  %s5 = inlined_call_operand.vmem [shape: f32[1,128], index: 5, kind: input, shape index: {}]
  %s6 = inlined_call_operand.vmem [shape: f32[1,128], index: 6, kind: input, shape index: {}]
  %s7 = inlined_call_operand.hbm [shape: bf16[128,128], index: 7, kind: input, shape index: {}]
  %s8 = inlined_call_operand.vmem [shape: f32[1,128], index: 8, kind: input, shape index: {}]
  %s9 = inlined_call_operand.hbm [shape: bf16[128,128], index: 9, kind: input, shape index: {}]
  %s10 = inlined_call_operand.vmem [shape: f32[1,128], index: 10, kind: input, shape index: {}]
  %s11 = inlined_call_operand.vmem [shape: f32[1,128], index: 11, kind: input, shape index: {}]
  %s12 = inlined_call_operand.vmem [shape: f32[1,128], index: 12, kind: input, shape index: {}]
  %s13 = inlined_call_operand.hbm [shape: f32[4,16,128], index: 13, kind: output, shape index: {}]
  %s14 = sld [smem:[#allocation0]]
  $region105: #{tpu_custom_call.1} parent=0
    _
  %s16 = ssub.s32 1, %s14
  %s17 = scalar_select 0, %s16, %s14
  $region1: #{tpu_custom_call.1} parent=0
    #allocation2 [shape = 'u8[16384]{0}', space=vmem, size = 0x4000, scoped, tag = 'input window, operand 0']
    #allocation3 [shape = 's32[2]{0}', space=sflag, size = 0x8, scoped, tag = 'scoped memory for tpu_custom_call.1']
    #allocation4 [shape = 's32[2]{0}', space=sflag, size = 0x8, scoped, tag = 'scoped memory for tpu_custom_call.1']
    #allocation5 [shape = 'u8[98304]{0}', space=vmem, size = 0x18000, scoped, tag = 'input window, operand 1, single buffered']
    #allocation6 [shape = 's32[1]{0}', space=sflag, size = 0x4, scoped, tag = 'scoped memory for tpu_custom_call.1']
    #allocation7 [shape = 'u8[32768]{0}', space=vmem, size = 0x8000, scoped, tag = 'input window, operand 3, single buffered']
    #allocation8 [shape = 'u8[32768]{0}', space=vmem, size = 0x8000, scoped, tag = 'input window, operand 7, single buffered']
    #allocation9 [shape = 's32[1]{0}', space=sflag, size = 0x4, scoped, tag = 'scoped memory for tpu_custom_call.1']
    #allocation10 [shape = 'u8[32768]{0}', space=vmem, size = 0x8000, scoped, tag = 'input window, operand 9, single buffered']
    #allocation11 [shape = 'u8[16384]{0}', space=vmem, size = 0x4000, scoped, tag = 'output window, operand 0']
    %18 = vsyncpa [#allocation3], 0
    %s19 = scalar_lea.sflag [#allocation3], 1
    %20 = vsyncpa %s19, 0
    %21 = vsyncpa [#allocation6], 0
    %22 = vsyncpa [#allocation9], 0
    %23 = vsyncpa [#allocation4], 0
    %s24 = scalar_lea.sflag [#allocation4], 1
    %25 = vsyncpa %s24, 0
    loop: start=0, step=1, limit=6
    $region2: #{tpu_custom_call.1} parent=1 // loop_pre_header
      _
    $region3: #{tpu_custom_call.1} parent=1 // loop_header
      %s27 = sphi 0, %s31
      %p28 = scmp.ge.s32.totalorder %s27, 6
      %s37 = sphi 0, %s39
      %s40 = sphi 0, %s37
      %s41 = sphi 0, %s40
      %s57 = sphi 0, %s41
      %s61 = sphi 0, %s61
      %s63 = sphi 0, %s61
      %s64 = sphi 0, %s63
      %s78 = sphi 0, %s64
      %s82 = sphi 0, %s82
      %s84 = sphi 0, %s82
      %s85 = sphi 0, %s84
      %s99 = sphi 0, %s85
      %s103 = sphi 0, %s103
      %s105 = sphi 0, %s103
      %s106 = sphi 0, %s105
      %s120 = sphi 0, %s106
      %s124 = sphi 0, %s124
      %s126 = sphi 0, %s124
      %s127 = sphi 0, %s126
      %s141 = sphi 0, %s127
      %s145 = sphi 0, %s145
      %s147 = sphi 0, %s145
      %s148 = sphi 0, %s147
      %s162 = sphi 0, %s148
      %s166 = sphi 0, %s166
      %s168 = sphi 0, %s166
      %s169 = sphi 0, %s168
      %s183 = sphi 0, %s169
      %s187 = sphi 0, %s187
      %s189 = sphi 0, %s187
      %s190 = sphi 0, %s189
      %s204 = sphi 0, %s190
      %s208 = sphi 0, %s208
      %s210 = sphi 0, %s208
      %s211 = sphi 0, %s210
      %s225 = sphi 0, %s211
      %s229 = sphi 0, %s229
      %s231 = sphi 0, %s229
      %s232 = sphi 0, %s231
      %s246 = sphi 0, %s232
      %s250 = sphi 0, %s250
      %s252 = sphi 0, %s250
      %s253 = sphi 0, %s252
      %s267 = sphi 0, %s253
      %s271 = sphi 0, %s271
      %s273 = sphi 0, %s271
      %s274 = sphi 0, %s273
      %s288 = sphi 0, %s274
      %s292 = sphi 0, %s292
      %s294 = sphi 0, %s292
      %s295 = sphi 0, %s294
      %s309 = sphi 0, %s295
      %s315 = sphi 0, %s317
      %s318 = sphi 0, %s315
      %s319 = sphi 0, %s318
      %s335 = sphi 0, %s319
    $region4: #{tpu_custom_call.1} parent=1 // loop_header_branch
      %30 = sbr.rel (%p28) target = $region8
    $region5: #{tpu_custom_call.1} parent=1 // loop_body
      %s32 = ssub.s32 %s27, 1
      %s33 = ssub.s32 %s27, 2
      %s34 = sadd.s32 %s27, 1
      %s35 = ssub.s32 %s27, %s34
      %p36 = scmp.eq.s32.totalorder %s35, 0
      %s38 = sadd.s32 %s37, 1
      %s39 = scalar_select %p36, %s37, %s38
      %p42 = pneg %p36
      %p43 = scmp.eq.s32.totalorder %s27, 3
      %p44 = por %p42, %p43
      %p45 = scmp.ne.s32.totalorder %s37, %s40
      %p46 = scmp.eq.s32.totalorder %s27, 0
      %p47 = por %p45, %p46
      %p48 = scmp.ne.s32.totalorder %s37, %s40
      %p49 = scmp.eq.s32.totalorder %s32, 3
      %p50 = por %p48, %p49
      %p51 = scmp.ne.s32.totalorder %s40, %s41
      %p52 = scmp.eq.s32.totalorder %s32, 0
      %p53 = por %p51, %p52
      %p54 = scmp.ne.s32.totalorder %s40, %s41
      %p55 = scmp.eq.s32.totalorder %s33, 3
      %p56 = por %p54, %p55
      %p58 = scmp.ne.s32.totalorder %s41, %s57
      %p59 = scmp.eq.s32.totalorder %s33, 0
      %p60 = por %p58, %p59
      %s62 = sadd.s32 %s61, 1
      %p65 = scmp.eq.s32.totalorder %s27, 3
      %p66 = scmp.ne.s32.totalorder %s61, %s63
      %p67 = scmp.eq.s32.totalorder %s27, 0
      %p68 = por %p66, %p67
      %p69 = scmp.ne.s32.totalorder %s61, %s63
      %p70 = scmp.eq.s32.totalorder %s32, 3
      %p71 = por %p69, %p70
      %p72 = scmp.ne.s32.totalorder %s63, %s64
      %p73 = scmp.eq.s32.totalorder %s32, 0
      %p74 = por %p72, %p73
      %p75 = scmp.ne.s32.totalorder %s63, %s64
      %p76 = scmp.eq.s32.totalorder %s33, 3
      %p77 = por %p75, %p76
      %p79 = scmp.ne.s32.totalorder %s64, %s78
      %p80 = scmp.eq.s32.totalorder %s33, 0
      %p81 = por %p79, %p80
      %s83 = sadd.s32 %s82, 1
      %p86 = scmp.eq.s32.totalorder %s27, 3
      %p87 = scmp.ne.s32.totalorder %s82, %s84
      %p88 = scmp.eq.s32.totalorder %s27, 0
      %p89 = por %p87, %p88
      %p90 = scmp.ne.s32.totalorder %s82, %s84
      %p91 = scmp.eq.s32.totalorder %s32, 3
      %p92 = por %p90, %p91
      %p93 = scmp.ne.s32.totalorder %s84, %s85
      %p94 = scmp.eq.s32.totalorder %s32, 0
      %p95 = por %p93, %p94
      %p96 = scmp.ne.s32.totalorder %s84, %s85
      %p97 = scmp.eq.s32.totalorder %s33, 3
      %p98 = por %p96, %p97
      %p100 = scmp.ne.s32.totalorder %s85, %s99
      %p101 = scmp.eq.s32.totalorder %s33, 0
      %p102 = por %p100, %p101
      %s104 = sadd.s32 %s103, 1
      %p107 = scmp.eq.s32.totalorder %s27, 3
      %p108 = scmp.ne.s32.totalorder %s103, %s105
      %p109 = scmp.eq.s32.totalorder %s27, 0
      %p110 = por %p108, %p109
      %p111 = scmp.ne.s32.totalorder %s103, %s105
      %p112 = scmp.eq.s32.totalorder %s32, 3
      %p113 = por %p111, %p112
      %p114 = scmp.ne.s32.totalorder %s105, %s106
      %p115 = scmp.eq.s32.totalorder %s32, 0
      %p116 = por %p114, %p115
      %p117 = scmp.ne.s32.totalorder %s105, %s106
      %p118 = scmp.eq.s32.totalorder %s33, 3
      %p119 = por %p117, %p118
      %p121 = scmp.ne.s32.totalorder %s106, %s120
      %p122 = scmp.eq.s32.totalorder %s33, 0
      %p123 = por %p121, %p122
      %s125 = sadd.s32 %s124, 1
      %p128 = scmp.eq.s32.totalorder %s27, 3
      %p129 = scmp.ne.s32.totalorder %s124, %s126
      %p130 = scmp.eq.s32.totalorder %s27, 0
      %p131 = por %p129, %p130
      %p132 = scmp.ne.s32.totalorder %s124, %s126
      %p133 = scmp.eq.s32.totalorder %s32, 3
      %p134 = por %p132, %p133
      %p135 = scmp.ne.s32.totalorder %s126, %s127
      %p136 = scmp.eq.s32.totalorder %s32, 0
      %p137 = por %p135, %p136
      %p138 = scmp.ne.s32.totalorder %s126, %s127
      %p139 = scmp.eq.s32.totalorder %s33, 3
      %p140 = por %p138, %p139
      %p142 = scmp.ne.s32.totalorder %s127, %s141
      %p143 = scmp.eq.s32.totalorder %s33, 0
      %p144 = por %p142, %p143
      %s146 = sadd.s32 %s145, 1
      %p149 = scmp.eq.s32.totalorder %s27, 3
      %p150 = scmp.ne.s32.totalorder %s145, %s147
      %p151 = scmp.eq.s32.totalorder %s27, 0
      %p152 = por %p150, %p151
      %p153 = scmp.ne.s32.totalorder %s145, %s147
      %p154 = scmp.eq.s32.totalorder %s32, 3
      %p155 = por %p153, %p154
      %p156 = scmp.ne.s32.totalorder %s147, %s148
      %p157 = scmp.eq.s32.totalorder %s32, 0
      %p158 = por %p156, %p157
      %p159 = scmp.ne.s32.totalorder %s147, %s148
      %p160 = scmp.eq.s32.totalorder %s33, 3
      %p161 = por %p159, %p160
      %p163 = scmp.ne.s32.totalorder %s148, %s162
      %p164 = scmp.eq.s32.totalorder %s33, 0
      %p165 = por %p163, %p164
      %s167 = sadd.s32 %s166, 1
      %p170 = scmp.eq.s32.totalorder %s27, 3
      %p171 = scmp.ne.s32.totalorder %s166, %s168
      %p172 = scmp.eq.s32.totalorder %s27, 0
      %p173 = por %p171, %p172
      %p174 = scmp.ne.s32.totalorder %s166, %s168
      %p175 = scmp.eq.s32.totalorder %s32, 3
      %p176 = por %p174, %p175
      %p177 = scmp.ne.s32.totalorder %s168, %s169
      %p178 = scmp.eq.s32.totalorder %s32, 0
      %p179 = por %p177, %p178
      %p180 = scmp.ne.s32.totalorder %s168, %s169
      %p181 = scmp.eq.s32.totalorder %s33, 3
      %p182 = por %p180, %p181
      %p184 = scmp.ne.s32.totalorder %s169, %s183
      %p185 = scmp.eq.s32.totalorder %s33, 0
      %p186 = por %p184, %p185
      %s188 = sadd.s32 %s187, 1
      %p191 = scmp.eq.s32.totalorder %s27, 3
      %p192 = scmp.ne.s32.totalorder %s187, %s189
      %p193 = scmp.eq.s32.totalorder %s27, 0
      %p194 = por %p192, %p193
      %p195 = scmp.ne.s32.totalorder %s187, %s189
      %p196 = scmp.eq.s32.totalorder %s32, 3
      %p197 = por %p195, %p196
      %p198 = scmp.ne.s32.totalorder %s189, %s190
      %p199 = scmp.eq.s32.totalorder %s32, 0
      %p200 = por %p198, %p199
      %p201 = scmp.ne.s32.totalorder %s189, %s190
      %p202 = scmp.eq.s32.totalorder %s33, 3
      %p203 = por %p201, %p202
      %p205 = scmp.ne.s32.totalorder %s190, %s204
      %p206 = scmp.eq.s32.totalorder %s33, 0
      %p207 = por %p205, %p206
      %s209 = sadd.s32 %s208, 1
      %p212 = scmp.eq.s32.totalorder %s27, 3
      %p213 = scmp.ne.s32.totalorder %s208, %s210
      %p214 = scmp.eq.s32.totalorder %s27, 0
      %p215 = por %p213, %p214
      %p216 = scmp.ne.s32.totalorder %s208, %s210
      %p217 = scmp.eq.s32.totalorder %s32, 3
      %p218 = por %p216, %p217
      %p219 = scmp.ne.s32.totalorder %s210, %s211
      %p220 = scmp.eq.s32.totalorder %s32, 0
      %p221 = por %p219, %p220
      %p222 = scmp.ne.s32.totalorder %s210, %s211
      %p223 = scmp.eq.s32.totalorder %s33, 3
      %p224 = por %p222, %p223
      %p226 = scmp.ne.s32.totalorder %s211, %s225
      %p227 = scmp.eq.s32.totalorder %s33, 0
      %p228 = por %p226, %p227
      %s230 = sadd.s32 %s229, 1
      %p233 = scmp.eq.s32.totalorder %s27, 3
      %p234 = scmp.ne.s32.totalorder %s229, %s231
      %p235 = scmp.eq.s32.totalorder %s27, 0
      %p236 = por %p234, %p235
      %p237 = scmp.ne.s32.totalorder %s229, %s231
      %p238 = scmp.eq.s32.totalorder %s32, 3
      %p239 = por %p237, %p238
      %p240 = scmp.ne.s32.totalorder %s231, %s232
      %p241 = scmp.eq.s32.totalorder %s32, 0
      %p242 = por %p240, %p241
      %p243 = scmp.ne.s32.totalorder %s231, %s232
      %p244 = scmp.eq.s32.totalorder %s33, 3
      %p245 = por %p243, %p244
      %p247 = scmp.ne.s32.totalorder %s232, %s246
      %p248 = scmp.eq.s32.totalorder %s33, 0
      %p249 = por %p247, %p248
      %s251 = sadd.s32 %s250, 1
      %p254 = scmp.eq.s32.totalorder %s27, 3
      %p255 = scmp.ne.s32.totalorder %s250, %s252
      %p256 = scmp.eq.s32.totalorder %s27, 0
      %p257 = por %p255, %p256
      %p258 = scmp.ne.s32.totalorder %s250, %s252
      %p259 = scmp.eq.s32.totalorder %s32, 3
      %p260 = por %p258, %p259
      %p261 = scmp.ne.s32.totalorder %s252, %s253
      %p262 = scmp.eq.s32.totalorder %s32, 0
      %p263 = por %p261, %p262
      %p264 = scmp.ne.s32.totalorder %s252, %s253
      %p265 = scmp.eq.s32.totalorder %s33, 3
      %p266 = por %p264, %p265
      %p268 = scmp.ne.s32.totalorder %s253, %s267
      %p269 = scmp.eq.s32.totalorder %s33, 0
      %p270 = por %p268, %p269
      %s272 = sadd.s32 %s271, 1
      %p275 = scmp.eq.s32.totalorder %s27, 3
      %p276 = scmp.ne.s32.totalorder %s271, %s273
      %p277 = scmp.eq.s32.totalorder %s27, 0
      %p278 = por %p276, %p277
      %p279 = scmp.ne.s32.totalorder %s271, %s273
      %p280 = scmp.eq.s32.totalorder %s32, 3
      %p281 = por %p279, %p280
      %p282 = scmp.ne.s32.totalorder %s273, %s274
      %p283 = scmp.eq.s32.totalorder %s32, 0
      %p284 = por %p282, %p283
      %p285 = scmp.ne.s32.totalorder %s273, %s274
      %p286 = scmp.eq.s32.totalorder %s33, 3
      %p287 = por %p285, %p286
      %p289 = scmp.ne.s32.totalorder %s274, %s288
      %p290 = scmp.eq.s32.totalorder %s33, 0
      %p291 = por %p289, %p290
      %s293 = sadd.s32 %s292, 1
      %p296 = scmp.eq.s32.totalorder %s27, 3
      %p297 = scmp.ne.s32.totalorder %s292, %s294
      %p298 = scmp.eq.s32.totalorder %s27, 0
      %p299 = por %p297, %p298
      %p300 = scmp.ne.s32.totalorder %s292, %s294
      %p301 = scmp.eq.s32.totalorder %s32, 3
      %p302 = por %p300, %p301
      %p303 = scmp.ne.s32.totalorder %s294, %s295
      %p304 = scmp.eq.s32.totalorder %s32, 0
      %p305 = por %p303, %p304
      %p306 = scmp.ne.s32.totalorder %s294, %s295
      %p307 = scmp.eq.s32.totalorder %s33, 3
      %p308 = por %p306, %p307
      %p310 = scmp.ne.s32.totalorder %s295, %s309
      %p311 = scmp.eq.s32.totalorder %s33, 0
      %p312 = por %p310, %p311
      %s313 = ssub.s32 %s27, %s34
      %p314 = scmp.eq.s32.totalorder %s313, 0
      %s316 = sadd.s32 %s315, 1
      %s317 = scalar_select %p314, %s315, %s316
      %p320 = pneg %p314
      %p321 = scmp.eq.s32.totalorder %s27, 3
      %p322 = por %p320, %p321
      %p323 = scmp.ne.s32.totalorder %s315, %s318
      %p324 = scmp.eq.s32.totalorder %s27, 0
      %p325 = por %p323, %p324
      %p326 = scmp.ne.s32.totalorder %s315, %s318
      %p327 = scmp.eq.s32.totalorder %s32, 3
      %p328 = por %p326, %p327
      %p329 = scmp.ne.s32.totalorder %s318, %s319
      %p330 = scmp.eq.s32.totalorder %s32, 0
      %p331 = por %p329, %p330
      %p332 = scmp.ne.s32.totalorder %s318, %s319
      %p333 = scmp.eq.s32.totalorder %s33, 3
      %p334 = por %p332, %p333
      %p336 = scmp.ne.s32.totalorder %s319, %s335
      %p337 = scmp.eq.s32.totalorder %s33, 0
      %p338 = por %p336, %p337
      %p339 = scmp.le.s32.totalorder 1, %s27
      %p340 = scmp.lt.s32.totalorder %s27, 5
      %p341 = pnand %p339, %p340
      %p342 = pneg %p341
      // Predicated region
      $region9: #{tpu_custom_call.1} parent=5 // pred_check
        _
      $region10: #{tpu_custom_call.1} parent=5 // pred_check_branch
        %344 = sbr.rel (%p341) target = $region12
      $region11: #{tpu_custom_call.1} parent=5 // pred_region
        %s345 = ssub.s32 %s27, 1
        // Predicated region
        $region13: #{tpu_custom_call.1} parent=11 // pred_check
          %p346 = pneg %p74
        $region14: #{tpu_custom_call.1} parent=11 // pred_check_branch
          %348 = sbr.rel (%p346) target = $region16
        $region15: #{tpu_custom_call.1} parent=11 // pred_region
          %s350 = ssub.s32 3072, 3072
          %351 = vsyncadd [#allocation6], %s350
          %s352 = sshll.u32 [#allocation5], 4
          %s353 = int_to_ptr.vmem [resolvable:$true] %s352
          %358 = dma.hbm_to_vmem [thread:$0]  %s1, 3072, %s353, [#allocation6], 192, 192, 12
        $region16: #{tpu_custom_call.1} parent=11 // pred_fallthru
          _
        // Predicated region
        $region17: #{tpu_custom_call.1} parent=11 // pred_check
          %p359 = pneg %p95
        $region18: #{tpu_custom_call.1} parent=11 // pred_check_branch
          %361 = sbr.rel (%p359) target = $region20
        $region19: #{tpu_custom_call.1} parent=11 // pred_region
          _
        $region20: #{tpu_custom_call.1} parent=11 // pred_fallthru
          _
        // Predicated region
        $region21: #{tpu_custom_call.1} parent=11 // pred_check
          %p362 = pneg %p116
        $region22: #{tpu_custom_call.1} parent=11 // pred_check_branch
          %364 = sbr.rel (%p362) target = $region24
        $region23: #{tpu_custom_call.1} parent=11 // pred_region
          %s366 = ssub.s32 1024, 1024
          %367 = vsyncadd [#allocation6], %s366
          %s368 = sshll.u32 [#allocation7], 4
          %s369 = int_to_ptr.vmem [resolvable:$true] %s368
          %374 = dma.hbm_to_vmem [thread:$0]  %s3, 1024, %s369, [#allocation6], 64, 64, 4
        $region24: #{tpu_custom_call.1} parent=11 // pred_fallthru
          _
        // Predicated region
        $region25: #{tpu_custom_call.1} parent=11 // pred_check
          %p375 = pneg %p137
        $region26: #{tpu_custom_call.1} parent=11 // pred_check_branch
          %377 = sbr.rel (%p375) target = $region28
        $region27: #{tpu_custom_call.1} parent=11 // pred_region
          _
        $region28: #{tpu_custom_call.1} parent=11 // pred_fallthru
          _
        // Predicated region
        $region29: #{tpu_custom_call.1} parent=11 // pred_check
          %p378 = pneg %p158
        $region30: #{tpu_custom_call.1} parent=11 // pred_check_branch
          %380 = sbr.rel (%p378) target = $region32
        $region31: #{tpu_custom_call.1} parent=11 // pred_region
          _
        $region32: #{tpu_custom_call.1} parent=11 // pred_fallthru
          _
        // Predicated region
        $region33: #{tpu_custom_call.1} parent=11 // pred_check
          %p381 = pneg %p179
        $region34: #{tpu_custom_call.1} parent=11 // pred_check_branch
          %383 = sbr.rel (%p381) target = $region36
        $region35: #{tpu_custom_call.1} parent=11 // pred_region
          _
        $region36: #{tpu_custom_call.1} parent=11 // pred_fallthru
          _
        // Predicated region
        $region37: #{tpu_custom_call.1} parent=11 // pred_check
          %p384 = pneg %p200
        $region38: #{tpu_custom_call.1} parent=11 // pred_check_branch
          %386 = sbr.rel (%p384) target = $region40
        $region39: #{tpu_custom_call.1} parent=11 // pred_region
          %s388 = ssub.s32 1024, 1024
          %389 = vsyncadd [#allocation9], %s388
          %s390 = sshll.u32 [#allocation8], 4
          %s391 = int_to_ptr.vmem [resolvable:$true] %s390
          %396 = dma.hbm_to_vmem [thread:$0]  %s7, 1024, %s391, [#allocation9], 64, 64, 4
        $region40: #{tpu_custom_call.1} parent=11 // pred_fallthru
          _
        // Predicated region
        $region41: #{tpu_custom_call.1} parent=11 // pred_check
          %p397 = pneg %p221
        $region42: #{tpu_custom_call.1} parent=11 // pred_check_branch
          %399 = sbr.rel (%p397) target = $region44
        $region43: #{tpu_custom_call.1} parent=11 // pred_region
          _
        $region44: #{tpu_custom_call.1} parent=11 // pred_fallthru
          _
        // Predicated region
        $region45: #{tpu_custom_call.1} parent=11 // pred_check
          %p400 = pneg %p242
        $region46: #{tpu_custom_call.1} parent=11 // pred_check_branch
          %402 = sbr.rel (%p400) target = $region48
        $region47: #{tpu_custom_call.1} parent=11 // pred_region
          %s404 = ssub.s32 1024, 1024
          %405 = vsyncadd [#allocation9], %s404
          %s406 = sshll.u32 [#allocation10], 4
          %s407 = int_to_ptr.vmem [resolvable:$true] %s406
          %412 = dma.hbm_to_vmem [thread:$0]  %s9, 1024, %s407, [#allocation9], 64, 64, 4
        $region48: #{tpu_custom_call.1} parent=11 // pred_fallthru
          _
        // Predicated region
        $region49: #{tpu_custom_call.1} parent=11 // pred_check
          %p413 = pneg %p263
        $region50: #{tpu_custom_call.1} parent=11 // pred_check_branch
          %415 = sbr.rel (%p413) target = $region52
        $region51: #{tpu_custom_call.1} parent=11 // pred_region
          _
        $region52: #{tpu_custom_call.1} parent=11 // pred_fallthru
          _
        // Predicated region
        $region53: #{tpu_custom_call.1} parent=11 // pred_check
          %p416 = pneg %p284
        $region54: #{tpu_custom_call.1} parent=11 // pred_check_branch
          %418 = sbr.rel (%p416) target = $region56
        $region55: #{tpu_custom_call.1} parent=11 // pred_region
          _
        $region56: #{tpu_custom_call.1} parent=11 // pred_fallthru
          _
        // Predicated region
        $region57: #{tpu_custom_call.1} parent=11 // pred_check
          %p419 = pneg %p305
        $region58: #{tpu_custom_call.1} parent=11 // pred_check_branch
          %421 = sbr.rel (%p419) target = $region60
        $region59: #{tpu_custom_call.1} parent=11 // pred_region
          _
        $region60: #{tpu_custom_call.1} parent=11 // pred_fallthru
          _
      $region12: #{tpu_custom_call.1} parent=5 // pred_fallthru
        _
      %p422 = scmp.lt.s32.totalorder %s27, 4
      // Predicated region
      $region61: #{tpu_custom_call.1} parent=5 // pred_check
        %p423 = pneg %p422
      $region62: #{tpu_custom_call.1} parent=5 // pred_check_branch
        %425 = sbr.rel (%p423) target = $region64
      $region63: #{tpu_custom_call.1} parent=5 // pred_region
        // Predicated region
        $region65: #{tpu_custom_call.1} parent=63 // pred_check
          %p426 = pneg %p47
        $region66: #{tpu_custom_call.1} parent=63 // pred_check_branch
          %428 = sbr.rel (%p426) target = $region68
        $region67: #{tpu_custom_call.1} parent=63 // pred_region
          %s429 = sand.u32 %s37, 1
          %s430 = scalar_lea.sflag [#allocation3], %s429
          %s431 = sand.u32 %s37, 1
          %s432 = smul.addr %s431, 16
          %s433 = scalar_lea.vmem [#allocation2], %s432
          %s435 = ssub.s32 256, 256
          %436 = vsyncadd %s430, %s435
          %s437 = smul.addr %s27, 2
          %s438 = smul.addr %s437, 128
          %s439 = scalar_lea.hbm %s0, %s438
          %s440 = sshll.u32 %s433, 4
          %s441 = int_to_ptr.vmem [resolvable:$true] %s440
          %446 = dma.hbm_to_vmem [thread:$0]  %s439, 256, %s441, %s430, 128, 128, 8
        $region68: #{tpu_custom_call.1} parent=63 // pred_fallthru
          _
      $region64: #{tpu_custom_call.1} parent=5 // pred_fallthru
        _
      %p447 = scmp.le.s32.totalorder 1, %s27
      %p448 = scmp.lt.s32.totalorder %s27, 5
      %p449 = pnand %p447, %p448
      %p450 = pneg %p449
      // Predicated region
      $region69: #{tpu_custom_call.1} parent=5 // pred_check
        _
      $region70: #{tpu_custom_call.1} parent=5 // pred_check_branch
        %452 = sbr.rel (%p449) target = $region72
      $region71: #{tpu_custom_call.1} parent=5 // pred_region
        %s453 = ssub.s32 %s27, 1
        %s454 = sand.u32 %s40, 1
        %s455 = scalar_lea.sflag [#allocation3], %s454
        %s456 = sand.u32 %s40, 1
        %s457 = smul.addr %s456, 16
        %s458 = scalar_lea.vmem [#allocation2], %s457
        // Predicated region
        $region73: #{tpu_custom_call.1} parent=71 // pred_check
          %p459 = pneg %p53
        $region74: #{tpu_custom_call.1} parent=71 // pred_check_branch
          %461 = sbr.rel (%p459) target = $region76
        $region75: #{tpu_custom_call.1} parent=71 // pred_region
          %462 = dma.done %s455, 256
        $region76: #{tpu_custom_call.1} parent=71 // pred_fallthru
          _
        // Predicated region
        $region77: #{tpu_custom_call.1} parent=71 // pred_check
          %p463 = pneg %p74
        $region78: #{tpu_custom_call.1} parent=71 // pred_check_branch
          %465 = sbr.rel (%p463) target = $region80
        $region79: #{tpu_custom_call.1} parent=71 // pred_region
          %466 = dma.done [#allocation6], 3072
        $region80: #{tpu_custom_call.1} parent=71 // pred_fallthru
          _
        // Predicated region
        $region81: #{tpu_custom_call.1} parent=71 // pred_check
          %p467 = pneg %p116
        $region82: #{tpu_custom_call.1} parent=71 // pred_check_branch
          %469 = sbr.rel (%p467) target = $region84
        $region83: #{tpu_custom_call.1} parent=71 // pred_region
          %470 = dma.done [#allocation6], 1024
        $region84: #{tpu_custom_call.1} parent=71 // pred_fallthru
          _
        // Predicated region
        $region85: #{tpu_custom_call.1} parent=71 // pred_check
          %p471 = pneg %p200
        $region86: #{tpu_custom_call.1} parent=71 // pred_check_branch
          %473 = sbr.rel (%p471) target = $region88
        $region87: #{tpu_custom_call.1} parent=71 // pred_region
          %474 = dma.done [#allocation9], 1024
        $region88: #{tpu_custom_call.1} parent=71 // pred_fallthru
          _
        // Predicated region
        $region89: #{tpu_custom_call.1} parent=71 // pred_check
          %p475 = pneg %p242
        $region90: #{tpu_custom_call.1} parent=71 // pred_check_branch
          %477 = sbr.rel (%p475) target = $region92
        $region91: #{tpu_custom_call.1} parent=71 // pred_region
          %478 = dma.done [#allocation9], 1024
        $region92: #{tpu_custom_call.1} parent=71 // pred_fallthru
          _
        %s479 = sand.u32 %s40, 1
        %s480 = scalar_lea.sflag [#allocation3], %s479
        %s481 = sand.u32 %s40, 1
        %s482 = smul.addr %s481, 16
        %s483 = scalar_lea.vmem [#allocation2], %s482
        %p484 = pneg %p53
        %p485 = pneg %p50
        %p486 = pneg %p74
        %p487 = pneg %p71
        %p488 = pneg %p95
        %p489 = pneg %p92
        %p490 = pneg %p116
        %p491 = pneg %p113
        %p492 = pneg %p137
        %p493 = pneg %p134
        %p494 = pneg %p158
        %p495 = pneg %p155
        %p496 = pneg %p179
        %p497 = pneg %p176
        %p498 = pneg %p200
        %p499 = pneg %p197
        %p500 = pneg %p221
        %p501 = pneg %p218
        %p502 = pneg %p242
        %p503 = pneg %p239
        %p504 = pneg %p263
        %p505 = pneg %p260
        %p506 = pneg %p284
        %p507 = pneg %p281
        %p508 = pneg %p305
        %p509 = pneg %p302
        %p510 = pneg %p331
        %p511 = pneg %p328
        %s512 = sand.u32 %s318, 1
        %s513 = scalar_lea.sflag [#allocation4], %s512
        %s514 = sand.u32 %s318, 1
        %s515 = smul.addr %s514, 16
        %s516 = scalar_lea.vmem [#allocation11], %s515
        %v518 = vld [vmem:[%s458] sm:$0xff]
        %v519 = vld [vmem:[%s458 + $0x8] sm:$0xff]
        %v520 = vpack.c.bf16 %v519, %v518
        %v521 = vld [vmem:[#allocation5] sm:$0xff]
        %v522 = vld [vmem:[#allocation5 + $0x8] sm:$0xf]
        %v523 = vld [vmem:[#allocation5 + $0xc] sm:$0xff]
        %v524 = vld [vmem:[#allocation5 + $0x14] sm:$0xf]
        %v525 = vld [vmem:[#allocation5 + $0x18] sm:$0xff]
        %v526 = vld [vmem:[#allocation5 + $0x20] sm:$0xf]
        %v527 = vld [vmem:[#allocation5 + $0x24] sm:$0xff]
        %v528 = vld [vmem:[#allocation5 + $0x2c] sm:$0xf]
        %v529 = vld [vmem:[#allocation5 + $0x30] sm:$0xff]
        %v530 = vld [vmem:[#allocation5 + $0x38] sm:$0xf]
        %v531 = vld [vmem:[#allocation5 + $0x3c] sm:$0xff]
        %v532 = vld [vmem:[#allocation5 + $0x44] sm:$0xf]
        %v533 = vld [vmem:[#allocation5 + $0x48] sm:$0xff]
        %v534 = vld [vmem:[#allocation5 + $0x50] sm:$0xf]
        %v535 = vld [vmem:[#allocation5 + $0x54] sm:$0xff]
        %v536 = vld [vmem:[#allocation5 + $0x5c] sm:$0xf]
        %v537 = vld [vmem:[#allocation5 + $0x60] sm:$0xff]
        %v538 = vld [vmem:[#allocation5 + $0x68] sm:$0xf]
        %v539 = vld [vmem:[#allocation5 + $0x6c] sm:$0xff]
        %v540 = vld [vmem:[#allocation5 + $0x74] sm:$0xf]
        %v541 = vld [vmem:[#allocation5 + $0x78] sm:$0xff]
        %v542 = vld [vmem:[#allocation5 + $0x80] sm:$0xf]
        %v543 = vld [vmem:[#allocation5 + $0x84] sm:$0xff]
        %v544 = vld [vmem:[#allocation5 + $0x8c] sm:$0xf]
        %v545 = vld [vmem:[#allocation5 + $0x90] sm:$0xff]
        %v546 = vld [vmem:[#allocation5 + $0x98] sm:$0xf]
        %v547 = vld [vmem:[#allocation5 + $0x9c] sm:$0xff]
        %v548 = vld [vmem:[#allocation5 + $0xa4] sm:$0xf]
        %v549 = vld [vmem:[#allocation5 + $0xa8] sm:$0xff]
        %v550 = vld [vmem:[#allocation5 + $0xb0] sm:$0xf]
        %v551 = vld [vmem:[#allocation5 + $0xb4] sm:$0xff]
        %v552 = vld [vmem:[#allocation5 + $0xbc] sm:$0xf]
        %v553 = vld [vmem:[%s2] sm:$0x7]
        %v555 = vlaneseq
        %v556 = vshrl.u32 %v555, 7
        %v557 = vsub.s32 0, %v556
        %v558 = vrot.slane %v553, %v557
        %v559 = vlaneseq
        %v560 = vshrl.u32 %v559, 7
        %v561 = vsub.s32 1, %v560
        %v562 = vrot.slane %v553, %v561
        %v563 = vlaneseq
        %v564 = vshrl.u32 %v563, 7
        %v565 = vsub.s32 2, %v564
        %v566 = vrot.slane %v553, %v565
        %v602 = vunpack.c.l.b16 %v521
        %v603 = vunpack.c.h.b16 %v521
        %v604 = vunpack.c.l.b16 %v522
        %v605 = vunpack.c.l.b16 %v523
        %v606 = vunpack.c.h.b16 %v523
        %v607 = vunpack.c.l.b16 %v524
        %v608 = vunpack.c.l.b16 %v525
        %v609 = vunpack.c.h.b16 %v525
        %v610 = vunpack.c.l.b16 %v526
        %v611 = vunpack.c.l.b16 %v527
        %v612 = vunpack.c.h.b16 %v527
        %v613 = vunpack.c.l.b16 %v528
        %v614 = vunpack.c.l.b16 %v529
        %v615 = vunpack.c.h.b16 %v529
        %v616 = vunpack.c.l.b16 %v530
        %v617 = vunpack.c.l.b16 %v531
        %v618 = vunpack.c.h.b16 %v531
        %v619 = vunpack.c.l.b16 %v532
        %v620 = vunpack.c.l.b16 %v533
        %v621 = vunpack.c.h.b16 %v533
        %v622 = vunpack.c.l.b16 %v534
        %v623 = vunpack.c.l.b16 %v535
        %v624 = vunpack.c.h.b16 %v535
        %v625 = vunpack.c.l.b16 %v536
        %v626 = vunpack.c.l.b16 %v537
        %v627 = vunpack.c.h.b16 %v537
        %v628 = vunpack.c.l.b16 %v538
        %v629 = vunpack.c.l.b16 %v539
        %v630 = vunpack.c.h.b16 %v539
        %v631 = vunpack.c.l.b16 %v540
        %v632 = vunpack.c.l.b16 %v541
        %v633 = vunpack.c.h.b16 %v541
        %v634 = vunpack.c.l.b16 %v542
        %v635 = vunpack.c.l.b16 %v543
        %v636 = vunpack.c.h.b16 %v543
        %v637 = vunpack.c.l.b16 %v544
        %v638 = vunpack.c.l.b16 %v545
        %v639 = vunpack.c.h.b16 %v545
        %v640 = vunpack.c.l.b16 %v546
        %v641 = vunpack.c.l.b16 %v547
        %v642 = vunpack.c.h.b16 %v547
        %v643 = vunpack.c.l.b16 %v548
        %v644 = vunpack.c.l.b16 %v549
        %v645 = vunpack.c.h.b16 %v549
        %v646 = vunpack.c.l.b16 %v550
        %v647 = vunpack.c.l.b16 %v551
        %v648 = vunpack.c.h.b16 %v551
        %v649 = vunpack.c.l.b16 %v552
        %v650 = vpack.c.b16 %v605, %v602
        %v651 = vpack.c.b16 %v606, %v603
        %v652 = vpack.c.b16 %v607, %v604
        %v653 = vpack.c.b16 %v611, %v608
        %v654 = vpack.c.b16 %v612, %v609
        %v655 = vpack.c.b16 %v613, %v610
        %v656 = vpack.c.b16 %v617, %v614
        %v657 = vpack.c.b16 %v618, %v615
        %v658 = vpack.c.b16 %v619, %v616
        %v659 = vpack.c.b16 %v623, %v620
        %v660 = vpack.c.b16 %v624, %v621
        %v661 = vpack.c.b16 %v625, %v622
        %v662 = vpack.c.b16 %v629, %v626
        %v663 = vpack.c.b16 %v630, %v627
        %v664 = vpack.c.b16 %v631, %v628
        %v665 = vpack.c.b16 %v635, %v632
        %v666 = vpack.c.b16 %v636, %v633
        %v667 = vpack.c.b16 %v637, %v634
        %v668 = vpack.c.b16 %v641, %v638
        %v669 = vpack.c.b16 %v642, %v639
        %v670 = vpack.c.b16 %v643, %v640
        %v671 = vpack.c.b16 %v647, %v644
        %v672 = vpack.c.b16 %v648, %v645
        %v673 = vpack.c.b16 %v649, %v646
        %698 = vmatprep.subr.bf16.mxu0 %v651
        %699 = vmatpush1.bf16.msra.mxu0 %v650
        %700 = vmatprep.subr.bf16.mxu0 %v654
        %701 = vmatpush1.bf16.msra.mxu0 %v653
        %702 = vmatprep.subr.bf16.mxu0 %v657
        %703 = vmatpush1.bf16.msra.mxu0 %v656
        %704 = vmatprep.subr.bf16.mxu0 %v660
        %705 = vmatpush1.bf16.msra.mxu0 %v659
        %706 = vmatprep.subr.bf16.mxu0 %v663
        %707 = vmatpush1.bf16.msra.mxu0 %v662
        %708 = vmatprep.subr.bf16.mxu0 %v666
        %709 = vmatpush1.bf16.msra.mxu0 %v665
        %710 = vmatprep.subr.bf16.mxu0 %v669
        %711 = vmatpush1.bf16.msra.mxu0 %v668
        %712 = vmatprep.subr.bf16.mxu0 %v672
        %713 = vmatpush1.bf16.msra.mxu0 %v671
        %714 = vmatprep.subr.bf16.mxu0 0
        %715 = vmatpush1.bf16.msra.mxu0 0
        %716 = vmatprep.subr.bf16.mxu0 0
        %717 = vmatpush1.bf16.msra.mxu0 0
        %718 = vmatprep.subr.bf16.mxu0 0
        %719 = vmatpush1.bf16.msra.mxu0 0
        %720 = vmatprep.subr.bf16.mxu0 0
        %721 = vmatpush1.bf16.msra.mxu0 0
        %722 = vmatprep.subr.bf16.mxu0 0
        %723 = vmatpush1.bf16.msra.mxu0 0
        %724 = vmatprep.subr.bf16.mxu0 0
        %725 = vmatpush1.bf16.msra.mxu0 0
        %726 = vmatprep.subr.bf16.mxu0 0
        %727 = vmatpush1.bf16.msra.mxu0 0
        %728 = vmatprep.subr.bf16.mxu0 0
        %729 = vmatpush1.bf16.msra.mxu0 0
        %730 = vmatprep.mubr.bf16.mxu0 0
        %731 = vmatmul.mubr.bf16.gmra.mrb[0].mxu0 %v520
        %v732 = vpop.f32.mrb[0].mxu0
        %v733 = vadd.f32 %v558, %v732
        %v734 = vpop.f32.mrb[0].mxu0
        %v735 = vadd.f32 %v562, %v734
        %v736 = vpop.f32.mrb[0].mxu0
        %v737 = vadd.f32 %v558, %v736
        %v738 = vpop.f32.mrb[0].mxu0
        %v739 = vadd.f32 %v562, %v738
        %740 = vdwg.mxu0
        %741 = vmatprep.subr.bf16.mxu0 0
        %742 = vmatpush1.bf16.msra.mxu0 %v652
        %743 = vmatprep.subr.bf16.mxu0 0
        %744 = vmatpush1.bf16.msra.mxu0 %v655
        %745 = vmatprep.subr.bf16.mxu0 0
        %746 = vmatpush1.bf16.msra.mxu0 %v658
        %747 = vmatprep.subr.bf16.mxu0 0
        %748 = vmatpush1.bf16.msra.mxu0 %v661
        %749 = vmatprep.subr.bf16.mxu0 0
        %750 = vmatpush1.bf16.msra.mxu0 %v664
        %751 = vmatprep.subr.bf16.mxu0 0
        %752 = vmatpush1.bf16.msra.mxu0 %v667
        %753 = vmatprep.subr.bf16.mxu0 0
        %754 = vmatpush1.bf16.msra.mxu0 %v670
        %755 = vmatprep.subr.bf16.mxu0 0
        %756 = vmatpush1.bf16.msra.mxu0 %v673
        %757 = vmatprep.subr.bf16.mxu0 0
        %758 = vmatpush1.bf16.msra.mxu0 0
        %759 = vmatprep.subr.bf16.mxu0 0
        %760 = vmatpush1.bf16.msra.mxu0 0
        %761 = vmatprep.subr.bf16.mxu0 0
        %762 = vmatpush1.bf16.msra.mxu0 0
        %763 = vmatprep.subr.bf16.mxu0 0
        %764 = vmatpush1.bf16.msra.mxu0 0
        %765 = vmatprep.subr.bf16.mxu0 0
        %766 = vmatpush1.bf16.msra.mxu0 0
        %767 = vmatprep.subr.bf16.mxu0 0
        %768 = vmatpush1.bf16.msra.mxu0 0
        %769 = vmatprep.subr.bf16.mxu0 0
        %770 = vmatpush1.bf16.msra.mxu0 0
        %771 = vmatprep.subr.bf16.mxu0 0
        %772 = vmatpush1.bf16.msra.mxu0 0
        %773 = vmatprep.mubr.bf16.mxu0 0
        %774 = vmatmul.mubr.bf16.gmra.mrb[0].mxu0 %v520
        %v775 = vpop.f32.mrb[0].mxu0
        %v776 = vadd.f32 %v566, %v775
        %v777 = vpop.f32.mrb[0].mxu0
        %v778 = vpop.f32.mrb[0].mxu0
        %v779 = vadd.f32 %v566, %v778
        %v780 = vpop.f32.mrb[0].mxu0
        %781 = vdwg.mxu0
        %v782 = vpack.c.bf16 %v737, %v733
        %784 = vrot.lane.b32.xlu0 %v782, 96
        %v785 = vpop.permute.xlu0 %784
        %786 = vrot.lane.b32.xlu0 %v782, 64
        %v787 = vpop.permute.xlu0 %786
        %788 = vrot.lane.b32.xlu0 %v782, 32
        %v789 = vpop.permute.xlu0 %788
        %v790 = vpack.c.bf16 %v739, %v735
        %792 = vrot.lane.b32.xlu0 %v790, 96
        %v793 = vpop.permute.xlu0 %792
        %794 = vrot.lane.b32.xlu0 %v790, 64
        %v795 = vpop.permute.xlu0 %794
        %796 = vrot.lane.b32.xlu0 %v790, 32
        %v797 = vpop.permute.xlu0 %796
        %v798 = vpack.c.bf16 %v779, %v776
        %800 = vrot.lane.b32.xlu0 %v798, 96
        %v801 = vpop.permute.xlu0 %800
        %803 = vrot.lane.b32.xlu0 %v798, 64
        %v804 = vpop.permute.xlu0 %803
        %806 = vrot.lane.b32.xlu0 %v798, 32
        %v807 = vpop.permute.xlu0 %806
        %vm809 = vcmask 261120
        %v811 = vsel %vm809, %v782, 0
        %v814 = vsel %vm809, %v790, 0
        %816 = vmatprep.subr.bf16.mxu0 0
        %817 = vmatpush1.bf16.xpose.msra.mxu0 %v814
        %818 = vmatprep.subr.bf16.mxu0 0
        %819 = vmatpush1.bf16.xpose.msra.mxu0 0
        %820 = vmatprep.subr.bf16.mxu0 0
        %821 = vmatpush1.bf16.xpose.msra.mxu0 0
        %822 = vmatprep.subr.bf16.mxu0 0
        %823 = vmatpush1.bf16.xpose.msra.mxu0 0
        %824 = vmatprep.subr.bf16.mxu0 0
        %825 = vmatpush1.bf16.xpose.msra.mxu0 0
        %826 = vmatprep.subr.bf16.mxu0 0
        %827 = vmatpush1.bf16.xpose.msra.mxu0 0
        %828 = vmatprep.subr.bf16.mxu0 0
        %829 = vmatpush1.bf16.xpose.msra.mxu0 0
        %830 = vmatprep.subr.bf16.mxu0 0
        %831 = vmatpush1.bf16.xpose.msra.mxu0 0
        %832 = vmatprep.subr.bf16.mxu0 0
        %833 = vmatpush1.bf16.xpose.msra.mxu0 0
        %834 = vmatprep.subr.bf16.mxu0 0
        %835 = vmatpush1.bf16.xpose.msra.mxu0 0
        %836 = vmatprep.subr.bf16.mxu0 0
        %837 = vmatpush1.bf16.xpose.msra.mxu0 0
        %838 = vmatprep.subr.bf16.mxu0 0
        %839 = vmatpush1.bf16.xpose.msra.mxu0 0
        %840 = vmatprep.subr.bf16.mxu0 0
        %841 = vmatpush1.bf16.xpose.msra.mxu0 0
        %842 = vmatprep.subr.bf16.mxu0 0
        %843 = vmatpush1.bf16.xpose.msra.mxu0 0
        %844 = vmatprep.subr.bf16.mxu0 0
        %845 = vmatpush1.bf16.xpose.msra.mxu0 0
        %846 = vmatprep.subr.bf16.mxu0 0
        %847 = vmatpush1.bf16.xpose.msra.mxu0 0
        %848 = vmatprep.mubr.bf16.mxu0 0
        %849 = vmatmul.mubr.bf16.gmra.mrb[0].mxu0 %v811
        %v850 = vpop.f32.mrb[0].mxu0
        %v851 = vadd.f32 0.0, %v850
        %v852 = vpop.f32.mrb[0].mxu0
        %v853 = vpop.f32.mrb[0].mxu0
        %v854 = vadd.f32 0.0, %v853
        %v855 = vpop.f32.mrb[0].mxu0
        %856 = vdwg.mxu0
        %v858 = vsel %vm809, %v785, 0
        %v861 = vsel %vm809, %v793, 0
        %863 = vmatprep.subr.bf16.mxu0 0
        %864 = vmatpush1.bf16.xpose.msra.mxu0 %v861
        %865 = vmatprep.subr.bf16.mxu0 0
        %866 = vmatpush1.bf16.xpose.msra.mxu0 0
        %867 = vmatprep.subr.bf16.mxu0 0
        %868 = vmatpush1.bf16.xpose.msra.mxu0 0
        %869 = vmatprep.subr.bf16.mxu0 0
        %870 = vmatpush1.bf16.xpose.msra.mxu0 0
        %871 = vmatprep.subr.bf16.mxu0 0
        %872 = vmatpush1.bf16.xpose.msra.mxu0 0
        %873 = vmatprep.subr.bf16.mxu0 0
        %874 = vmatpush1.bf16.xpose.msra.mxu0 0
        %875 = vmatprep.subr.bf16.mxu0 0
        %876 = vmatpush1.bf16.xpose.msra.mxu0 0
        %877 = vmatprep.subr.bf16.mxu0 0
        %878 = vmatpush1.bf16.xpose.msra.mxu0 0
        %879 = vmatprep.subr.bf16.mxu0 0
        %880 = vmatpush1.bf16.xpose.msra.mxu0 0
        %881 = vmatprep.subr.bf16.mxu0 0
        %882 = vmatpush1.bf16.xpose.msra.mxu0 0
        %883 = vmatprep.subr.bf16.mxu0 0
        %884 = vmatpush1.bf16.xpose.msra.mxu0 0
        %885 = vmatprep.subr.bf16.mxu0 0
        %886 = vmatpush1.bf16.xpose.msra.mxu0 0
        %887 = vmatprep.subr.bf16.mxu0 0
        %888 = vmatpush1.bf16.xpose.msra.mxu0 0
        %889 = vmatprep.subr.bf16.mxu0 0
        %890 = vmatpush1.bf16.xpose.msra.mxu0 0
        %891 = vmatprep.subr.bf16.mxu0 0
        %892 = vmatpush1.bf16.xpose.msra.mxu0 0
        %893 = vmatprep.subr.bf16.mxu0 0
        %894 = vmatpush1.bf16.xpose.msra.mxu0 0
        %895 = vmatprep.mubr.bf16.mxu0 0
        %896 = vmatmul.mubr.bf16.gmra.mrb[0].mxu0 %v858
        %v897 = vpop.f32.mrb[0].mxu0
        %v898 = vadd.f32 0.0, %v897
        %v899 = vpop.f32.mrb[0].mxu0
        %v900 = vpop.f32.mrb[0].mxu0
        %v901 = vadd.f32 0.0, %v900
        %v902 = vpop.f32.mrb[0].mxu0
        %903 = vdwg.mxu0
        %v905 = vsel %vm809, %v787, 0
        %v908 = vsel %vm809, %v795, 0
        %910 = vmatprep.subr.bf16.mxu0 0
        %911 = vmatpush1.bf16.xpose.msra.mxu0 %v908
        %912 = vmatprep.subr.bf16.mxu0 0
        %913 = vmatpush1.bf16.xpose.msra.mxu0 0
        %914 = vmatprep.subr.bf16.mxu0 0
        %915 = vmatpush1.bf16.xpose.msra.mxu0 0
        %916 = vmatprep.subr.bf16.mxu0 0
        %917 = vmatpush1.bf16.xpose.msra.mxu0 0
        %918 = vmatprep.subr.bf16.mxu0 0
        %919 = vmatpush1.bf16.xpose.msra.mxu0 0
        %920 = vmatprep.subr.bf16.mxu0 0
        %921 = vmatpush1.bf16.xpose.msra.mxu0 0
        %922 = vmatprep.subr.bf16.mxu0 0
        %923 = vmatpush1.bf16.xpose.msra.mxu0 0
        %924 = vmatprep.subr.bf16.mxu0 0
        %925 = vmatpush1.bf16.xpose.msra.mxu0 0
        %926 = vmatprep.subr.bf16.mxu0 0
        %927 = vmatpush1.bf16.xpose.msra.mxu0 0
        %928 = vmatprep.subr.bf16.mxu0 0
        %929 = vmatpush1.bf16.xpose.msra.mxu0 0
        %930 = vmatprep.subr.bf16.mxu0 0
        %931 = vmatpush1.bf16.xpose.msra.mxu0 0
        %932 = vmatprep.subr.bf16.mxu0 0
        %933 = vmatpush1.bf16.xpose.msra.mxu0 0
        %934 = vmatprep.subr.bf16.mxu0 0
        %935 = vmatpush1.bf16.xpose.msra.mxu0 0
        %936 = vmatprep.subr.bf16.mxu0 0
        %937 = vmatpush1.bf16.xpose.msra.mxu0 0
        %938 = vmatprep.subr.bf16.mxu0 0
        %939 = vmatpush1.bf16.xpose.msra.mxu0 0
        %940 = vmatprep.subr.bf16.mxu0 0
        %941 = vmatpush1.bf16.xpose.msra.mxu0 0
        %942 = vmatprep.mubr.bf16.mxu0 0
        %943 = vmatmul.mubr.bf16.gmra.mrb[0].mxu0 %v905
        %v944 = vpop.f32.mrb[0].mxu0
        %v945 = vadd.f32 0.0, %v944
        %v946 = vpop.f32.mrb[0].mxu0
        %v947 = vpop.f32.mrb[0].mxu0
        %v948 = vadd.f32 0.0, %v947
        %v949 = vpop.f32.mrb[0].mxu0
        %950 = vdwg.mxu0
        %v952 = vsel %vm809, %v789, 0
        %v955 = vsel %vm809, %v797, 0
        %957 = vmatprep.subr.bf16.mxu0 0
        %958 = vmatpush1.bf16.xpose.msra.mxu0 %v955
        %959 = vmatprep.subr.bf16.mxu0 0
        %960 = vmatpush1.bf16.xpose.msra.mxu0 0
        %961 = vmatprep.subr.bf16.mxu0 0
        %962 = vmatpush1.bf16.xpose.msra.mxu0 0
        %963 = vmatprep.subr.bf16.mxu0 0
        %964 = vmatpush1.bf16.xpose.msra.mxu0 0
        %965 = vmatprep.subr.bf16.mxu0 0
        %966 = vmatpush1.bf16.xpose.msra.mxu0 0
        %967 = vmatprep.subr.bf16.mxu0 0
        %968 = vmatpush1.bf16.xpose.msra.mxu0 0
        %969 = vmatprep.subr.bf16.mxu0 0
        %970 = vmatpush1.bf16.xpose.msra.mxu0 0
        %971 = vmatprep.subr.bf16.mxu0 0
        %972 = vmatpush1.bf16.xpose.msra.mxu0 0
        %973 = vmatprep.subr.bf16.mxu0 0
        %974 = vmatpush1.bf16.xpose.msra.mxu0 0
        %975 = vmatprep.subr.bf16.mxu0 0
        %976 = vmatpush1.bf16.xpose.msra.mxu0 0
        %977 = vmatprep.subr.bf16.mxu0 0
        %978 = vmatpush1.bf16.xpose.msra.mxu0 0
        %979 = vmatprep.subr.bf16.mxu0 0
        %980 = vmatpush1.bf16.xpose.msra.mxu0 0
        %981 = vmatprep.subr.bf16.mxu0 0
        %982 = vmatpush1.bf16.xpose.msra.mxu0 0
        %983 = vmatprep.subr.bf16.mxu0 0
        %984 = vmatpush1.bf16.xpose.msra.mxu0 0
        %985 = vmatprep.subr.bf16.mxu0 0
        %986 = vmatpush1.bf16.xpose.msra.mxu0 0
        %987 = vmatprep.subr.bf16.mxu0 0
        %988 = vmatpush1.bf16.xpose.msra.mxu0 0
        %989 = vmatprep.mubr.bf16.mxu0 0
        %990 = vmatmul.mubr.bf16.gmra.mrb[0].mxu0 %v952
        %v991 = vpop.f32.mrb[0].mxu0
        %v992 = vadd.f32 0.0, %v991
        %v993 = vpop.f32.mrb[0].mxu0
        %v994 = vpop.f32.mrb[0].mxu0
        %v995 = vadd.f32 0.0, %v994
        %v996 = vpop.f32.mrb[0].mxu0
        %997 = vdwg.mxu0
        %vm998 = vcmask 130048
        %v999 = vsel %vm998, %v851, -inf
        %1000 = vmax.xlane.f32.xlu0 %v999
        %v1001 = vpop.xlane.xlu0 %1000
        %v1002 = vsel %vm998, %v854, -inf
        %1003 = vmax.xlane.f32.xlu0 %v1002
        %v1004 = vpop.xlane.xlu0 %1003
        %v1005 = vsel %vm998, %v898, -inf
        %1006 = vmax.xlane.f32.xlu0 %v1005
        %v1007 = vpop.xlane.xlu0 %1006
        %v1008 = vsel %vm998, %v901, -inf
        %1009 = vmax.xlane.f32.xlu0 %v1008
        %v1010 = vpop.xlane.xlu0 %1009
        %v1011 = vsel %vm998, %v945, -inf
        %1012 = vmax.xlane.f32.xlu0 %v1011
        %v1013 = vpop.xlane.xlu0 %1012
        %v1014 = vsel %vm998, %v948, -inf
        %1015 = vmax.xlane.f32.xlu0 %v1014
        %v1016 = vpop.xlane.xlu0 %1015
        %v1017 = vsel %vm998, %v992, -inf
        %1018 = vmax.xlane.f32.xlu0 %v1017
        %v1019 = vpop.xlane.xlu0 %1018
        %v1020 = vsel %vm998, %v995, -inf
        %1021 = vmax.xlane.f32.xlu0 %v1020
        %v1022 = vpop.xlane.xlu0 %1021
        %v1023 = vsub.f32 %v851, %v1001
        %v1024 = vsub.f32 %v854, %v1004
        %v1025 = vsub.f32 %v898, %v1007
        %v1026 = vsub.f32 %v901, %v1010
        %v1027 = vsub.f32 %v945, %v1013
        %v1028 = vsub.f32 %v948, %v1016
        %v1029 = vsub.f32 %v992, %v1019
        %v1030 = vsub.f32 %v995, %v1022
        %v1031 = vmul.f32 %v1023, 1.442695
        %v1032 = vpow.pop %v1031
        %v1033 = vmul.f32 %v1024, 1.442695
        %v1034 = vpow.pop %v1033
        %v1035 = vmul.f32 %v1025, 1.442695
        %v1036 = vpow.pop %v1035
        %v1037 = vmul.f32 %v1026, 1.442695
        %v1038 = vpow.pop %v1037
        %v1039 = vmul.f32 %v1027, 1.442695
        %v1040 = vpow.pop %v1039
        %v1041 = vmul.f32 %v1028, 1.442695
        %v1042 = vpow.pop %v1041
        %v1043 = vmul.f32 %v1029, 1.442695
        %v1044 = vpow.pop %v1043
        %v1045 = vmul.f32 %v1030, 1.442695
        %v1046 = vpow.pop %v1045
        %v1047 = vsel %vm998, %v1032, 0.0
        %1048 = vadd.xlane.f32.xlu0 %v1047
        %v1049 = vpop.xlane.xlu0 %1048
        %v1050 = vsel %vm998, %v1034, 0.0
        %1051 = vadd.xlane.f32.xlu0 %v1050
        %v1052 = vpop.xlane.xlu0 %1051
        %v1053 = vsel %vm998, %v1036, 0.0
        %1054 = vadd.xlane.f32.xlu0 %v1053
        %v1055 = vpop.xlane.xlu0 %1054
        %v1056 = vsel %vm998, %v1038, 0.0
        %1057 = vadd.xlane.f32.xlu0 %v1056
        %v1058 = vpop.xlane.xlu0 %1057
        %v1059 = vsel %vm998, %v1040, 0.0
        %1060 = vadd.xlane.f32.xlu0 %v1059
        %v1061 = vpop.xlane.xlu0 %1060
        %v1062 = vsel %vm998, %v1042, 0.0
        %1063 = vadd.xlane.f32.xlu0 %v1062
        %v1064 = vpop.xlane.xlu0 %1063
        %v1065 = vsel %vm998, %v1044, 0.0
        %1066 = vadd.xlane.f32.xlu0 %v1065
        %v1067 = vpop.xlane.xlu0 %1066
        %v1068 = vsel %vm998, %v1046, 0.0
        %1069 = vadd.xlane.f32.xlu0 %v1068
        %v1070 = vpop.xlane.xlu0 %1069
        %v1071 = vrcp.pop %v1049
        %v1072 = vrcp.pop %v1052
        %v1073 = vrcp.pop %v1055
        %v1074 = vrcp.pop %v1058
        %v1075 = vrcp.pop %v1061
        %v1076 = vrcp.pop %v1064
        %v1077 = vrcp.pop %v1067
        %v1078 = vrcp.pop %v1070
        %v1079 = vmul.f32 %v1032, %v1071
        %v1080 = vmul.f32 %v1034, %v1072
        %v1081 = vmul.f32 %v1036, %v1073
        %v1082 = vmul.f32 %v1038, %v1074
        %v1083 = vmul.f32 %v1040, %v1075
        %v1084 = vmul.f32 %v1042, %v1076
        %v1085 = vmul.f32 %v1044, %v1077
        %v1086 = vmul.f32 %v1046, %v1078
        %v1087 = vpack.c.bf16 %v1080, %v1079
        %v1088 = vpack.c.bf16 %v1082, %v1081
        %v1089 = vpack.c.bf16 %v1084, %v1083
        %v1090 = vpack.c.bf16 %v1086, %v1085
        %v1092 = vsel %vm998, %v1087, 0
        %1094 = vmatprep.subr.bf16.mxu0 0
        %1095 = vmatpush1.bf16.msra.mxu0 %v798
        %1096 = vmatprep.subr.bf16.mxu0 0
        %1097 = vmatpush1.bf16.msra.mxu0 0
        %1098 = vmatprep.subr.bf16.mxu0 0
        %1099 = vmatpush1.bf16.msra.mxu0 0
        %1100 = vmatprep.subr.bf16.mxu0 0
        %1101 = vmatpush1.bf16.msra.mxu0 0
        %1102 = vmatprep.subr.bf16.mxu0 0
        %1103 = vmatpush1.bf16.msra.mxu0 0
        %1104 = vmatprep.subr.bf16.mxu0 0
        %1105 = vmatpush1.bf16.msra.mxu0 0
        %1106 = vmatprep.subr.bf16.mxu0 0
        %1107 = vmatpush1.bf16.msra.mxu0 0
        %1108 = vmatprep.subr.bf16.mxu0 0
        %1109 = vmatpush1.bf16.msra.mxu0 0
        %1110 = vmatprep.subr.bf16.mxu0 0
        %1111 = vmatpush1.bf16.msra.mxu0 0
        %1112 = vmatprep.subr.bf16.mxu0 0
        %1113 = vmatpush1.bf16.msra.mxu0 0
        %1114 = vmatprep.subr.bf16.mxu0 0
        %1115 = vmatpush1.bf16.msra.mxu0 0
        %1116 = vmatprep.subr.bf16.mxu0 0
        %1117 = vmatpush1.bf16.msra.mxu0 0
        %1118 = vmatprep.subr.bf16.mxu0 0
        %1119 = vmatpush1.bf16.msra.mxu0 0
        %1120 = vmatprep.subr.bf16.mxu0 0
        %1121 = vmatpush1.bf16.msra.mxu0 0
        %1122 = vmatprep.subr.bf16.mxu0 0
        %1123 = vmatpush1.bf16.msra.mxu0 0
        %1124 = vmatprep.subr.bf16.mxu0 0
        %1125 = vmatpush1.bf16.msra.mxu0 0
        %1126 = vmatprep.mubr.bf16.mxu0 0
        %1127 = vmatmul.mubr.bf16.gmra.mrb[0].mxu0 %v1092
        %v1128 = vpop.f32.mrb[0].mxu0
        %v1129 = vadd.f32 0.0, %v1128
        %v1130 = vpop.f32.mrb[0].mxu0
        %v1131 = vpop.f32.mrb[0].mxu0
        %v1132 = vadd.f32 0.0, %v1131
        %v1133 = vpop.f32.mrb[0].mxu0
        %1134 = vdwg.mxu0
        %v1136 = vsel %vm998, %v1088, 0
        %1138 = vmatprep.subr.bf16.mxu0 0
        %1139 = vmatpush1.bf16.msra.mxu0 %v801
        %1140 = vmatprep.subr.bf16.mxu0 0
        %1141 = vmatpush1.bf16.msra.mxu0 0
        %1142 = vmatprep.subr.bf16.mxu0 0
        %1143 = vmatpush1.bf16.msra.mxu0 0
        %1144 = vmatprep.subr.bf16.mxu0 0
        %1145 = vmatpush1.bf16.msra.mxu0 0
        %1146 = vmatprep.subr.bf16.mxu0 0
        %1147 = vmatpush1.bf16.msra.mxu0 0
        %1148 = vmatprep.subr.bf16.mxu0 0
        %1149 = vmatpush1.bf16.msra.mxu0 0
        %1150 = vmatprep.subr.bf16.mxu0 0
        %1151 = vmatpush1.bf16.msra.mxu0 0
        %1152 = vmatprep.subr.bf16.mxu0 0
        %1153 = vmatpush1.bf16.msra.mxu0 0
        %1154 = vmatprep.subr.bf16.mxu0 0
        %1155 = vmatpush1.bf16.msra.mxu0 0
        %1156 = vmatprep.subr.bf16.mxu0 0
        %1157 = vmatpush1.bf16.msra.mxu0 0
        %1158 = vmatprep.subr.bf16.mxu0 0
        %1159 = vmatpush1.bf16.msra.mxu0 0
        %1160 = vmatprep.subr.bf16.mxu0 0
        %1161 = vmatpush1.bf16.msra.mxu0 0
        %1162 = vmatprep.subr.bf16.mxu0 0
        %1163 = vmatpush1.bf16.msra.mxu0 0
        %1164 = vmatprep.subr.bf16.mxu0 0
        %1165 = vmatpush1.bf16.msra.mxu0 0
        %1166 = vmatprep.subr.bf16.mxu0 0
        %1167 = vmatpush1.bf16.msra.mxu0 0
        %1168 = vmatprep.subr.bf16.mxu0 0
        %1169 = vmatpush1.bf16.msra.mxu0 0
        %1170 = vmatprep.mubr.bf16.mxu0 0
        %1171 = vmatmul.mubr.bf16.gmra.mrb[0].mxu0 %v1136
        %v1172 = vpop.f32.mrb[0].mxu0
        %v1173 = vadd.f32 0.0, %v1172
        %v1174 = vpop.f32.mrb[0].mxu0
        %v1175 = vpop.f32.mrb[0].mxu0
        %v1176 = vadd.f32 0.0, %v1175
        %v1177 = vpop.f32.mrb[0].mxu0
        %1178 = vdwg.mxu0
        %v1180 = vsel %vm998, %v1089, 0
        %1182 = vmatprep.subr.bf16.mxu0 0
        %1183 = vmatpush1.bf16.msra.mxu0 %v804
        %1184 = vmatprep.subr.bf16.mxu0 0
        %1185 = vmatpush1.bf16.msra.mxu0 0
        %1186 = vmatprep.subr.bf16.mxu0 0
        %1187 = vmatpush1.bf16.msra.mxu0 0
        %1188 = vmatprep.subr.bf16.mxu0 0
        %1189 = vmatpush1.bf16.msra.mxu0 0
        %1190 = vmatprep.subr.bf16.mxu0 0
        %1191 = vmatpush1.bf16.msra.mxu0 0
        %1192 = vmatprep.subr.bf16.mxu0 0
        %1193 = vmatpush1.bf16.msra.mxu0 0
        %1194 = vmatprep.subr.bf16.mxu0 0
        %1195 = vmatpush1.bf16.msra.mxu0 0
        %1196 = vmatprep.subr.bf16.mxu0 0
        %1197 = vmatpush1.bf16.msra.mxu0 0
        %1198 = vmatprep.subr.bf16.mxu0 0
        %1199 = vmatpush1.bf16.msra.mxu0 0
        %1200 = vmatprep.subr.bf16.mxu0 0
        %1201 = vmatpush1.bf16.msra.mxu0 0
        %1202 = vmatprep.subr.bf16.mxu0 0
        %1203 = vmatpush1.bf16.msra.mxu0 0
        %1204 = vmatprep.subr.bf16.mxu0 0
        %1205 = vmatpush1.bf16.msra.mxu0 0
        %1206 = vmatprep.subr.bf16.mxu0 0
        %1207 = vmatpush1.bf16.msra.mxu0 0
        %1208 = vmatprep.subr.bf16.mxu0 0
        %1209 = vmatpush1.bf16.msra.mxu0 0
        %1210 = vmatprep.subr.bf16.mxu0 0
        %1211 = vmatpush1.bf16.msra.mxu0 0
        %1212 = vmatprep.subr.bf16.mxu0 0
        %1213 = vmatpush1.bf16.msra.mxu0 0
        %1214 = vmatprep.mubr.bf16.mxu0 0
        %1215 = vmatmul.mubr.bf16.gmra.mrb[0].mxu0 %v1180
        %v1216 = vpop.f32.mrb[0].mxu0
        %v1217 = vadd.f32 0.0, %v1216
        %v1218 = vpop.f32.mrb[0].mxu0
        %v1219 = vpop.f32.mrb[0].mxu0
        %v1220 = vadd.f32 0.0, %v1219
        %v1221 = vpop.f32.mrb[0].mxu0
        %1222 = vdwg.mxu0
        %v1224 = vsel %vm998, %v1090, 0
        %1226 = vmatprep.subr.bf16.mxu0 0
        %1227 = vmatpush1.bf16.msra.mxu0 %v807
        %1228 = vmatprep.subr.bf16.mxu0 0
        %1229 = vmatpush1.bf16.msra.mxu0 0
        %1230 = vmatprep.subr.bf16.mxu0 0
        %1231 = vmatpush1.bf16.msra.mxu0 0
        %1232 = vmatprep.subr.bf16.mxu0 0
        %1233 = vmatpush1.bf16.msra.mxu0 0
        %1234 = vmatprep.subr.bf16.mxu0 0
        %1235 = vmatpush1.bf16.msra.mxu0 0
        %1236 = vmatprep.subr.bf16.mxu0 0
        %1237 = vmatpush1.bf16.msra.mxu0 0
        %1238 = vmatprep.subr.bf16.mxu0 0
        %1239 = vmatpush1.bf16.msra.mxu0 0
        %1240 = vmatprep.subr.bf16.mxu0 0
        %1241 = vmatpush1.bf16.msra.mxu0 0
        %1242 = vmatprep.subr.bf16.mxu0 0
        %1243 = vmatpush1.bf16.msra.mxu0 0
        %1244 = vmatprep.subr.bf16.mxu0 0
        %1245 = vmatpush1.bf16.msra.mxu0 0
        %1246 = vmatprep.subr.bf16.mxu0 0
        %1247 = vmatpush1.bf16.msra.mxu0 0
        %1248 = vmatprep.subr.bf16.mxu0 0
        %1249 = vmatpush1.bf16.msra.mxu0 0
        %1250 = vmatprep.subr.bf16.mxu0 0
        %1251 = vmatpush1.bf16.msra.mxu0 0
        %1252 = vmatprep.subr.bf16.mxu0 0
        %1253 = vmatpush1.bf16.msra.mxu0 0
        %1254 = vmatprep.subr.bf16.mxu0 0
        %1255 = vmatpush1.bf16.msra.mxu0 0
        %1256 = vmatprep.subr.bf16.mxu0 0
        %1257 = vmatpush1.bf16.msra.mxu0 0
        %1258 = vmatprep.mubr.bf16.mxu0 0
        %1259 = vmatmul.mubr.bf16.gmra.mrb[0].mxu0 %v1224
        %v1260 = vpop.f32.mrb[0].mxu0
        %v1261 = vadd.f32 0.0, %v1260
        %v1262 = vpop.f32.mrb[0].mxu0
        %v1263 = vpop.f32.mrb[0].mxu0
        %v1264 = vadd.f32 0.0, %v1263
        %v1265 = vpop.f32.mrb[0].mxu0
        %1266 = vdwg.mxu0
        %1269 = vrot.lane.b32.xlu0 %v1173, 32
        %v1270 = vpop.permute.xlu0 %1269
        %1271 = vrot.lane.b32.xlu0 %v1176, 32
        %v1272 = vpop.permute.xlu0 %1271
        %1277 = vrot.lane.b32.xlu0 %v1217, 64
        %v1278 = vpop.permute.xlu0 %1277
        %1279 = vrot.lane.b32.xlu0 %v1220, 64
        %v1280 = vpop.permute.xlu0 %1279
        %1285 = vrot.lane.b32.xlu0 %v1261, 96
        %v1286 = vpop.permute.xlu0 %1285
        %1287 = vrot.lane.b32.xlu0 %v1264, 96
        %v1288 = vpop.permute.xlu0 %1287
        %v1291 = vsel %vm809, %v1129, %v1270
        %v1292 = vsel %vm809, %v1132, %v1272
        %vm1293 = vcmask 523264
        %v1294 = vsel %vm1293, %v1291, %v1278
        %v1295 = vsel %vm1293, %v1292, %v1280
        %vm1296 = vcmask 785408
        %v1297 = vsel %vm1296, %v1294, %v1286
        %v1298 = vsel %vm1296, %v1295, %v1288
        %v1299 = vpack.c.bf16 %v1298, %v1297
        %v1300 = vld [vmem:[#allocation7] sm:$0xf]
        %v1301 = vld [vmem:[#allocation7 + $0x4] sm:$0xf]
        %v1302 = vld [vmem:[#allocation7 + $0x8] sm:$0xf]
        %v1303 = vld [vmem:[#allocation7 + $0xc] sm:$0xf]
        %v1304 = vld [vmem:[#allocation7 + $0x10] sm:$0xf]
        %v1305 = vld [vmem:[#allocation7 + $0x14] sm:$0xf]
        %v1306 = vld [vmem:[#allocation7 + $0x18] sm:$0xf]
        %v1307 = vld [vmem:[#allocation7 + $0x1c] sm:$0xf]
        %v1308 = vld [vmem:[#allocation7 + $0x20] sm:$0xf]
        %v1309 = vld [vmem:[#allocation7 + $0x24] sm:$0xf]
        %v1310 = vld [vmem:[#allocation7 + $0x28] sm:$0xf]
        %v1311 = vld [vmem:[#allocation7 + $0x2c] sm:$0xf]
        %v1312 = vld [vmem:[#allocation7 + $0x30] sm:$0xf]
        %v1313 = vld [vmem:[#allocation7 + $0x34] sm:$0xf]
        %v1314 = vld [vmem:[#allocation7 + $0x38] sm:$0xf]
        %v1315 = vld [vmem:[#allocation7 + $0x3c] sm:$0xf]
        %v1316 = vld [vmem:[%s4] sm:$0x1]
        %v1318 = vlaneseq
        %v1319 = vshrl.u32 %v1318, 7
        %v1320 = vsub.s32 0, %v1319
        %v1321 = vrot.slane %v1316, %v1320
        %v1339 = vunpack.c.l.b16 %v1300
        %v1340 = vunpack.c.l.b16 %v1301
        %v1341 = vunpack.c.l.b16 %v1302
        %v1342 = vunpack.c.l.b16 %v1303
        %v1343 = vunpack.c.l.b16 %v1304
        %v1344 = vunpack.c.l.b16 %v1305
        %v1345 = vunpack.c.l.b16 %v1306
        %v1346 = vunpack.c.l.b16 %v1307
        %v1347 = vunpack.c.l.b16 %v1308
        %v1348 = vunpack.c.l.b16 %v1309
        %v1349 = vunpack.c.l.b16 %v1310
        %v1350 = vunpack.c.l.b16 %v1311
        %v1351 = vunpack.c.l.b16 %v1312
        %v1352 = vunpack.c.l.b16 %v1313
        %v1353 = vunpack.c.l.b16 %v1314
        %v1354 = vunpack.c.l.b16 %v1315
        %v1355 = vpack.c.b16 %v1340, %v1339
        %v1356 = vpack.c.b16 %v1342, %v1341
        %v1357 = vpack.c.b16 %v1344, %v1343
        %v1358 = vpack.c.b16 %v1346, %v1345
        %v1359 = vpack.c.b16 %v1348, %v1347
        %v1360 = vpack.c.b16 %v1350, %v1349
        %v1361 = vpack.c.b16 %v1352, %v1351
        %v1362 = vpack.c.b16 %v1354, %v1353
        %1371 = vmatprep.subr.bf16.mxu0 0
        %1372 = vmatpush1.bf16.msra.mxu0 %v1355
        %1373 = vmatprep.subr.bf16.mxu0 0
        %1374 = vmatpush1.bf16.msra.mxu0 %v1356
        %1375 = vmatprep.subr.bf16.mxu0 0
        %1376 = vmatpush1.bf16.msra.mxu0 %v1357
        %1377 = vmatprep.subr.bf16.mxu0 0
        %1378 = vmatpush1.bf16.msra.mxu0 %v1358
        %1379 = vmatprep.subr.bf16.mxu0 0
        %1380 = vmatpush1.bf16.msra.mxu0 %v1359
        %1381 = vmatprep.subr.bf16.mxu0 0
        %1382 = vmatpush1.bf16.msra.mxu0 %v1360
        %1383 = vmatprep.subr.bf16.mxu0 0
        %1384 = vmatpush1.bf16.msra.mxu0 %v1361
        %1385 = vmatprep.subr.bf16.mxu0 0
        %1386 = vmatpush1.bf16.msra.mxu0 %v1362
        %1387 = vmatprep.subr.bf16.mxu0 0
        %1388 = vmatpush1.bf16.msra.mxu0 0
        %1389 = vmatprep.subr.bf16.mxu0 0
        %1390 = vmatpush1.bf16.msra.mxu0 0
        %1391 = vmatprep.subr.bf16.mxu0 0
        %1392 = vmatpush1.bf16.msra.mxu0 0
        %1393 = vmatprep.subr.bf16.mxu0 0
        %1394 = vmatpush1.bf16.msra.mxu0 0
        %1395 = vmatprep.subr.bf16.mxu0 0
        %1396 = vmatpush1.bf16.msra.mxu0 0
        %1397 = vmatprep.subr.bf16.mxu0 0
        %1398 = vmatpush1.bf16.msra.mxu0 0
        %1399 = vmatprep.subr.bf16.mxu0 0
        %1400 = vmatpush1.bf16.msra.mxu0 0
        %1401 = vmatprep.subr.bf16.mxu0 0
        %1402 = vmatpush1.bf16.msra.mxu0 0
        %1403 = vmatprep.mubr.bf16.mxu0 0
        %1404 = vmatmul.mubr.bf16.gmra.mrb[0].mxu0 %v1299
        %v1405 = vpop.f32.mrb[0].mxu0
        %v1406 = vadd.f32 %v1321, %v1405
        %v1407 = vpop.f32.mrb[0].mxu0
        %v1408 = vpop.f32.mrb[0].mxu0
        %v1409 = vadd.f32 %v1321, %v1408
        %v1410 = vpop.f32.mrb[0].mxu0
        %1411 = vdwg.mxu0
        %v1412 = vadd.f32 %v518, %v1406
        %v1413 = vadd.f32 %v519, %v1409
        %v1414 = vld [vmem:[%s5] sm:$0x1]
        %v1415 = vld [vmem:[%s6] sm:$0x1]
        %1416 = vadd.xlane.f32.xlu0 %v1412
        %v1417 = vpop.xlane.xlu0 %1416
        %1418 = vadd.xlane.f32.xlu0 %v1413
        %v1419 = vpop.xlane.xlu0 %1418
        %v1420 = vrcp.pop 128.0
        %v1421 = vmul.f32 %v1417, %v1420
        %v1422 = vmul.f32 %v1419, %v1420
        %v1423 = vsub.f32 %v1412, %v1421
        %v1424 = vsub.f32 %v1413, %v1422
        %v1425 = vmul.f32 %v1423, %v1423
        %v1426 = vmul.f32 %v1424, %v1424
        %1427 = vadd.xlane.f32.xlu0 %v1425
        %v1428 = vpop.xlane.xlu0 %1427
        %1429 = vadd.xlane.f32.xlu0 %v1426
        %v1430 = vpop.xlane.xlu0 %1429
        %v1431 = vmul.f32 %v1428, %v1420
        %v1432 = vmul.f32 %v1430, %v1420
        %v1433 = vadd.f32 %v1431, 1e-05
        %v1434 = vadd.f32 %v1432, 1e-05
        %v1435 = vrsqrt.pop %v1433
        %v1436 = vrsqrt.pop %v1434
        %v1437 = vmul.f32 %v1423, %v1435
        %v1438 = vmul.f32 %v1424, %v1436
        %v1440 = vlaneseq
        %v1441 = vshrl.u32 %v1440, 7
        %v1442 = vsub.s32 0, %v1441
        %v1443 = vrot.slane %v1414, %v1442
        %v1445 = vmul.f32 %v1437, %v1443
        %v1446 = vmul.f32 %v1438, %v1443
        %v1448 = vlaneseq
        %v1449 = vshrl.u32 %v1448, 7
        %v1450 = vsub.s32 0, %v1449
        %v1451 = vrot.slane %v1415, %v1450
        %v1453 = vadd.f32 %v1445, %v1451
        %v1454 = vadd.f32 %v1446, %v1451
        %v1455 = vpack.c.bf16 %v1454, %v1453
        %v1456 = vld [vmem:[#allocation8] sm:$0xf]
        %v1457 = vld [vmem:[#allocation8 + $0x4] sm:$0xf]
        %v1458 = vld [vmem:[#allocation8 + $0x8] sm:$0xf]
        %v1459 = vld [vmem:[#allocation8 + $0xc] sm:$0xf]
        %v1460 = vld [vmem:[#allocation8 + $0x10] sm:$0xf]
        %v1461 = vld [vmem:[#allocation8 + $0x14] sm:$0xf]
        %v1462 = vld [vmem:[#allocation8 + $0x18] sm:$0xf]
        %v1463 = vld [vmem:[#allocation8 + $0x1c] sm:$0xf]
        %v1464 = vld [vmem:[#allocation8 + $0x20] sm:$0xf]
        %v1465 = vld [vmem:[#allocation8 + $0x24] sm:$0xf]
        %v1466 = vld [vmem:[#allocation8 + $0x28] sm:$0xf]
        %v1467 = vld [vmem:[#allocation8 + $0x2c] sm:$0xf]
        %v1468 = vld [vmem:[#allocation8 + $0x30] sm:$0xf]
        %v1469 = vld [vmem:[#allocation8 + $0x34] sm:$0xf]
        %v1470 = vld [vmem:[#allocation8 + $0x38] sm:$0xf]
        %v1471 = vld [vmem:[#allocation8 + $0x3c] sm:$0xf]
        %v1472 = vld [vmem:[%s8] sm:$0x1]
        %v1474 = vlaneseq
        %v1475 = vshrl.u32 %v1474, 7
        %v1476 = vsub.s32 0, %v1475
        %v1477 = vrot.slane %v1472, %v1476
        %v1495 = vunpack.c.l.b16 %v1456
        %v1496 = vunpack.c.l.b16 %v1457
        %v1497 = vunpack.c.l.b16 %v1458
        %v1498 = vunpack.c.l.b16 %v1459
        %v1499 = vunpack.c.l.b16 %v1460
        %v1500 = vunpack.c.l.b16 %v1461
        %v1501 = vunpack.c.l.b16 %v1462
        %v1502 = vunpack.c.l.b16 %v1463
        %v1503 = vunpack.c.l.b16 %v1464
        %v1504 = vunpack.c.l.b16 %v1465
        %v1505 = vunpack.c.l.b16 %v1466
        %v1506 = vunpack.c.l.b16 %v1467
        %v1507 = vunpack.c.l.b16 %v1468
        %v1508 = vunpack.c.l.b16 %v1469
        %v1509 = vunpack.c.l.b16 %v1470
        %v1510 = vunpack.c.l.b16 %v1471
        %v1511 = vpack.c.b16 %v1496, %v1495
        %v1512 = vpack.c.b16 %v1498, %v1497
        %v1513 = vpack.c.b16 %v1500, %v1499
        %v1514 = vpack.c.b16 %v1502, %v1501
        %v1515 = vpack.c.b16 %v1504, %v1503
        %v1516 = vpack.c.b16 %v1506, %v1505
        %v1517 = vpack.c.b16 %v1508, %v1507
        %v1518 = vpack.c.b16 %v1510, %v1509
        %1527 = vmatprep.subr.bf16.mxu0 0
        %1528 = vmatpush1.bf16.msra.mxu0 %v1511
        %1529 = vmatprep.subr.bf16.mxu0 0
        %1530 = vmatpush1.bf16.msra.mxu0 %v1512
        %1531 = vmatprep.subr.bf16.mxu0 0
        %1532 = vmatpush1.bf16.msra.mxu0 %v1513
        %1533 = vmatprep.subr.bf16.mxu0 0
        %1534 = vmatpush1.bf16.msra.mxu0 %v1514
        %1535 = vmatprep.subr.bf16.mxu0 0
        %1536 = vmatpush1.bf16.msra.mxu0 %v1515
        %1537 = vmatprep.subr.bf16.mxu0 0
        %1538 = vmatpush1.bf16.msra.mxu0 %v1516
        %1539 = vmatprep.subr.bf16.mxu0 0
        %1540 = vmatpush1.bf16.msra.mxu0 %v1517
        %1541 = vmatprep.subr.bf16.mxu0 0
        %1542 = vmatpush1.bf16.msra.mxu0 %v1518
        %1543 = vmatprep.subr.bf16.mxu0 0
        %1544 = vmatpush1.bf16.msra.mxu0 0
        %1545 = vmatprep.subr.bf16.mxu0 0
        %1546 = vmatpush1.bf16.msra.mxu0 0
        %1547 = vmatprep.subr.bf16.mxu0 0
        %1548 = vmatpush1.bf16.msra.mxu0 0
        %1549 = vmatprep.subr.bf16.mxu0 0
        %1550 = vmatpush1.bf16.msra.mxu0 0
        %1551 = vmatprep.subr.bf16.mxu0 0
        %1552 = vmatpush1.bf16.msra.mxu0 0
        %1553 = vmatprep.subr.bf16.mxu0 0
        %1554 = vmatpush1.bf16.msra.mxu0 0
        %1555 = vmatprep.subr.bf16.mxu0 0
        %1556 = vmatpush1.bf16.msra.mxu0 0
        %1557 = vmatprep.subr.bf16.mxu0 0
        %1558 = vmatpush1.bf16.msra.mxu0 0
        %1559 = vmatprep.mubr.bf16.mxu0 0
        %1560 = vmatmul.mubr.bf16.gmra.mrb[0].mxu0 %v1455
        %v1561 = vpop.f32.mrb[0].mxu0
        %v1562 = vadd.f32 %v1477, %v1561
        %v1563 = vpop.f32.mrb[0].mxu0
        %v1564 = vpop.f32.mrb[0].mxu0
        %v1565 = vadd.f32 %v1477, %v1564
        %v1566 = vpop.f32.mrb[0].mxu0
        %1567 = vdwg.mxu0
        %v1568 = vmax.f32 %v1562, 0.0
        %v1569 = vmax.f32 %v1565, 0.0
        %v1570 = vpack.c.bf16 %v1569, %v1568
        %v1571 = vld [vmem:[#allocation10] sm:$0xf]
        %v1572 = vld [vmem:[#allocation10 + $0x4] sm:$0xf]
        %v1573 = vld [vmem:[#allocation10 + $0x8] sm:$0xf]
        %v1574 = vld [vmem:[#allocation10 + $0xc] sm:$0xf]
        %v1575 = vld [vmem:[#allocation10 + $0x10] sm:$0xf]
        %v1576 = vld [vmem:[#allocation10 + $0x14] sm:$0xf]
        %v1577 = vld [vmem:[#allocation10 + $0x18] sm:$0xf]
        %v1578 = vld [vmem:[#allocation10 + $0x1c] sm:$0xf]
        %v1579 = vld [vmem:[#allocation10 + $0x20] sm:$0xf]
        %v1580 = vld [vmem:[#allocation10 + $0x24] sm:$0xf]
        %v1581 = vld [vmem:[#allocation10 + $0x28] sm:$0xf]
        %v1582 = vld [vmem:[#allocation10 + $0x2c] sm:$0xf]
        %v1583 = vld [vmem:[#allocation10 + $0x30] sm:$0xf]
        %v1584 = vld [vmem:[#allocation10 + $0x34] sm:$0xf]
        %v1585 = vld [vmem:[#allocation10 + $0x38] sm:$0xf]
        %v1586 = vld [vmem:[#allocation10 + $0x3c] sm:$0xf]
        %v1587 = vld [vmem:[%s10] sm:$0x1]
        %v1589 = vlaneseq
        %v1590 = vshrl.u32 %v1589, 7
        %v1591 = vsub.s32 0, %v1590
        %v1592 = vrot.slane %v1587, %v1591
        %v1610 = vunpack.c.l.b16 %v1571
        %v1611 = vunpack.c.l.b16 %v1572
        %v1612 = vunpack.c.l.b16 %v1573
        %v1613 = vunpack.c.l.b16 %v1574
        %v1614 = vunpack.c.l.b16 %v1575
        %v1615 = vunpack.c.l.b16 %v1576
        %v1616 = vunpack.c.l.b16 %v1577
        %v1617 = vunpack.c.l.b16 %v1578
        %v1618 = vunpack.c.l.b16 %v1579
        %v1619 = vunpack.c.l.b16 %v1580
        %v1620 = vunpack.c.l.b16 %v1581
        %v1621 = vunpack.c.l.b16 %v1582
        %v1622 = vunpack.c.l.b16 %v1583
        %v1623 = vunpack.c.l.b16 %v1584
        %v1624 = vunpack.c.l.b16 %v1585
        %v1625 = vunpack.c.l.b16 %v1586
        %v1626 = vpack.c.b16 %v1611, %v1610
        %v1627 = vpack.c.b16 %v1613, %v1612
        %v1628 = vpack.c.b16 %v1615, %v1614
        %v1629 = vpack.c.b16 %v1617, %v1616
        %v1630 = vpack.c.b16 %v1619, %v1618
        %v1631 = vpack.c.b16 %v1621, %v1620
        %v1632 = vpack.c.b16 %v1623, %v1622
        %v1633 = vpack.c.b16 %v1625, %v1624
        %1642 = vmatprep.subr.bf16.mxu0 0
        %1643 = vmatpush1.bf16.msra.mxu0 %v1626
        %1644 = vmatprep.subr.bf16.mxu0 0
        %1645 = vmatpush1.bf16.msra.mxu0 %v1627
        %1646 = vmatprep.subr.bf16.mxu0 0
        %1647 = vmatpush1.bf16.msra.mxu0 %v1628
        %1648 = vmatprep.subr.bf16.mxu0 0
        %1649 = vmatpush1.bf16.msra.mxu0 %v1629
        %1650 = vmatprep.subr.bf16.mxu0 0
        %1651 = vmatpush1.bf16.msra.mxu0 %v1630
        %1652 = vmatprep.subr.bf16.mxu0 0
        %1653 = vmatpush1.bf16.msra.mxu0 %v1631
        %1654 = vmatprep.subr.bf16.mxu0 0
        %1655 = vmatpush1.bf16.msra.mxu0 %v1632
        %1656 = vmatprep.subr.bf16.mxu0 0
        %1657 = vmatpush1.bf16.msra.mxu0 %v1633
        %1658 = vmatprep.subr.bf16.mxu0 0
        %1659 = vmatpush1.bf16.msra.mxu0 0
        %1660 = vmatprep.subr.bf16.mxu0 0
        %1661 = vmatpush1.bf16.msra.mxu0 0
        %1662 = vmatprep.subr.bf16.mxu0 0
        %1663 = vmatpush1.bf16.msra.mxu0 0
        %1664 = vmatprep.subr.bf16.mxu0 0
        %1665 = vmatpush1.bf16.msra.mxu0 0
        %1666 = vmatprep.subr.bf16.mxu0 0
        %1667 = vmatpush1.bf16.msra.mxu0 0
        %1668 = vmatprep.subr.bf16.mxu0 0
        %1669 = vmatpush1.bf16.msra.mxu0 0
        %1670 = vmatprep.subr.bf16.mxu0 0
        %1671 = vmatpush1.bf16.msra.mxu0 0
        %1672 = vmatprep.subr.bf16.mxu0 0
        %1673 = vmatpush1.bf16.msra.mxu0 0
        %1674 = vmatprep.mubr.bf16.mxu0 0
        %1675 = vmatmul.mubr.bf16.gmra.mrb[0].mxu0 %v1570
        %v1676 = vpop.f32.mrb[0].mxu0
        %v1677 = vadd.f32 %v1592, %v1676
        %v1678 = vpop.f32.mrb[0].mxu0
        %v1679 = vpop.f32.mrb[0].mxu0
        %v1680 = vadd.f32 %v1592, %v1679
        %v1681 = vpop.f32.mrb[0].mxu0
        %1682 = vdwg.mxu0
        %v1683 = vadd.f32 %v1453, %v1677
        %v1684 = vadd.f32 %v1454, %v1680
        %v1685 = vld [vmem:[%s11] sm:$0x1]
        %v1686 = vld [vmem:[%s12] sm:$0x1]
        %1687 = vadd.xlane.f32.xlu0 %v1683
        %v1688 = vpop.xlane.xlu0 %1687
        %1689 = vadd.xlane.f32.xlu0 %v1684
        %v1690 = vpop.xlane.xlu0 %1689
        %v1691 = vmul.f32 %v1688, %v1420
        %v1692 = vmul.f32 %v1690, %v1420
        %v1693 = vsub.f32 %v1683, %v1691
        %v1694 = vsub.f32 %v1684, %v1692
        %v1695 = vmul.f32 %v1693, %v1693
        %v1696 = vmul.f32 %v1694, %v1694
        %1697 = vadd.xlane.f32.xlu0 %v1695
        %v1698 = vpop.xlane.xlu0 %1697
        %1699 = vadd.xlane.f32.xlu0 %v1696
        %v1700 = vpop.xlane.xlu0 %1699
        %v1701 = vmul.f32 %v1698, %v1420
        %v1702 = vmul.f32 %v1700, %v1420
        %v1703 = vadd.f32 %v1701, 1e-05
        %v1704 = vadd.f32 %v1702, 1e-05
        %v1705 = vrsqrt.pop %v1703
        %v1706 = vrsqrt.pop %v1704
        %v1707 = vmul.f32 %v1693, %v1705
        %v1708 = vmul.f32 %v1694, %v1706
        %v1710 = vlaneseq
        %v1711 = vshrl.u32 %v1710, 7
        %v1712 = vsub.s32 0, %v1711
        %v1713 = vrot.slane %v1685, %v1712
        %v1715 = vmul.f32 %v1707, %v1713
        %v1716 = vmul.f32 %v1708, %v1713
        %v1718 = vlaneseq
        %v1719 = vshrl.u32 %v1718, 7
        %v1720 = vsub.s32 0, %v1719
        %v1721 = vrot.slane %v1686, %v1720
        %v1723 = vadd.f32 %v1715, %v1721
        %v1724 = vadd.f32 %v1716, %v1721
        %1725 = vst [vmem:[%s516] sm:$0xff] %v1723
        %1726 = vst [vmem:[%s516 + $0x8] sm:$0xff] %v1724
        %s1727 = sand.u32 %s318, 1
        %s1728 = scalar_lea.sflag [#allocation4], %s1727
        %s1729 = sand.u32 %s318, 1
        %s1730 = smul.addr %s1729, 16
        %s1731 = scalar_lea.vmem [#allocation11], %s1730
        // Predicated region
        $region93: #{tpu_custom_call.1} parent=71 // pred_check
          %p1732 = pneg %p328
        $region94: #{tpu_custom_call.1} parent=71 // pred_check_branch
          %1734 = sbr.rel (%p1732) target = $region96
        $region95: #{tpu_custom_call.1} parent=71 // pred_region
          %s1736 = ssub.s32 256, 256
          %1737 = vsyncadd %s1728, %s1736
          %s1738 = smul.addr %s32, 2
          %s1739 = smul.addr %s1738, 128
          %s1740 = scalar_lea.hbm %s13, %s1739
          %s1741 = sshll.u32 %s1731, 4
          %s1742 = int_to_ptr.vmem [resolvable:$true] %s1741
          %1747 = dma.vmem_to_hbm [thread:$0]  %s1742, 256, %s1740, %s1728, 128, 128, 8
        $region96: #{tpu_custom_call.1} parent=71 // pred_fallthru
          _
      $region72: #{tpu_custom_call.1} parent=5 // pred_fallthru
        _
      %p1748 = scmp.le.s32.totalorder 2, %s27
      // Predicated region
      $region97: #{tpu_custom_call.1} parent=5 // pred_check
        %p1749 = pneg %p1748
      $region98: #{tpu_custom_call.1} parent=5 // pred_check_branch
        %1751 = sbr.rel (%p1749) target = $region100
      $region99: #{tpu_custom_call.1} parent=5 // pred_region
        %s1752 = ssub.s32 %s27, 2
        // Predicated region
        $region101: #{tpu_custom_call.1} parent=99 // pred_check
          %p1753 = pneg %p334
        $region102: #{tpu_custom_call.1} parent=99 // pred_check_branch
          %1755 = sbr.rel (%p1753) target = $region104
        $region103: #{tpu_custom_call.1} parent=99 // pred_region
          %s1756 = sand.u32 %s319, 1
          %s1757 = scalar_lea.sflag [#allocation4], %s1756
          %s1758 = sand.u32 %s319, 1
          %s1759 = smul.addr %s1758, 16
          %s1760 = scalar_lea.vmem [#allocation11], %s1759
          %1761 = dma.done %s1757, 256
        $region104: #{tpu_custom_call.1} parent=99 // pred_fallthru
          _
      $region100: #{tpu_custom_call.1} parent=5 // pred_fallthru
        _
    $region6: #{tpu_custom_call.1} parent=1 // loop_footer
      %s31 = sadd.s32 1, %s27
    $region7: #{tpu_custom_call.1} parent=1 // loop_footer_branch
      %26 = sbr.rel target = $region3
    $region8: #{tpu_custom_call.1} parent=1 // loop_exit
      _
    %1762 = vsyncpa [#allocation3], 1
    %s1763 = scalar_lea.sflag [#allocation3], 1
    %1764 = vsyncpa %s1763, 1
    %1765 = vsyncpa [#allocation6], 1
    %1766 = vsyncpa [#allocation9], 1
    %1767 = vsyncpa [#allocation4], 1
    %s1768 = scalar_lea.sflag [#allocation4], 1
    %1769 = vsyncpa %s1768, 1

</llo_original>
